<compile_context>
chip_gen: v6e
topology: v6e:2x2x1
jax: 0.10.0
libtpu: 0.0.40
codegen_flags: <defaults>
</compile_context>

<pallas_src>
import functools

import jax
import jax.numpy as jnp
from jax.experimental import pallas as pl
from jax.experimental.pallas import tpu as pltpu


C_IN, C1, C2 = 3, 16, 32


# ---------------------------------------------------------------------------
# Fused Pallas kernel: full encoder + decoder for one image
# ---------------------------------------------------------------------------
def _depth_net_kernel(x_ref,
                      w1_ref, b1_ref,
                      w2_ref, b2_ref,
                      w3_ref, b3_ref,
                      w4a_ref, w4b_ref, b4_ref,
                      w5_ref, b5_ref,
                      disp_ref,
                      *, H, W):
    f32 = jnp.float32

    def pad1(y):
        """Zero 1-pixel halo on the two spatial dims of (h, w, c) -- all in VMEM."""
        h, w, c = y.shape
        zr = jnp.zeros((1, w, c), y.dtype)
        y = jnp.concatenate([zr, y, zr], axis=0)
        zc = jnp.zeros((h + 2, 1, c), y.dtype)
        y = jnp.concatenate([zc, y, zc], axis=1)
        return y

    def conv3x3(inputs, b_ref_, act):
        """3x3 / stride-1 / pad-1 conv as ONE im2col matmul per input branch.

        inputs: list of (y (h, w, cin_i), w_ref (9*cin_i, cout)).  Multiple branches
        accumulate into the same f32 accumulator, which is how the decoder skip
        'concat' is realised without ever building the concatenated tensor.
        """
        h, w, _ = inputs[0][0].shape
        acc = None
        for y, w_r in inputs:
            cin = y.shape[-1]
            yp = pad1(y)
            taps = [yp[kh:kh + h, kw:kw + w, :] for kh in range(3) for kw in range(3)]
            col = jnp.concatenate(taps, axis=-1).reshape(h * w, 9 * cin)  # K = 9*cin
            part = jnp.dot(col.astype(jnp.bfloat16), w_r[...],
                           preferred_element_type=f32)
            acc = part if acc is None else acc + part
        acc = acc + b_ref_[...]                       # (1, cout) broadcasts over rows
        if act == "relu":
            acc = jnp.maximum(acc, 0.0)
        elif act == "sigmoid":
            acc = jax.nn.sigmoid(acc)
        return acc.reshape(h, w, acc.shape[-1])

    def down2(y):
        """Even rows/cols: equivalent to y[::2, ::2, :] (pure VMEM relayout)."""
        h, w, c = y.shape
        y = y.reshape(h // 2, 2, w, c)[:, 0]
        y = y.reshape(h // 2, w // 2, 2, c)[:, :, 0, :]
        return y

    def up2(y):
        """2x nearest-neighbour upsample on (h, w, c) (pure VMEM relayout)."""
        h, w, c = y.shape
        y = jnp.broadcast_to(y[:, None, :, :], (h, 2, w, c)).reshape(2 * h, w, c)
        y = jnp.broadcast_to(y[:, :, None, :], (2 * h, w, 2, c)).reshape(2 * h, 2 * w, c)
        return y

    x = x_ref[0].astype(f32)                                        # (H, W, 3)

    # --- encoder: conv+ReLU stages with 2x downsampling ---
    f1 = conv3x3([(x, w1_ref)], b1_ref, "relu")                     # (H,   W,   C1)
    f1 = down2(f1)                                                  # (H/2, W/2, C1)
    f2 = conv3x3([(f1, w2_ref)], b2_ref, "relu")                    # (H/2, W/2, C2)
    f2 = down2(f2)                                                  # (H/4, W/4, C2)

    # --- decoder: upconvs + skip connection (skip = 2nd accumulated matmul) ---
    d2 = conv3x3([(f2, w3_ref)], b3_ref, "relu")                    # (H/4, W/4, C1)
    d2 = up2(d2)                                                    # (H/2, W/2, C1)
    d1 = conv3x3([(d2, w4a_ref), (f1, w4b_ref)], b4_ref, "relu")    # (H/2, W/2, C1)
    d1 = up2(d1)                                                    # (H,   W,   C1)

    # --- disparity head: sigmoid(conv(d1)); lane-dense (H, W) store in NCHW layout ---
    disp = conv3x3([(d1, w5_ref)], b5_ref, "sigmoid")               # (H, W, 1) f32
    disp2d = disp.reshape(H, W)
    disp_ref[...] = disp2d[None, None, :, :]                        # (1, 1, H, W)


# ---------------------------------------------------------------------------
# Parameters (deterministic, in-script)
# ---------------------------------------------------------------------------
def init_params(key):
    def conv_p(k, cin, cout):
        kw_, kb_ = jax.random.split(k)
        w = 0.1 * jax.random.normal(kw_, (3, 3, cin, cout), jnp.float32)
        b = 0.05 * jax.random.normal(kb_, (cout,), jnp.float32)
        return {"w": w, "b": b}

    ks = jax.random.split(key, 5)
    return {
        "enc_conv1": conv_p(ks[0], C_IN, C1),        # encoder stage 1
        "enc_conv2": conv_p(ks[1], C1, C2),          # encoder stage 2
        "dec_upconv2": conv_p(ks[2], C2, C1),        # decoder
        "dec_upconv1": conv_p(ks[3], C1 + C1, C1),   # after skip
        "dec_dispconv": conv_p(ks[4], C1, 1),        # disparity head (sigmoid)
    }


# ---------------------------------------------------------------------------
# DepthModelWrapper.forward equivalent (single pallas_call)
# ---------------------------------------------------------------------------
def depth_model_forward(params, input_image_nchw):
    """input_image: (N, 3, H, W) f32 -> disp: (N, 1, H, W) f32 in [0, 1]."""
    N, cin, H, W = input_image_nchw.shape
    assert cin == C_IN and H % 4 == 0 and W % 4 == 0

    # NCHW -> NHWC for the kernel; bf16 at the pallas_call boundary (half the DMA bytes).
    x = jnp.transpose(input_image_nchw, (0, 2, 3, 1)).astype(jnp.bfloat16)

    def w_mat(p):
        # (3,3,cin,cout) -> (9*cin, cout), tap-major / channel-minor: matches the
        # in-kernel im2col ordering concat([tap(kh,kw) for kh for kw], channel).
        kh, kw, ci, co = p["w"].shape
        return p["w"].reshape(kh * kw * ci, co).astype(jnp.bfloat16)

    def b_row(p):
        return p["b"].reshape(1, -1).astype(jnp.float32)

    w1, b1 = w_mat(params["enc_conv1"]), b_row(params["enc_conv1"])
    w2, b2 = w_mat(params["enc_conv2"]), b_row(params["enc_conv2"])
    w3, b3 = w_mat(params["dec_upconv2"]), b_row(params["dec_upconv2"])
    # Skip-concat conv: split the weight into its d2 / f1 halves so the kernel does two
    # accumulated matmuls instead of materialising concat([d2, f1]).
    w4 = params["dec_upconv1"]["w"]
    w4a = w4[:, :, :C1, :].reshape(9 * C1, C1).astype(jnp.bfloat16)   # d2 half
    w4b = w4[:, :, C1:, :].reshape(9 * C1, C1).astype(jnp.bfloat16)   # f1 (skip) half
    b4 = b_row(params["dec_upconv1"])
    w5, b5 = w_mat(params["dec_dispconv"]), b_row(params["dec_dispconv"])

    kernel = functools.partial(_depth_net_kernel, H=H, W=W)
    full = lambda n: (0, 0)   # weights/biases: same full block every grid step

    disp = pl.pallas_call(
        kernel,
        out_shape=jax.ShapeDtypeStruct((N, 1, H, W), jnp.float32),
        grid_spec=pltpu.PrefetchScalarGridSpec(
            num_scalar_prefetch=0,
            grid=(N,),
            in_specs=[
                pl.BlockSpec((1, H, W, C_IN), lambda n: (n, 0, 0, 0)),
                pl.BlockSpec(w1.shape, full), pl.BlockSpec(b1.shape, full),
                pl.BlockSpec(w2.shape, full), pl.BlockSpec(b2.shape, full),
                pl.BlockSpec(w3.shape, full), pl.BlockSpec(b3.shape, full),
                pl.BlockSpec(w4a.shape, full), pl.BlockSpec(w4b.shape, full),
                pl.BlockSpec(b4.shape, full),
                pl.BlockSpec(w5.shape, full), pl.BlockSpec(b5.shape, full),
            ],
            out_specs=pl.BlockSpec((1, 1, H, W), lambda n: (n, 0, 0, 0)),
        ),
        compiler_params=pltpu.CompilerParams(dimension_semantics=("parallel",)),
    )(x, w1, b1, w2, b2, w3, b3, w4a, w4b, b4, w5, b5)

    return disp   # already NCHW (N, 1, H, W), f32


# ---------------------------------------------------------------------------
# Pure-JAX f32 reference (same architecture) for numeric validation
# ---------------------------------------------------------------------------
def _ref_conv(x, w, b, act):
    y = jax.lax.conv_general_dilated(
        x, w, window_strides=(1, 1), padding="SAME",
        dimension_numbers=("NHWC", "HWIO", "NHWC"))
    y = y + b
    if act == "relu":
        y = jnp.maximum(y, 0.0)
    elif act == "sigmoid":
        y = jax.nn.sigmoid(y)
    return y


def depth_model_forward_ref(params, input_image_nchw):
    x = jnp.transpose(input_image_nchw, (0, 2, 3, 1))
    f1 = _ref_conv(x, params["enc_conv1"]["w"], params["enc_conv1"]["b"], "relu")[:, ::2, ::2, :]
    f2 = _ref_conv(f1, params["enc_conv2"]["w"], params["enc_conv2"]["b"], "relu")[:, ::2, ::2, :]
    d2 = _ref_conv(f2, params["dec_upconv2"]["w"], params["dec_upconv2"]["b"], "relu")
    d2 = jnp.repeat(jnp.repeat(d2, 2, axis=1), 2, axis=2)
    d1 = _ref_conv(jnp.concatenate([d2, f1], axis=-1),
                   params["dec_upconv1"]["w"], params["dec_upconv1"]["b"], "relu")
    d1 = jnp.repeat(jnp.repeat(d1, 2, axis=1), 2, axis=2)
    disp = _ref_conv(d1, params["dec_dispconv"]["w"], params["dec_dispconv"]["b"], "sigmoid")
    return jnp.transpose(disp, (0, 3, 1, 2))


# ---------------------------------------------------------------------------
if __name__ == "__main__":
    key = jax.random.PRNGKey(0)
    k_params, k_input = jax.random.split(key)

    params = init_params(k_params)
    input_image = jax.random.uniform(k_input, (2, 3, 16, 16), jnp.float32)

    disp = jax.jit(depth_model_forward)(params, input_image)
    disp = jax.block_until_ready(disp)

    assert disp.shape == (2, 1, 16, 16), disp.shape
    assert disp.dtype == jnp.float32
    assert bool(jnp.all((disp >= 0.0) & (disp <= 1.0)))   # sigmoid range

    # bf16-I/O Pallas kernel vs f32 pure-JAX reference
    disp_ref = jax.jit(depth_model_forward_ref)(params, input_image)
    max_err = float(jnp.max(jnp.abs(disp - disp_ref)))
    assert max_err < 5e-2, max_err

    print("KERNEL_OK")
</pallas_src>

<mosaic_0001>
module attributes {stable_mosaic.version = 11 : i64} {
  func.func @_depth_net_kernel(%arg0: i32, %arg1: memref<1x16x16x3xbf16, #tpu.memory_space<vmem>>, %arg2: memref<27x16xbf16, #tpu.memory_space<vmem>>, %arg3: memref<1x16xf32, #tpu.memory_space<vmem>>, %arg4: memref<144x32xbf16, #tpu.memory_space<vmem>>, %arg5: memref<1x32xf32, #tpu.memory_space<vmem>>, %arg6: memref<288x16xbf16, #tpu.memory_space<vmem>>, %arg7: memref<1x16xf32, #tpu.memory_space<vmem>>, %arg8: memref<144x16xbf16, #tpu.memory_space<vmem>>, %arg9: memref<144x16xbf16, #tpu.memory_space<vmem>>, %arg10: memref<1x16xf32, #tpu.memory_space<vmem>>, %arg11: memref<144x1xbf16, #tpu.memory_space<vmem>>, %arg12: memref<1x1xf32, #tpu.memory_space<vmem>>, %arg13: memref<1x1x16x16xf32, #tpu.memory_space<vmem>>) attributes {dimension_semantics = [#tpu.dimension_semantics<parallel>], iteration_bounds = array<i64: 2>, scalar_prefetch = 0 : i64, scratch_operands = 0 : i64, tpu.core_type = #tpu.core_type<tc>, window_params = [{transform_indices = @transform_0, window_bounds = array<i64: 1, 16, 16, 3>}, {pipeline_mode = #tpu.pipeline_mode<synchronous>, transform_indices = @transform_1, window_bounds = array<i64: 27, 16>}, {pipeline_mode = #tpu.pipeline_mode<synchronous>, transform_indices = @transform_2, window_bounds = array<i64: 1, 16>}, {pipeline_mode = #tpu.pipeline_mode<synchronous>, transform_indices = @transform_3, window_bounds = array<i64: 144, 32>}, {pipeline_mode = #tpu.pipeline_mode<synchronous>, transform_indices = @transform_4, window_bounds = array<i64: 1, 32>}, {pipeline_mode = #tpu.pipeline_mode<synchronous>, transform_indices = @transform_5, window_bounds = array<i64: 288, 16>}, {pipeline_mode = #tpu.pipeline_mode<synchronous>, transform_indices = @transform_6, window_bounds = array<i64: 1, 16>}, {pipeline_mode = #tpu.pipeline_mode<synchronous>, transform_indices = @transform_7, window_bounds = array<i64: 144, 16>}, {pipeline_mode = #tpu.pipeline_mode<synchronous>, transform_indices = @transform_8, window_bounds = array<i64: 144, 16>}, {pipeline_mode = #tpu.pipeline_mode<synchronous>, transform_indices = @transform_9, window_bounds = array<i64: 1, 16>}, {pipeline_mode = #tpu.pipeline_mode<synchronous>, transform_indices = @transform_10, window_bounds = array<i64: 144, 1>}, {pipeline_mode = #tpu.pipeline_mode<synchronous>, transform_indices = @transform_11, window_bounds = array<i64: 1, 1>}, {transform_indices = @transform_12, window_bounds = array<i64: 1, 1, 16, 16>}]} {
    %c0 = arith.constant 0 : index
    %c0_0 = arith.constant 0 : index
    %c0_1 = arith.constant 0 : index
    %c0_2 = arith.constant 0 : index
    %0 = vector.load %arg1[%c0, %c0_0, %c0_1, %c0_2] : memref<1x16x16x3xbf16, #tpu.memory_space<vmem>>, vector<1x16x16x3xbf16>
    %1 = vector.shape_cast %0 : vector<1x16x16x3xbf16> to vector<16x16x3xbf16>
    %2 = arith.extf %1 : vector<16x16x3xbf16> to vector<16x16x3xf32>
    %cst = arith.constant 0.000000e+00 : f32
    %3 = vector.broadcast %cst : f32 to vector<1x16x3xf32>
    %4 = tpu.concatenate %3, %2, %3 in 0 : vector<1x16x3xf32>, vector<16x16x3xf32>, vector<1x16x3xf32> -> vector<18x16x3xf32>
    %cst_3 = arith.constant 0.000000e+00 : f32
    %5 = vector.broadcast %cst_3 : f32 to vector<18x1x3xf32>
    %6 = tpu.concatenate %5, %4, %5 in 1 : vector<18x1x3xf32>, vector<18x16x3xf32>, vector<18x1x3xf32> -> vector<18x18x3xf32>
    %7 = vector.extract_strided_slice %6 {offsets = [0, 0, 0], sizes = [16, 16, 3], strides = [1, 1, 1]} : vector<18x18x3xf32> to vector<16x16x3xf32>
    %8 = vector.extract_strided_slice %6 {offsets = [0, 1, 0], sizes = [16, 16, 3], strides = [1, 1, 1]} : vector<18x18x3xf32> to vector<16x16x3xf32>
    %9 = vector.extract_strided_slice %6 {offsets = [0, 2, 0], sizes = [16, 16, 3], strides = [1, 1, 1]} : vector<18x18x3xf32> to vector<16x16x3xf32>
    %10 = vector.extract_strided_slice %6 {offsets = [1, 0, 0], sizes = [16, 16, 3], strides = [1, 1, 1]} : vector<18x18x3xf32> to vector<16x16x3xf32>
    %11 = vector.extract_strided_slice %6 {offsets = [1, 1, 0], sizes = [16, 16, 3], strides = [1, 1, 1]} : vector<18x18x3xf32> to vector<16x16x3xf32>
    %12 = vector.extract_strided_slice %6 {offsets = [1, 2, 0], sizes = [16, 16, 3], strides = [1, 1, 1]} : vector<18x18x3xf32> to vector<16x16x3xf32>
    %13 = vector.extract_strided_slice %6 {offsets = [2, 0, 0], sizes = [16, 16, 3], strides = [1, 1, 1]} : vector<18x18x3xf32> to vector<16x16x3xf32>
    %14 = vector.extract_strided_slice %6 {offsets = [2, 1, 0], sizes = [16, 16, 3], strides = [1, 1, 1]} : vector<18x18x3xf32> to vector<16x16x3xf32>
    %15 = vector.extract_strided_slice %6 {offsets = [2, 2, 0], sizes = [16, 16, 3], strides = [1, 1, 1]} : vector<18x18x3xf32> to vector<16x16x3xf32>
    %16 = tpu.concatenate %7, %8, %9, %10, %11, %12, %13, %14, %15 in 2 : vector<16x16x3xf32>, vector<16x16x3xf32>, vector<16x16x3xf32>, vector<16x16x3xf32>, vector<16x16x3xf32>, vector<16x16x3xf32>, vector<16x16x3xf32>, vector<16x16x3xf32>, vector<16x16x3xf32> -> vector<16x16x27xf32>
    %17 = vector.shape_cast %16 : vector<16x16x27xf32> to vector<256x27xf32>
    %18 = arith.truncf %17 : vector<256x27xf32> to vector<256x27xbf16>
    %c0_4 = arith.constant 0 : index
    %c0_5 = arith.constant 0 : index
    %19 = vector.load %arg2[%c0_4, %c0_5] : memref<27x16xbf16, #tpu.memory_space<vmem>>, vector<27x16xbf16>
    %cst_6 = arith.constant dense<0.000000e+00> : vector<256x16xf32>
    %20 = tpu.matmul %18, %19, %cst_6 {dimension_numbers = #tpu.dot_dimension_numbers<[1], [0], [0], [1], [0, 0, 1, 1], [], []>} : vector<256x27xbf16>, vector<27x16xbf16>, vector<256x16xf32> -> vector<256x16xf32>
    %c0_7 = arith.constant 0 : index
    %c0_8 = arith.constant 0 : index
    %21 = vector.load %arg3[%c0_7, %c0_8] : memref<1x16xf32, #tpu.memory_space<vmem>>, vector<1x16xf32>
    %22 = vector.broadcast %21 : vector<1x16xf32> to vector<256x16xf32>
    %23 = arith.addf %20, %22 : vector<256x16xf32>
    %cst_9 = arith.constant 0.000000e+00 : f32
    %24 = vector.broadcast %cst_9 : f32 to vector<256x16xf32>
    %25 = arith.maximumf %23, %24 : vector<256x16xf32>
    %26 = vector.shape_cast %25 : vector<256x16xf32> to vector<16x16x16xf32>
    %27 = vector.shape_cast %26 : vector<16x16x16xf32> to vector<8x2x16x16xf32>
    %28 = vector.extract_strided_slice %27 {offsets = [0, 0, 0, 0], sizes = [8, 1, 16, 16], strides = [1, 1, 1, 1]} : vector<8x2x16x16xf32> to vector<8x1x16x16xf32>
    %29 = vector.shape_cast %28 : vector<8x1x16x16xf32> to vector<8x16x16xf32>
    %30 = vector.shape_cast %29 : vector<8x16x16xf32> to vector<8x8x2x16xf32>
    %31 = vector.extract_strided_slice %30 {offsets = [0, 0, 0, 0], sizes = [8, 8, 1, 16], strides = [1, 1, 1, 1]} : vector<8x8x2x16xf32> to vector<8x8x1x16xf32>
    %32 = vector.shape_cast %31 : vector<8x8x1x16xf32> to vector<8x8x16xf32>
    %cst_10 = arith.constant 0.000000e+00 : f32
    %33 = vector.broadcast %cst_10 : f32 to vector<1x8x16xf32>
    %34 = tpu.concatenate %33, %32, %33 in 0 : vector<1x8x16xf32>, vector<8x8x16xf32>, vector<1x8x16xf32> -> vector<10x8x16xf32>
    %cst_11 = arith.constant 0.000000e+00 : f32
    %35 = vector.broadcast %cst_11 : f32 to vector<10x1x16xf32>
    %36 = tpu.concatenate %35, %34, %35 in 1 : vector<10x1x16xf32>, vector<10x8x16xf32>, vector<10x1x16xf32> -> vector<10x10x16xf32>
    %37 = vector.extract_strided_slice %36 {offsets = [0, 0, 0], sizes = [8, 8, 16], strides = [1, 1, 1]} : vector<10x10x16xf32> to vector<8x8x16xf32>
    %38 = vector.extract_strided_slice %36 {offsets = [0, 1, 0], sizes = [8, 8, 16], strides = [1, 1, 1]} : vector<10x10x16xf32> to vector<8x8x16xf32>
    %39 = vector.extract_strided_slice %36 {offsets = [0, 2, 0], sizes = [8, 8, 16], strides = [1, 1, 1]} : vector<10x10x16xf32> to vector<8x8x16xf32>
    %40 = vector.extract_strided_slice %36 {offsets = [1, 0, 0], sizes = [8, 8, 16], strides = [1, 1, 1]} : vector<10x10x16xf32> to vector<8x8x16xf32>
    %41 = vector.extract_strided_slice %36 {offsets = [1, 1, 0], sizes = [8, 8, 16], strides = [1, 1, 1]} : vector<10x10x16xf32> to vector<8x8x16xf32>
    %42 = vector.extract_strided_slice %36 {offsets = [1, 2, 0], sizes = [8, 8, 16], strides = [1, 1, 1]} : vector<10x10x16xf32> to vector<8x8x16xf32>
    %43 = vector.extract_strided_slice %36 {offsets = [2, 0, 0], sizes = [8, 8, 16], strides = [1, 1, 1]} : vector<10x10x16xf32> to vector<8x8x16xf32>
    %44 = vector.extract_strided_slice %36 {offsets = [2, 1, 0], sizes = [8, 8, 16], strides = [1, 1, 1]} : vector<10x10x16xf32> to vector<8x8x16xf32>
    %45 = vector.extract_strided_slice %36 {offsets = [2, 2, 0], sizes = [8, 8, 16], strides = [1, 1, 1]} : vector<10x10x16xf32> to vector<8x8x16xf32>
    %46 = tpu.concatenate %37, %38, %39, %40, %41, %42, %43, %44, %45 in 2 : vector<8x8x16xf32>, vector<8x8x16xf32>, vector<8x8x16xf32>, vector<8x8x16xf32>, vector<8x8x16xf32>, vector<8x8x16xf32>, vector<8x8x16xf32>, vector<8x8x16xf32>, vector<8x8x16xf32> -> vector<8x8x144xf32>
    %47 = vector.shape_cast %46 : vector<8x8x144xf32> to vector<64x144xf32>
    %48 = arith.truncf %47 : vector<64x144xf32> to vector<64x144xbf16>
    %c0_12 = arith.constant 0 : index
    %c0_13 = arith.constant 0 : index
    %49 = vector.load %arg4[%c0_12, %c0_13] : memref<144x32xbf16, #tpu.memory_space<vmem>>, vector<144x32xbf16>
    %cst_14 = arith.constant dense<0.000000e+00> : vector<64x32xf32>
    %50 = tpu.matmul %48, %49, %cst_14 {dimension_numbers = #tpu.dot_dimension_numbers<[1], [0], [0], [1], [0, 0, 1, 1], [], []>} : vector<64x144xbf16>, vector<144x32xbf16>, vector<64x32xf32> -> vector<64x32xf32>
    %c0_15 = arith.constant 0 : index
    %c0_16 = arith.constant 0 : index
    %51 = vector.load %arg5[%c0_15, %c0_16] : memref<1x32xf32, #tpu.memory_space<vmem>>, vector<1x32xf32>
    %52 = vector.broadcast %51 : vector<1x32xf32> to vector<64x32xf32>
    %53 = arith.addf %50, %52 : vector<64x32xf32>
    %cst_17 = arith.constant 0.000000e+00 : f32
    %54 = vector.broadcast %cst_17 : f32 to vector<64x32xf32>
    %55 = arith.maximumf %53, %54 : vector<64x32xf32>
    %56 = vector.shape_cast %55 : vector<64x32xf32> to vector<8x8x32xf32>
    %57 = vector.shape_cast %56 : vector<8x8x32xf32> to vector<4x2x8x32xf32>
    %58 = vector.extract_strided_slice %57 {offsets = [0, 0, 0, 0], sizes = [4, 1, 8, 32], strides = [1, 1, 1, 1]} : vector<4x2x8x32xf32> to vector<4x1x8x32xf32>
    %59 = vector.shape_cast %58 : vector<4x1x8x32xf32> to vector<4x8x32xf32>
    %60 = vector.shape_cast %59 : vector<4x8x32xf32> to vector<4x4x2x32xf32>
    %61 = vector.extract_strided_slice %60 {offsets = [0, 0, 0, 0], sizes = [4, 4, 1, 32], strides = [1, 1, 1, 1]} : vector<4x4x2x32xf32> to vector<4x4x1x32xf32>
    %62 = vector.shape_cast %61 : vector<4x4x1x32xf32> to vector<4x4x32xf32>
    %cst_18 = arith.constant 0.000000e+00 : f32
    %63 = vector.broadcast %cst_18 : f32 to vector<1x4x32xf32>
    %64 = tpu.concatenate %63, %62, %63 in 0 : vector<1x4x32xf32>, vector<4x4x32xf32>, vector<1x4x32xf32> -> vector<6x4x32xf32>
    %cst_19 = arith.constant 0.000000e+00 : f32
    %65 = vector.broadcast %cst_19 : f32 to vector<6x1x32xf32>
    %66 = tpu.concatenate %65, %64, %65 in 1 : vector<6x1x32xf32>, vector<6x4x32xf32>, vector<6x1x32xf32> -> vector<6x6x32xf32>
    %67 = vector.extract_strided_slice %66 {offsets = [0, 0, 0], sizes = [4, 4, 32], strides = [1, 1, 1]} : vector<6x6x32xf32> to vector<4x4x32xf32>
    %68 = vector.extract_strided_slice %66 {offsets = [0, 1, 0], sizes = [4, 4, 32], strides = [1, 1, 1]} : vector<6x6x32xf32> to vector<4x4x32xf32>
    %69 = vector.extract_strided_slice %66 {offsets = [0, 2, 0], sizes = [4, 4, 32], strides = [1, 1, 1]} : vector<6x6x32xf32> to vector<4x4x32xf32>
    %70 = vector.extract_strided_slice %66 {offsets = [1, 0, 0], sizes = [4, 4, 32], strides = [1, 1, 1]} : vector<6x6x32xf32> to vector<4x4x32xf32>
    %71 = vector.extract_strided_slice %66 {offsets = [1, 1, 0], sizes = [4, 4, 32], strides = [1, 1, 1]} : vector<6x6x32xf32> to vector<4x4x32xf32>
    %72 = vector.extract_strided_slice %66 {offsets = [1, 2, 0], sizes = [4, 4, 32], strides = [1, 1, 1]} : vector<6x6x32xf32> to vector<4x4x32xf32>
    %73 = vector.extract_strided_slice %66 {offsets = [2, 0, 0], sizes = [4, 4, 32], strides = [1, 1, 1]} : vector<6x6x32xf32> to vector<4x4x32xf32>
    %74 = vector.extract_strided_slice %66 {offsets = [2, 1, 0], sizes = [4, 4, 32], strides = [1, 1, 1]} : vector<6x6x32xf32> to vector<4x4x32xf32>
    %75 = vector.extract_strided_slice %66 {offsets = [2, 2, 0], sizes = [4, 4, 32], strides = [1, 1, 1]} : vector<6x6x32xf32> to vector<4x4x32xf32>
    %76 = tpu.concatenate %67, %68, %69, %70, %71, %72, %73, %74, %75 in 2 : vector<4x4x32xf32>, vector<4x4x32xf32>, vector<4x4x32xf32>, vector<4x4x32xf32>, vector<4x4x32xf32>, vector<4x4x32xf32>, vector<4x4x32xf32>, vector<4x4x32xf32>, vector<4x4x32xf32> -> vector<4x4x288xf32>
    %77 = vector.shape_cast %76 : vector<4x4x288xf32> to vector<16x288xf32>
    %78 = arith.truncf %77 : vector<16x288xf32> to vector<16x288xbf16>
    %c0_20 = arith.constant 0 : index
    %c0_21 = arith.constant 0 : index
    %79 = vector.load %arg6[%c0_20, %c0_21] : memref<288x16xbf16, #tpu.memory_space<vmem>>, vector<288x16xbf16>
    %cst_22 = arith.constant dense<0.000000e+00> : vector<16x16xf32>
    %80 = tpu.matmul %78, %79, %cst_22 {dimension_numbers = #tpu.dot_dimension_numbers<[1], [0], [0], [1], [0, 0, 1, 1], [], []>} : vector<16x288xbf16>, vector<288x16xbf16>, vector<16x16xf32> -> vector<16x16xf32>
    %c0_23 = arith.constant 0 : index
    %c0_24 = arith.constant 0 : index
    %81 = vector.load %arg7[%c0_23, %c0_24] : memref<1x16xf32, #tpu.memory_space<vmem>>, vector<1x16xf32>
    %82 = vector.broadcast %81 : vector<1x16xf32> to vector<16x16xf32>
    %83 = arith.addf %80, %82 : vector<16x16xf32>
    %cst_25 = arith.constant 0.000000e+00 : f32
    %84 = vector.broadcast %cst_25 : f32 to vector<16x16xf32>
    %85 = arith.maximumf %83, %84 : vector<16x16xf32>
    %86 = vector.shape_cast %85 : vector<16x16xf32> to vector<4x4x16xf32>
    %87 = vector.shape_cast %86 : vector<4x4x16xf32> to vector<4x1x4x16xf32>
    %88 = vector.shape_cast %87 : vector<4x1x4x16xf32> to vector<4x1x4x16xf32>
    %89 = vector.broadcast %88 : vector<4x1x4x16xf32> to vector<4x2x4x16xf32>
    %90 = vector.shape_cast %89 : vector<4x2x4x16xf32> to vector<8x4x16xf32>
    %91 = vector.shape_cast %90 : vector<8x4x16xf32> to vector<8x4x1x16xf32>
    %92 = vector.shape_cast %91 : vector<8x4x1x16xf32> to vector<8x4x1x16xf32>
    %93 = vector.broadcast %92 : vector<8x4x1x16xf32> to vector<8x4x2x16xf32>
    %94 = vector.shape_cast %93 : vector<8x4x2x16xf32> to vector<8x8x16xf32>
    %cst_26 = arith.constant 0.000000e+00 : f32
    %95 = vector.broadcast %cst_26 : f32 to vector<1x8x16xf32>
    %96 = tpu.concatenate %95, %94, %95 in 0 : vector<1x8x16xf32>, vector<8x8x16xf32>, vector<1x8x16xf32> -> vector<10x8x16xf32>
    %cst_27 = arith.constant 0.000000e+00 : f32
    %97 = vector.broadcast %cst_27 : f32 to vector<10x1x16xf32>
    %98 = tpu.concatenate %97, %96, %97 in 1 : vector<10x1x16xf32>, vector<10x8x16xf32>, vector<10x1x16xf32> -> vector<10x10x16xf32>
    %99 = vector.extract_strided_slice %98 {offsets = [0, 0, 0], sizes = [8, 8, 16], strides = [1, 1, 1]} : vector<10x10x16xf32> to vector<8x8x16xf32>
    %100 = vector.extract_strided_slice %98 {offsets = [0, 1, 0], sizes = [8, 8, 16], strides = [1, 1, 1]} : vector<10x10x16xf32> to vector<8x8x16xf32>
    %101 = vector.extract_strided_slice %98 {offsets = [0, 2, 0], sizes = [8, 8, 16], strides = [1, 1, 1]} : vector<10x10x16xf32> to vector<8x8x16xf32>
    %102 = vector.extract_strided_slice %98 {offsets = [1, 0, 0], sizes = [8, 8, 16], strides = [1, 1, 1]} : vector<10x10x16xf32> to vector<8x8x16xf32>
    %103 = vector.extract_strided_slice %98 {offsets = [1, 1, 0], sizes = [8, 8, 16], strides = [1, 1, 1]} : vector<10x10x16xf32> to vector<8x8x16xf32>
    %104 = vector.extract_strided_slice %98 {offsets = [1, 2, 0], sizes = [8, 8, 16], strides = [1, 1, 1]} : vector<10x10x16xf32> to vector<8x8x16xf32>
    %105 = vector.extract_strided_slice %98 {offsets = [2, 0, 0], sizes = [8, 8, 16], strides = [1, 1, 1]} : vector<10x10x16xf32> to vector<8x8x16xf32>
    %106 = vector.extract_strided_slice %98 {offsets = [2, 1, 0], sizes = [8, 8, 16], strides = [1, 1, 1]} : vector<10x10x16xf32> to vector<8x8x16xf32>
    %107 = vector.extract_strided_slice %98 {offsets = [2, 2, 0], sizes = [8, 8, 16], strides = [1, 1, 1]} : vector<10x10x16xf32> to vector<8x8x16xf32>
    %108 = tpu.concatenate %99, %100, %101, %102, %103, %104, %105, %106, %107 in 2 : vector<8x8x16xf32>, vector<8x8x16xf32>, vector<8x8x16xf32>, vector<8x8x16xf32>, vector<8x8x16xf32>, vector<8x8x16xf32>, vector<8x8x16xf32>, vector<8x8x16xf32>, vector<8x8x16xf32> -> vector<8x8x144xf32>
    %109 = vector.shape_cast %108 : vector<8x8x144xf32> to vector<64x144xf32>
    %110 = arith.truncf %109 : vector<64x144xf32> to vector<64x144xbf16>
    %c0_28 = arith.constant 0 : index
    %c0_29 = arith.constant 0 : index
    %111 = vector.load %arg8[%c0_28, %c0_29] : memref<144x16xbf16, #tpu.memory_space<vmem>>, vector<144x16xbf16>
    %cst_30 = arith.constant dense<0.000000e+00> : vector<64x16xf32>
    %112 = tpu.matmul %110, %111, %cst_30 {dimension_numbers = #tpu.dot_dimension_numbers<[1], [0], [0], [1], [0, 0, 1, 1], [], []>} : vector<64x144xbf16>, vector<144x16xbf16>, vector<64x16xf32> -> vector<64x16xf32>
    %cst_31 = arith.constant 0.000000e+00 : f32
    %113 = vector.broadcast %cst_31 : f32 to vector<1x8x16xf32>
    %114 = tpu.concatenate %113, %32, %113 in 0 : vector<1x8x16xf32>, vector<8x8x16xf32>, vector<1x8x16xf32> -> vector<10x8x16xf32>
    %cst_32 = arith.constant 0.000000e+00 : f32
    %115 = vector.broadcast %cst_32 : f32 to vector<10x1x16xf32>
    %116 = tpu.concatenate %115, %114, %115 in 1 : vector<10x1x16xf32>, vector<10x8x16xf32>, vector<10x1x16xf32> -> vector<10x10x16xf32>
    %117 = vector.extract_strided_slice %116 {offsets = [0, 0, 0], sizes = [8, 8, 16], strides = [1, 1, 1]} : vector<10x10x16xf32> to vector<8x8x16xf32>
    %118 = vector.extract_strided_slice %116 {offsets = [0, 1, 0], sizes = [8, 8, 16], strides = [1, 1, 1]} : vector<10x10x16xf32> to vector<8x8x16xf32>
    %119 = vector.extract_strided_slice %116 {offsets = [0, 2, 0], sizes = [8, 8, 16], strides = [1, 1, 1]} : vector<10x10x16xf32> to vector<8x8x16xf32>
    %120 = vector.extract_strided_slice %116 {offsets = [1, 0, 0], sizes = [8, 8, 16], strides = [1, 1, 1]} : vector<10x10x16xf32> to vector<8x8x16xf32>
    %121 = vector.extract_strided_slice %116 {offsets = [1, 1, 0], sizes = [8, 8, 16], strides = [1, 1, 1]} : vector<10x10x16xf32> to vector<8x8x16xf32>
    %122 = vector.extract_strided_slice %116 {offsets = [1, 2, 0], sizes = [8, 8, 16], strides = [1, 1, 1]} : vector<10x10x16xf32> to vector<8x8x16xf32>
    %123 = vector.extract_strided_slice %116 {offsets = [2, 0, 0], sizes = [8, 8, 16], strides = [1, 1, 1]} : vector<10x10x16xf32> to vector<8x8x16xf32>
    %124 = vector.extract_strided_slice %116 {offsets = [2, 1, 0], sizes = [8, 8, 16], strides = [1, 1, 1]} : vector<10x10x16xf32> to vector<8x8x16xf32>
    %125 = vector.extract_strided_slice %116 {offsets = [2, 2, 0], sizes = [8, 8, 16], strides = [1, 1, 1]} : vector<10x10x16xf32> to vector<8x8x16xf32>
    %126 = tpu.concatenate %117, %118, %119, %120, %121, %122, %123, %124, %125 in 2 : vector<8x8x16xf32>, vector<8x8x16xf32>, vector<8x8x16xf32>, vector<8x8x16xf32>, vector<8x8x16xf32>, vector<8x8x16xf32>, vector<8x8x16xf32>, vector<8x8x16xf32>, vector<8x8x16xf32> -> vector<8x8x144xf32>
    %127 = vector.shape_cast %126 : vector<8x8x144xf32> to vector<64x144xf32>
    %128 = arith.truncf %127 : vector<64x144xf32> to vector<64x144xbf16>
    %c0_33 = arith.constant 0 : index
    %c0_34 = arith.constant 0 : index
    %129 = vector.load %arg9[%c0_33, %c0_34] : memref<144x16xbf16, #tpu.memory_space<vmem>>, vector<144x16xbf16>
    %cst_35 = arith.constant dense<0.000000e+00> : vector<64x16xf32>
    %130 = tpu.matmul %128, %129, %cst_35 {dimension_numbers = #tpu.dot_dimension_numbers<[1], [0], [0], [1], [0, 0, 1, 1], [], []>} : vector<64x144xbf16>, vector<144x16xbf16>, vector<64x16xf32> -> vector<64x16xf32>
    %131 = arith.addf %112, %130 : vector<64x16xf32>
    %c0_36 = arith.constant 0 : index
    %c0_37 = arith.constant 0 : index
    %132 = vector.load %arg10[%c0_36, %c0_37] : memref<1x16xf32, #tpu.memory_space<vmem>>, vector<1x16xf32>
    %133 = vector.broadcast %132 : vector<1x16xf32> to vector<64x16xf32>
    %134 = arith.addf %131, %133 : vector<64x16xf32>
    %cst_38 = arith.constant 0.000000e+00 : f32
    %135 = vector.broadcast %cst_38 : f32 to vector<64x16xf32>
    %136 = arith.maximumf %134, %135 : vector<64x16xf32>
    %137 = vector.shape_cast %136 : vector<64x16xf32> to vector<8x8x16xf32>
    %138 = vector.shape_cast %137 : vector<8x8x16xf32> to vector<8x1x8x16xf32>
    %139 = vector.shape_cast %138 : vector<8x1x8x16xf32> to vector<8x1x8x16xf32>
    %140 = vector.broadcast %139 : vector<8x1x8x16xf32> to vector<8x2x8x16xf32>
    %141 = vector.shape_cast %140 : vector<8x2x8x16xf32> to vector<16x8x16xf32>
    %142 = vector.shape_cast %141 : vector<16x8x16xf32> to vector<16x8x1x16xf32>
    %143 = vector.shape_cast %142 : vector<16x8x1x16xf32> to vector<16x8x1x16xf32>
    %144 = vector.broadcast %143 : vector<16x8x1x16xf32> to vector<16x8x2x16xf32>
    %145 = vector.shape_cast %144 : vector<16x8x2x16xf32> to vector<16x16x16xf32>
    %cst_39 = arith.constant 0.000000e+00 : f32
    %146 = vector.broadcast %cst_39 : f32 to vector<1x16x16xf32>
    %147 = tpu.concatenate %146, %145, %146 in 0 : vector<1x16x16xf32>, vector<16x16x16xf32>, vector<1x16x16xf32> -> vector<18x16x16xf32>
    %cst_40 = arith.constant 0.000000e+00 : f32
    %148 = vector.broadcast %cst_40 : f32 to vector<18x1x16xf32>
    %149 = tpu.concatenate %148, %147, %148 in 1 : vector<18x1x16xf32>, vector<18x16x16xf32>, vector<18x1x16xf32> -> vector<18x18x16xf32>
    %150 = vector.extract_strided_slice %149 {offsets = [0, 0, 0], sizes = [16, 16, 16], strides = [1, 1, 1]} : vector<18x18x16xf32> to vector<16x16x16xf32>
    %151 = vector.extract_strided_slice %149 {offsets = [0, 1, 0], sizes = [16, 16, 16], strides = [1, 1, 1]} : vector<18x18x16xf32> to vector<16x16x16xf32>
    %152 = vector.extract_strided_slice %149 {offsets = [0, 2, 0], sizes = [16, 16, 16], strides = [1, 1, 1]} : vector<18x18x16xf32> to vector<16x16x16xf32>
    %153 = vector.extract_strided_slice %149 {offsets = [1, 0, 0], sizes = [16, 16, 16], strides = [1, 1, 1]} : vector<18x18x16xf32> to vector<16x16x16xf32>
    %154 = vector.extract_strided_slice %149 {offsets = [1, 1, 0], sizes = [16, 16, 16], strides = [1, 1, 1]} : vector<18x18x16xf32> to vector<16x16x16xf32>
    %155 = vector.extract_strided_slice %149 {offsets = [1, 2, 0], sizes = [16, 16, 16], strides = [1, 1, 1]} : vector<18x18x16xf32> to vector<16x16x16xf32>
    %156 = vector.extract_strided_slice %149 {offsets = [2, 0, 0], sizes = [16, 16, 16], strides = [1, 1, 1]} : vector<18x18x16xf32> to vector<16x16x16xf32>
    %157 = vector.extract_strided_slice %149 {offsets = [2, 1, 0], sizes = [16, 16, 16], strides = [1, 1, 1]} : vector<18x18x16xf32> to vector<16x16x16xf32>
    %158 = vector.extract_strided_slice %149 {offsets = [2, 2, 0], sizes = [16, 16, 16], strides = [1, 1, 1]} : vector<18x18x16xf32> to vector<16x16x16xf32>
    %159 = tpu.concatenate %150, %151, %152, %153, %154, %155, %156, %157, %158 in 2 : vector<16x16x16xf32>, vector<16x16x16xf32>, vector<16x16x16xf32>, vector<16x16x16xf32>, vector<16x16x16xf32>, vector<16x16x16xf32>, vector<16x16x16xf32>, vector<16x16x16xf32>, vector<16x16x16xf32> -> vector<16x16x144xf32>
    %160 = vector.shape_cast %159 : vector<16x16x144xf32> to vector<256x144xf32>
    %161 = arith.truncf %160 : vector<256x144xf32> to vector<256x144xbf16>
    %c0_41 = arith.constant 0 : index
    %c0_42 = arith.constant 0 : index
    %162 = vector.load %arg11[%c0_41, %c0_42] : memref<144x1xbf16, #tpu.memory_space<vmem>>, vector<144x1xbf16>
    %cst_43 = arith.constant dense<0.000000e+00> : vector<256x1xf32>
    %163 = tpu.matmul %161, %162, %cst_43 {dimension_numbers = #tpu.dot_dimension_numbers<[1], [0], [0], [1], [0, 0, 1, 1], [], []>} : vector<256x144xbf16>, vector<144x1xbf16>, vector<256x1xf32> -> vector<256x1xf32>
    %c0_44 = arith.constant 0 : index
    %c0_45 = arith.constant 0 : index
    %164 = vector.load %arg12[%c0_44, %c0_45] : memref<1x1xf32, #tpu.memory_space<vmem>>, vector<1x1xf32>
    %165 = vector.broadcast %164 : vector<1x1xf32> to vector<256x1xf32>
    %166 = arith.addf %163, %165 : vector<256x1xf32>
    %167 = arith.negf %166 : vector<256x1xf32>
    %168 = math.exp %167 : vector<256x1xf32>
    %cst_46 = arith.constant 1.000000e+00 : f32
    %169 = vector.broadcast %cst_46 : f32 to vector<256x1xf32>
    %170 = arith.addf %169, %168 : vector<256x1xf32>
    %171 = arith.divf %169, %170 : vector<256x1xf32>
    %172 = vector.shape_cast %171 : vector<256x1xf32> to vector<16x16x1xf32>
    %173 = vector.shape_cast %172 : vector<16x16x1xf32> to vector<16x16xf32>
    %174 = vector.shape_cast %173 : vector<16x16xf32> to vector<1x1x16x16xf32>
    %c0_47 = arith.constant 0 : index
    %c0_48 = arith.constant 0 : index
    %c0_49 = arith.constant 0 : index
    %c0_50 = arith.constant 0 : index
    %175 = vector.load %arg13[%c0_47, %c0_48, %c0_49, %c0_50] : memref<1x1x16x16xf32, #tpu.memory_space<vmem>>, vector<1x1x16x16xf32>
    tpu.vector_store %arg13[%c0_47, %c0_48, %c0_49, %c0_50], %174 {strides = array<i32>} : memref<1x1x16x16xf32, #tpu.memory_space<vmem>>, vector<1x1x16x16xf32>,
    return
  }
  func.func @transform_0(%arg0: i32) -> (i32, i32, i32, i32) {
    %c0_i32 = arith.constant 0 : i32
    %c0_i32_0 = arith.constant 0 : i32
    %c0_i32_1 = arith.constant 0 : i32
    %c0_i32_2 = arith.constant 0 : i32
    return %arg0, %c0_i32, %c0_i32_0, %c0_i32_1 : i32, i32, i32, i32
  }
  func.func @transform_1(%arg0: i32) -> (i32, i32) {
    %c0_i32 = arith.constant 0 : i32
    %c0_i32_0 = arith.constant 0 : i32
    %c0_i32_1 = arith.constant 0 : i32
    return %c0_i32, %c0_i32_0 : i32, i32
  }
  func.func @transform_2(%arg0: i32) -> (i32, i32) {
    %c0_i32 = arith.constant 0 : i32
    %c0_i32_0 = arith.constant 0 : i32
    %c0_i32_1 = arith.constant 0 : i32
    return %c0_i32, %c0_i32_0 : i32, i32
  }
  func.func @transform_3(%arg0: i32) -> (i32, i32) {
    %c0_i32 = arith.constant 0 : i32
    %c0_i32_0 = arith.constant 0 : i32
    %c0_i32_1 = arith.constant 0 : i32
    return %c0_i32, %c0_i32_0 : i32, i32
  }
  func.func @transform_4(%arg0: i32) -> (i32, i32) {
    %c0_i32 = arith.constant 0 : i32
    %c0_i32_0 = arith.constant 0 : i32
    %c0_i32_1 = arith.constant 0 : i32
    return %c0_i32, %c0_i32_0 : i32, i32
  }
  func.func @transform_5(%arg0: i32) -> (i32, i32) {
    %c0_i32 = arith.constant 0 : i32
    %c0_i32_0 = arith.constant 0 : i32
    %c0_i32_1 = arith.constant 0 : i32
    return %c0_i32, %c0_i32_0 : i32, i32
  }
  func.func @transform_6(%arg0: i32) -> (i32, i32) {
    %c0_i32 = arith.constant 0 : i32
    %c0_i32_0 = arith.constant 0 : i32
    %c0_i32_1 = arith.constant 0 : i32
    return %c0_i32, %c0_i32_0 : i32, i32
  }
  func.func @transform_7(%arg0: i32) -> (i32, i32) {
    %c0_i32 = arith.constant 0 : i32
    %c0_i32_0 = arith.constant 0 : i32
    %c0_i32_1 = arith.constant 0 : i32
    return %c0_i32, %c0_i32_0 : i32, i32
  }
  func.func @transform_8(%arg0: i32) -> (i32, i32) {
    %c0_i32 = arith.constant 0 : i32
    %c0_i32_0 = arith.constant 0 : i32
    %c0_i32_1 = arith.constant 0 : i32
    return %c0_i32, %c0_i32_0 : i32, i32
  }
  func.func @transform_9(%arg0: i32) -> (i32, i32) {
    %c0_i32 = arith.constant 0 : i32
    %c0_i32_0 = arith.constant 0 : i32
    %c0_i32_1 = arith.constant 0 : i32
    return %c0_i32, %c0_i32_0 : i32, i32
  }
  func.func @transform_10(%arg0: i32) -> (i32, i32) {
    %c0_i32 = arith.constant 0 : i32
    %c0_i32_0 = arith.constant 0 : i32
    %c0_i32_1 = arith.constant 0 : i32
    return %c0_i32, %c0_i32_0 : i32, i32
  }
  func.func @transform_11(%arg0: i32) -> (i32, i32) {
    %c0_i32 = arith.constant 0 : i32
    %c0_i32_0 = arith.constant 0 : i32
    %c0_i32_1 = arith.constant 0 : i32
    return %c0_i32, %c0_i32_0 : i32, i32
  }
  func.func @transform_12(%arg0: i32) -> (i32, i32, i32, i32) {
    %c0_i32 = arith.constant 0 : i32
    %c0_i32_0 = arith.constant 0 : i32
    %c0_i32_1 = arith.constant 0 : i32
    %c0_i32_2 = arith.constant 0 : i32
    return %arg0, %c0_i32, %c0_i32_0, %c0_i32_1 : i32, i32, i32, i32
  }
}

</mosaic_0001>

<llo_original>
// kernel: depth_model_forward.1
$region0: #{depth_model_forward.1}
  #allocation0 [shape = 'u32[]', space=smem, size = 0x4, offset = 0x4, fixed_abs, tag = 'smem constant byte address 0x4 - core index']
  #allocation1 [shape = 'u32[144,128]{1,0:T(1,128)}', space=vmem, size = 0x12000, scoped, tag = 'internal scratch']
  #allocation2 [shape = 'f32[1,1]{1,0:T(1,128)S(1)}', space=vmem, size = 0x200, scoped, tag = 'scoped memory for depth_model_forward.1']
  %s0 = inlined_call_operand.vmem [shape: bf16[2,16,16,3], index: 0, kind: input, shape index: {}]
  %s1 = inlined_call_operand.vmem [shape: bf16[27,16], index: 1, kind: input, shape index: {}]
  %s2 = inlined_call_operand.vmem [shape: f32[1,16], index: 2, kind: input, shape index: {}]
  %s3 = inlined_call_operand.vmem [shape: bf16[144,32], index: 3, kind: input, shape index: {}]
  %s4 = inlined_call_operand.vmem [shape: f32[1,32], index: 4, kind: input, shape index: {}]
  %s5 = inlined_call_operand.vmem [shape: bf16[288,16], index: 5, kind: input, shape index: {}]
  %s6 = inlined_call_operand.vmem [shape: f32[1,16], index: 6, kind: input, shape index: {}]
  %s7 = inlined_call_operand.vmem [shape: bf16[144,16], index: 7, kind: input, shape index: {}]
  %s8 = inlined_call_operand.vmem [shape: bf16[144,16], index: 8, kind: input, shape index: {}]
  %s9 = inlined_call_operand.vmem [shape: f32[1,16], index: 9, kind: input, shape index: {}]
  %s10 = inlined_call_operand.vmem [shape: bf16[144,1], index: 10, kind: input, shape index: {}]
  %s11 = inlined_call_operand.<no memory space> [shape: f32[1,1], index: 11, kind: input, shape index: {}]
  %s12 = inlined_call_operand.hbm [shape: f32[2,1,16,16], index: 12, kind: output, shape index: {}]
  %s13 = sld [smem:[#allocation0]]
  $region81: #{depth_model_forward.1} parent=0
    _
  %s15 = ssub.s32 1, %s13
  %s16 = scalar_select 0, %s15, %s13
  %v17 = vstv %s11
  %18 = vst [vmem:[#allocation2] sm:$0x1] %v17
  $region1: #{depth_model_forward.1} parent=0
    #allocation3 [shape = 'u8[16384]{0}', space=vmem, size = 0x4000, scoped, tag = 'output window, operand 0']
    #allocation4 [shape = 's32[2]{0}', space=sflag, size = 0x8, scoped, tag = 'scoped memory for depth_model_forward.1']
    %19 = vsyncpa [#allocation4], 0
    %s20 = scalar_lea.sflag [#allocation4], 1
    %21 = vsyncpa %s20, 0
    loop: start=0, step=1, limit=4
    $region2: #{depth_model_forward.1} parent=1 // loop_pre_header
      _
    $region3: #{depth_model_forward.1} parent=1 // loop_header
      %s23 = sphi 0, %s27
      %p24 = scmp.ge.s32.totalorder %s23, 4
      %s33 = sphi 0, %s35
      %s36 = sphi 0, %s33
      %s37 = sphi 0, %s36
      %s53 = sphi 0, %s37
      %s57 = sphi 0, %s57
      %s59 = sphi 0, %s57
      %s60 = sphi 0, %s59
      %s74 = sphi 0, %s60
      %s78 = sphi 0, %s78
      %s80 = sphi 0, %s78
      %s81 = sphi 0, %s80
      %s95 = sphi 0, %s81
      %s99 = sphi 0, %s99
      %s101 = sphi 0, %s99
      %s102 = sphi 0, %s101
      %s116 = sphi 0, %s102
      %s120 = sphi 0, %s120
      %s122 = sphi 0, %s120
      %s123 = sphi 0, %s122
      %s137 = sphi 0, %s123
      %s141 = sphi 0, %s141
      %s143 = sphi 0, %s141
      %s144 = sphi 0, %s143
      %s158 = sphi 0, %s144
      %s162 = sphi 0, %s162
      %s164 = sphi 0, %s162
      %s165 = sphi 0, %s164
      %s179 = sphi 0, %s165
      %s183 = sphi 0, %s183
      %s185 = sphi 0, %s183
      %s186 = sphi 0, %s185
      %s200 = sphi 0, %s186
      %s204 = sphi 0, %s204
      %s206 = sphi 0, %s204
      %s207 = sphi 0, %s206
      %s221 = sphi 0, %s207
      %s225 = sphi 0, %s225
      %s227 = sphi 0, %s225
      %s228 = sphi 0, %s227
      %s242 = sphi 0, %s228
      %s246 = sphi 0, %s246
      %s248 = sphi 0, %s246
      %s249 = sphi 0, %s248
      %s263 = sphi 0, %s249
      %s267 = sphi 0, %s267
      %s269 = sphi 0, %s267
      %s270 = sphi 0, %s269
      %s284 = sphi 0, %s270
      %s290 = sphi 0, %s292
      %s293 = sphi 0, %s290
      %s294 = sphi 0, %s293
      %s310 = sphi 0, %s294
    $region4: #{depth_model_forward.1} parent=1 // loop_header_branch
      %26 = sbr.rel (%p24) target = $region8
    $region5: #{depth_model_forward.1} parent=1 // loop_body
      %s28 = ssub.s32 %s23, 1
      %s29 = ssub.s32 %s23, 2
      %s30 = sadd.s32 %s23, 1
      %s31 = ssub.s32 %s23, %s30
      %p32 = scmp.eq.s32.totalorder %s31, 0
      %s34 = sadd.s32 %s33, 1
      %s35 = scalar_select %p32, %s33, %s34
      %p38 = pneg %p32
      %p39 = scmp.eq.s32.totalorder %s23, 1
      %p40 = por %p38, %p39
      %p41 = scmp.ne.s32.totalorder %s33, %s36
      %p42 = scmp.eq.s32.totalorder %s23, 0
      %p43 = por %p41, %p42
      %p44 = scmp.ne.s32.totalorder %s33, %s36
      %p45 = scmp.eq.s32.totalorder %s28, 1
      %p46 = por %p44, %p45
      %p47 = scmp.ne.s32.totalorder %s36, %s37
      %p48 = scmp.eq.s32.totalorder %s28, 0
      %p49 = por %p47, %p48
      %p50 = scmp.ne.s32.totalorder %s36, %s37
      %p51 = scmp.eq.s32.totalorder %s29, 1
      %p52 = por %p50, %p51
      %p54 = scmp.ne.s32.totalorder %s37, %s53
      %p55 = scmp.eq.s32.totalorder %s29, 0
      %p56 = por %p54, %p55
      %s58 = sadd.s32 %s57, 1
      %p61 = scmp.eq.s32.totalorder %s23, 1
      %p62 = scmp.ne.s32.totalorder %s57, %s59
      %p63 = scmp.eq.s32.totalorder %s23, 0
      %p64 = por %p62, %p63
      %p65 = scmp.ne.s32.totalorder %s57, %s59
      %p66 = scmp.eq.s32.totalorder %s28, 1
      %p67 = por %p65, %p66
      %p68 = scmp.ne.s32.totalorder %s59, %s60
      %p69 = scmp.eq.s32.totalorder %s28, 0
      %p70 = por %p68, %p69
      %p71 = scmp.ne.s32.totalorder %s59, %s60
      %p72 = scmp.eq.s32.totalorder %s29, 1
      %p73 = por %p71, %p72
      %p75 = scmp.ne.s32.totalorder %s60, %s74
      %p76 = scmp.eq.s32.totalorder %s29, 0
      %p77 = por %p75, %p76
      %s79 = sadd.s32 %s78, 1
      %p82 = scmp.eq.s32.totalorder %s23, 1
      %p83 = scmp.ne.s32.totalorder %s78, %s80
      %p84 = scmp.eq.s32.totalorder %s23, 0
      %p85 = por %p83, %p84
      %p86 = scmp.ne.s32.totalorder %s78, %s80
      %p87 = scmp.eq.s32.totalorder %s28, 1
      %p88 = por %p86, %p87
      %p89 = scmp.ne.s32.totalorder %s80, %s81
      %p90 = scmp.eq.s32.totalorder %s28, 0
      %p91 = por %p89, %p90
      %p92 = scmp.ne.s32.totalorder %s80, %s81
      %p93 = scmp.eq.s32.totalorder %s29, 1
      %p94 = por %p92, %p93
      %p96 = scmp.ne.s32.totalorder %s81, %s95
      %p97 = scmp.eq.s32.totalorder %s29, 0
      %p98 = por %p96, %p97
      %s100 = sadd.s32 %s99, 1
      %p103 = scmp.eq.s32.totalorder %s23, 1
      %p104 = scmp.ne.s32.totalorder %s99, %s101
      %p105 = scmp.eq.s32.totalorder %s23, 0
      %p106 = por %p104, %p105
      %p107 = scmp.ne.s32.totalorder %s99, %s101
      %p108 = scmp.eq.s32.totalorder %s28, 1
      %p109 = por %p107, %p108
      %p110 = scmp.ne.s32.totalorder %s101, %s102
      %p111 = scmp.eq.s32.totalorder %s28, 0
      %p112 = por %p110, %p111
      %p113 = scmp.ne.s32.totalorder %s101, %s102
      %p114 = scmp.eq.s32.totalorder %s29, 1
      %p115 = por %p113, %p114
      %p117 = scmp.ne.s32.totalorder %s102, %s116
      %p118 = scmp.eq.s32.totalorder %s29, 0
      %p119 = por %p117, %p118
      %s121 = sadd.s32 %s120, 1
      %p124 = scmp.eq.s32.totalorder %s23, 1
      %p125 = scmp.ne.s32.totalorder %s120, %s122
      %p126 = scmp.eq.s32.totalorder %s23, 0
      %p127 = por %p125, %p126
      %p128 = scmp.ne.s32.totalorder %s120, %s122
      %p129 = scmp.eq.s32.totalorder %s28, 1
      %p130 = por %p128, %p129
      %p131 = scmp.ne.s32.totalorder %s122, %s123
      %p132 = scmp.eq.s32.totalorder %s28, 0
      %p133 = por %p131, %p132
      %p134 = scmp.ne.s32.totalorder %s122, %s123
      %p135 = scmp.eq.s32.totalorder %s29, 1
      %p136 = por %p134, %p135
      %p138 = scmp.ne.s32.totalorder %s123, %s137
      %p139 = scmp.eq.s32.totalorder %s29, 0
      %p140 = por %p138, %p139
      %s142 = sadd.s32 %s141, 1
      %p145 = scmp.eq.s32.totalorder %s23, 1
      %p146 = scmp.ne.s32.totalorder %s141, %s143
      %p147 = scmp.eq.s32.totalorder %s23, 0
      %p148 = por %p146, %p147
      %p149 = scmp.ne.s32.totalorder %s141, %s143
      %p150 = scmp.eq.s32.totalorder %s28, 1
      %p151 = por %p149, %p150
      %p152 = scmp.ne.s32.totalorder %s143, %s144
      %p153 = scmp.eq.s32.totalorder %s28, 0
      %p154 = por %p152, %p153
      %p155 = scmp.ne.s32.totalorder %s143, %s144
      %p156 = scmp.eq.s32.totalorder %s29, 1
      %p157 = por %p155, %p156
      %p159 = scmp.ne.s32.totalorder %s144, %s158
      %p160 = scmp.eq.s32.totalorder %s29, 0
      %p161 = por %p159, %p160
      %s163 = sadd.s32 %s162, 1
      %p166 = scmp.eq.s32.totalorder %s23, 1
      %p167 = scmp.ne.s32.totalorder %s162, %s164
      %p168 = scmp.eq.s32.totalorder %s23, 0
      %p169 = por %p167, %p168
      %p170 = scmp.ne.s32.totalorder %s162, %s164
      %p171 = scmp.eq.s32.totalorder %s28, 1
      %p172 = por %p170, %p171
      %p173 = scmp.ne.s32.totalorder %s164, %s165
      %p174 = scmp.eq.s32.totalorder %s28, 0
      %p175 = por %p173, %p174
      %p176 = scmp.ne.s32.totalorder %s164, %s165
      %p177 = scmp.eq.s32.totalorder %s29, 1
      %p178 = por %p176, %p177
      %p180 = scmp.ne.s32.totalorder %s165, %s179
      %p181 = scmp.eq.s32.totalorder %s29, 0
      %p182 = por %p180, %p181
      %s184 = sadd.s32 %s183, 1
      %p187 = scmp.eq.s32.totalorder %s23, 1
      %p188 = scmp.ne.s32.totalorder %s183, %s185
      %p189 = scmp.eq.s32.totalorder %s23, 0
      %p190 = por %p188, %p189
      %p191 = scmp.ne.s32.totalorder %s183, %s185
      %p192 = scmp.eq.s32.totalorder %s28, 1
      %p193 = por %p191, %p192
      %p194 = scmp.ne.s32.totalorder %s185, %s186
      %p195 = scmp.eq.s32.totalorder %s28, 0
      %p196 = por %p194, %p195
      %p197 = scmp.ne.s32.totalorder %s185, %s186
      %p198 = scmp.eq.s32.totalorder %s29, 1
      %p199 = por %p197, %p198
      %p201 = scmp.ne.s32.totalorder %s186, %s200
      %p202 = scmp.eq.s32.totalorder %s29, 0
      %p203 = por %p201, %p202
      %s205 = sadd.s32 %s204, 1
      %p208 = scmp.eq.s32.totalorder %s23, 1
      %p209 = scmp.ne.s32.totalorder %s204, %s206
      %p210 = scmp.eq.s32.totalorder %s23, 0
      %p211 = por %p209, %p210
      %p212 = scmp.ne.s32.totalorder %s204, %s206
      %p213 = scmp.eq.s32.totalorder %s28, 1
      %p214 = por %p212, %p213
      %p215 = scmp.ne.s32.totalorder %s206, %s207
      %p216 = scmp.eq.s32.totalorder %s28, 0
      %p217 = por %p215, %p216
      %p218 = scmp.ne.s32.totalorder %s206, %s207
      %p219 = scmp.eq.s32.totalorder %s29, 1
      %p220 = por %p218, %p219
      %p222 = scmp.ne.s32.totalorder %s207, %s221
      %p223 = scmp.eq.s32.totalorder %s29, 0
      %p224 = por %p222, %p223
      %s226 = sadd.s32 %s225, 1
      %p229 = scmp.eq.s32.totalorder %s23, 1
      %p230 = scmp.ne.s32.totalorder %s225, %s227
      %p231 = scmp.eq.s32.totalorder %s23, 0
      %p232 = por %p230, %p231
      %p233 = scmp.ne.s32.totalorder %s225, %s227
      %p234 = scmp.eq.s32.totalorder %s28, 1
      %p235 = por %p233, %p234
      %p236 = scmp.ne.s32.totalorder %s227, %s228
      %p237 = scmp.eq.s32.totalorder %s28, 0
      %p238 = por %p236, %p237
      %p239 = scmp.ne.s32.totalorder %s227, %s228
      %p240 = scmp.eq.s32.totalorder %s29, 1
      %p241 = por %p239, %p240
      %p243 = scmp.ne.s32.totalorder %s228, %s242
      %p244 = scmp.eq.s32.totalorder %s29, 0
      %p245 = por %p243, %p244
      %s247 = sadd.s32 %s246, 1
      %p250 = scmp.eq.s32.totalorder %s23, 1
      %p251 = scmp.ne.s32.totalorder %s246, %s248
      %p252 = scmp.eq.s32.totalorder %s23, 0
      %p253 = por %p251, %p252
      %p254 = scmp.ne.s32.totalorder %s246, %s248
      %p255 = scmp.eq.s32.totalorder %s28, 1
      %p256 = por %p254, %p255
      %p257 = scmp.ne.s32.totalorder %s248, %s249
      %p258 = scmp.eq.s32.totalorder %s28, 0
      %p259 = por %p257, %p258
      %p260 = scmp.ne.s32.totalorder %s248, %s249
      %p261 = scmp.eq.s32.totalorder %s29, 1
      %p262 = por %p260, %p261
      %p264 = scmp.ne.s32.totalorder %s249, %s263
      %p265 = scmp.eq.s32.totalorder %s29, 0
      %p266 = por %p264, %p265
      %s268 = sadd.s32 %s267, 1
      %p271 = scmp.eq.s32.totalorder %s23, 1
      %p272 = scmp.ne.s32.totalorder %s267, %s269
      %p273 = scmp.eq.s32.totalorder %s23, 0
      %p274 = por %p272, %p273
      %p275 = scmp.ne.s32.totalorder %s267, %s269
      %p276 = scmp.eq.s32.totalorder %s28, 1
      %p277 = por %p275, %p276
      %p278 = scmp.ne.s32.totalorder %s269, %s270
      %p279 = scmp.eq.s32.totalorder %s28, 0
      %p280 = por %p278, %p279
      %p281 = scmp.ne.s32.totalorder %s269, %s270
      %p282 = scmp.eq.s32.totalorder %s29, 1
      %p283 = por %p281, %p282
      %p285 = scmp.ne.s32.totalorder %s270, %s284
      %p286 = scmp.eq.s32.totalorder %s29, 0
      %p287 = por %p285, %p286
      %s288 = ssub.s32 %s23, %s30
      %p289 = scmp.eq.s32.totalorder %s288, 0
      %s291 = sadd.s32 %s290, 1
      %s292 = scalar_select %p289, %s290, %s291
      %p295 = pneg %p289
      %p296 = scmp.eq.s32.totalorder %s23, 1
      %p297 = por %p295, %p296
      %p298 = scmp.ne.s32.totalorder %s290, %s293
      %p299 = scmp.eq.s32.totalorder %s23, 0
      %p300 = por %p298, %p299
      %p301 = scmp.ne.s32.totalorder %s290, %s293
      %p302 = scmp.eq.s32.totalorder %s28, 1
      %p303 = por %p301, %p302
      %p304 = scmp.ne.s32.totalorder %s293, %s294
      %p305 = scmp.eq.s32.totalorder %s28, 0
      %p306 = por %p304, %p305
      %p307 = scmp.ne.s32.totalorder %s293, %s294
      %p308 = scmp.eq.s32.totalorder %s29, 1
      %p309 = por %p307, %p308
      %p311 = scmp.ne.s32.totalorder %s294, %s310
      %p312 = scmp.eq.s32.totalorder %s29, 0
      %p313 = por %p311, %p312
      %p314 = scmp.le.s32.totalorder 1, %s23
      %p315 = scmp.lt.s32.totalorder %s23, 3
      %p316 = pnand %p314, %p315
      %p317 = pneg %p316
      // Predicated region
      $region9: #{depth_model_forward.1} parent=5 // pred_check
        _
      $region10: #{depth_model_forward.1} parent=5 // pred_check_branch
        %319 = sbr.rel (%p316) target = $region12
      $region11: #{depth_model_forward.1} parent=5 // pred_region
        %s320 = ssub.s32 %s23, 1
        // Predicated region
        $region13: #{depth_model_forward.1} parent=11 // pred_check
          %p321 = pneg %p70
        $region14: #{depth_model_forward.1} parent=11 // pred_check_branch
          %323 = sbr.rel (%p321) target = $region16
        $region15: #{depth_model_forward.1} parent=11 // pred_region
          _
        $region16: #{depth_model_forward.1} parent=11 // pred_fallthru
          _
        // Predicated region
        $region17: #{depth_model_forward.1} parent=11 // pred_check
          %p324 = pneg %p91
        $region18: #{depth_model_forward.1} parent=11 // pred_check_branch
          %326 = sbr.rel (%p324) target = $region20
        $region19: #{depth_model_forward.1} parent=11 // pred_region
          _
        $region20: #{depth_model_forward.1} parent=11 // pred_fallthru
          _
        // Predicated region
        $region21: #{depth_model_forward.1} parent=11 // pred_check
          %p327 = pneg %p112
        $region22: #{depth_model_forward.1} parent=11 // pred_check_branch
          %329 = sbr.rel (%p327) target = $region24
        $region23: #{depth_model_forward.1} parent=11 // pred_region
          _
        $region24: #{depth_model_forward.1} parent=11 // pred_fallthru
          _
        // Predicated region
        $region25: #{depth_model_forward.1} parent=11 // pred_check
          %p330 = pneg %p133
        $region26: #{depth_model_forward.1} parent=11 // pred_check_branch
          %332 = sbr.rel (%p330) target = $region28
        $region27: #{depth_model_forward.1} parent=11 // pred_region
          _
        $region28: #{depth_model_forward.1} parent=11 // pred_fallthru
          _
        // Predicated region
        $region29: #{depth_model_forward.1} parent=11 // pred_check
          %p333 = pneg %p154
        $region30: #{depth_model_forward.1} parent=11 // pred_check_branch
          %335 = sbr.rel (%p333) target = $region32
        $region31: #{depth_model_forward.1} parent=11 // pred_region
          _
        $region32: #{depth_model_forward.1} parent=11 // pred_fallthru
          _
        // Predicated region
        $region33: #{depth_model_forward.1} parent=11 // pred_check
          %p336 = pneg %p175
        $region34: #{depth_model_forward.1} parent=11 // pred_check_branch
          %338 = sbr.rel (%p336) target = $region36
        $region35: #{depth_model_forward.1} parent=11 // pred_region
          _
        $region36: #{depth_model_forward.1} parent=11 // pred_fallthru
          _
        // Predicated region
        $region37: #{depth_model_forward.1} parent=11 // pred_check
          %p339 = pneg %p196
        $region38: #{depth_model_forward.1} parent=11 // pred_check_branch
          %341 = sbr.rel (%p339) target = $region40
        $region39: #{depth_model_forward.1} parent=11 // pred_region
          _
        $region40: #{depth_model_forward.1} parent=11 // pred_fallthru
          _
        // Predicated region
        $region41: #{depth_model_forward.1} parent=11 // pred_check
          %p342 = pneg %p217
        $region42: #{depth_model_forward.1} parent=11 // pred_check_branch
          %344 = sbr.rel (%p342) target = $region44
        $region43: #{depth_model_forward.1} parent=11 // pred_region
          _
        $region44: #{depth_model_forward.1} parent=11 // pred_fallthru
          _
        // Predicated region
        $region45: #{depth_model_forward.1} parent=11 // pred_check
          %p345 = pneg %p238
        $region46: #{depth_model_forward.1} parent=11 // pred_check_branch
          %347 = sbr.rel (%p345) target = $region48
        $region47: #{depth_model_forward.1} parent=11 // pred_region
          _
        $region48: #{depth_model_forward.1} parent=11 // pred_fallthru
          _
        // Predicated region
        $region49: #{depth_model_forward.1} parent=11 // pred_check
          %p348 = pneg %p259
        $region50: #{depth_model_forward.1} parent=11 // pred_check_branch
          %350 = sbr.rel (%p348) target = $region52
        $region51: #{depth_model_forward.1} parent=11 // pred_region
          _
        $region52: #{depth_model_forward.1} parent=11 // pred_fallthru
          _
        // Predicated region
        $region53: #{depth_model_forward.1} parent=11 // pred_check
          %p351 = pneg %p280
        $region54: #{depth_model_forward.1} parent=11 // pred_check_branch
          %353 = sbr.rel (%p351) target = $region56
        $region55: #{depth_model_forward.1} parent=11 // pred_region
          _
        $region56: #{depth_model_forward.1} parent=11 // pred_fallthru
          _
      $region12: #{depth_model_forward.1} parent=5 // pred_fallthru
        _
      %p354 = scmp.lt.s32.totalorder %s23, 2
      // Predicated region
      $region57: #{depth_model_forward.1} parent=5 // pred_check
        %p355 = pneg %p354
      $region58: #{depth_model_forward.1} parent=5 // pred_check_branch
        %357 = sbr.rel (%p355) target = $region60
      $region59: #{depth_model_forward.1} parent=5 // pred_region
        // Predicated region
        $region61: #{depth_model_forward.1} parent=59 // pred_check
          %p358 = pneg %p43
        $region62: #{depth_model_forward.1} parent=59 // pred_check_branch
          %360 = sbr.rel (%p358) target = $region64
        $region63: #{depth_model_forward.1} parent=59 // pred_region
          %p361 = scmp.lt.s32.totalorder %s23, 1
          %s362 = scalar_select %p361, %s23, 1
          %s363 = smul.addr %s362, 32
          %s364 = smul.addr %s363, 4
          %s365 = scalar_lea.vmem %s0, %s364
        $region64: #{depth_model_forward.1} parent=59 // pred_fallthru
          _
      $region60: #{depth_model_forward.1} parent=5 // pred_fallthru
        _
      %p366 = scmp.le.s32.totalorder 1, %s23
      %p367 = scmp.lt.s32.totalorder %s23, 3
      %p368 = pnand %p366, %p367
      %p369 = pneg %p368
      // Predicated region
      $region65: #{depth_model_forward.1} parent=5 // pred_check
        _
      $region66: #{depth_model_forward.1} parent=5 // pred_check_branch
        %371 = sbr.rel (%p368) target = $region68
      $region67: #{depth_model_forward.1} parent=5 // pred_region
        %s372 = ssub.s32 %s23, 1
        %p373 = scmp.lt.s32.totalorder %s28, 1
        %s374 = scalar_select %p373, %s28, 1
        %s375 = smul.addr %s374, 32
        %s376 = smul.addr %s375, 4
        %s377 = scalar_lea.vmem %s0, %s376
        %p378 = pneg %p49
        %p379 = pneg %p46
        %p380 = pneg %p70
        %p381 = pneg %p67
        %p382 = pneg %p91
        %p383 = pneg %p88
        %p384 = pneg %p112
        %p385 = pneg %p109
        %p386 = pneg %p133
        %p387 = pneg %p130
        %p388 = pneg %p154
        %p389 = pneg %p151
        %p390 = pneg %p175
        %p391 = pneg %p172
        %p392 = pneg %p196
        %p393 = pneg %p193
        %p394 = pneg %p217
        %p395 = pneg %p214
        %p396 = pneg %p238
        %p397 = pneg %p235
        %p398 = pneg %p259
        %p399 = pneg %p256
        %p400 = pneg %p280
        %p401 = pneg %p277
        %p402 = pneg %p306
        %p403 = pneg %p303
        %s404 = sand.u32 %s293, 1
        %s405 = scalar_lea.sflag [#allocation4], %s404
        %s406 = sand.u32 %s293, 1
        %s407 = smul.addr %s406, 16
        %s408 = scalar_lea.vmem [#allocation3], %s407
        %p409 = scmp.lt.s32.totalorder %s28, 1
        %s410 = scalar_select %p409, %s28, 1
        %s411 = smul.addr %s410, 32
        %s412 = smul.addr %s411, 4
        %s413 = scalar_lea.vmem %s0, %s412
        %v415 = vld [vmem:[%s413] sm:$0xf]
        %v416 = vld [vmem:[%s413 + $0x4] sm:$0xf]
        %v417 = vld [vmem:[%s413 + $0x8] sm:$0xf]
        %v418 = vld [vmem:[%s413 + $0xc] sm:$0xf]
        %v419 = vld [vmem:[%s413 + $0x10] sm:$0xf]
        %v420 = vld [vmem:[%s413 + $0x14] sm:$0xf]
        %v421 = vld [vmem:[%s413 + $0x18] sm:$0xf]
        %v422 = vld [vmem:[%s413 + $0x1c] sm:$0xf]
        %v423 = vld [vmem:[%s413 + $0x20] sm:$0xf]
        %v424 = vld [vmem:[%s413 + $0x24] sm:$0xf]
        %v425 = vld [vmem:[%s413 + $0x28] sm:$0xf]
        %v426 = vld [vmem:[%s413 + $0x2c] sm:$0xf]
        %v427 = vld [vmem:[%s413 + $0x30] sm:$0xf]
        %v428 = vld [vmem:[%s413 + $0x34] sm:$0xf]
        %v429 = vld [vmem:[%s413 + $0x38] sm:$0xf]
        %v430 = vld [vmem:[%s413 + $0x3c] sm:$0xf]
        %v431 = vld [vmem:[%s413 + $0x40] sm:$0xf]
        %v432 = vld [vmem:[%s413 + $0x44] sm:$0xf]
        %v433 = vld [vmem:[%s413 + $0x48] sm:$0xf]
        %v434 = vld [vmem:[%s413 + $0x4c] sm:$0xf]
        %v435 = vld [vmem:[%s413 + $0x50] sm:$0xf]
        %v436 = vld [vmem:[%s413 + $0x54] sm:$0xf]
        %v437 = vld [vmem:[%s413 + $0x58] sm:$0xf]
        %v438 = vld [vmem:[%s413 + $0x5c] sm:$0xf]
        %v439 = vld [vmem:[%s413 + $0x60] sm:$0xf]
        %v440 = vld [vmem:[%s413 + $0x64] sm:$0xf]
        %v441 = vld [vmem:[%s413 + $0x68] sm:$0xf]
        %v442 = vld [vmem:[%s413 + $0x6c] sm:$0xf]
        %v443 = vld [vmem:[%s413 + $0x70] sm:$0xf]
        %v444 = vld [vmem:[%s413 + $0x74] sm:$0xf]
        %v445 = vld [vmem:[%s413 + $0x78] sm:$0xf]
        %v446 = vld [vmem:[%s413 + $0x7c] sm:$0xf]
        %v447 = vunpack.c.l.bf16 %v415
        %v448 = vunpack.c.l.bf16 %v416
        %v449 = vunpack.c.l.bf16 %v417
        %v450 = vunpack.c.l.bf16 %v418
        %v451 = vunpack.c.l.bf16 %v419
        %v452 = vunpack.c.l.bf16 %v420
        %v453 = vunpack.c.l.bf16 %v421
        %v454 = vunpack.c.l.bf16 %v422
        %v455 = vunpack.c.l.bf16 %v423
        %v456 = vunpack.c.l.bf16 %v424
        %v457 = vunpack.c.l.bf16 %v425
        %v458 = vunpack.c.l.bf16 %v426
        %v459 = vunpack.c.l.bf16 %v427
        %v460 = vunpack.c.l.bf16 %v428
        %v461 = vunpack.c.l.bf16 %v429
        %v462 = vunpack.c.l.bf16 %v430
        %v463 = vunpack.c.l.bf16 %v431
        %v464 = vunpack.c.l.bf16 %v432
        %v465 = vunpack.c.l.bf16 %v433
        %v466 = vunpack.c.l.bf16 %v434
        %v467 = vunpack.c.l.bf16 %v435
        %v468 = vunpack.c.l.bf16 %v436
        %v469 = vunpack.c.l.bf16 %v437
        %v470 = vunpack.c.l.bf16 %v438
        %v471 = vunpack.c.l.bf16 %v439
        %v472 = vunpack.c.l.bf16 %v440
        %v473 = vunpack.c.l.bf16 %v441
        %v474 = vunpack.c.l.bf16 %v442
        %v475 = vunpack.c.l.bf16 %v443
        %v476 = vunpack.c.l.bf16 %v444
        %v477 = vunpack.c.l.bf16 %v445
        %v478 = vunpack.c.l.bf16 %v446
        %vm512 = vcmask 1040384
        %v513 = vrot.slane 0.0, 7
        %v514 = vsel %vm512, %v513, %v513
        %v515 = vrot.slane %v447, 7
        %v516 = vrot.slane %v448, 7
        %v517 = vsel %vm512, %v515, %v516
        %v518 = vrot.slane %v449, 7
        %v519 = vrot.slane %v450, 7
        %v520 = vsel %vm512, %v518, %v519
        %v521 = vrot.slane %v451, 7
        %v522 = vrot.slane %v452, 7
        %v523 = vsel %vm512, %v521, %v522
        %v524 = vrot.slane %v453, 7
        %v525 = vrot.slane %v454, 7
        %v526 = vsel %vm512, %v524, %v525
        %v527 = vrot.slane %v455, 7
        %v528 = vrot.slane %v456, 7
        %v529 = vsel %vm512, %v527, %v528
        %v530 = vrot.slane %v457, 7
        %v531 = vrot.slane %v458, 7
        %v532 = vsel %vm512, %v530, %v531
        %v533 = vrot.slane %v459, 7
        %v534 = vrot.slane %v460, 7
        %v535 = vsel %vm512, %v533, %v534
        %v536 = vrot.slane %v461, 7
        %v537 = vrot.slane %v462, 7
        %v538 = vsel %vm512, %v536, %v537
        %v539 = vrot.slane %v463, 7
        %v540 = vrot.slane %v464, 7
        %v541 = vsel %vm512, %v539, %v540
        %v542 = vrot.slane %v465, 7
        %v543 = vrot.slane %v466, 7
        %v544 = vsel %vm512, %v542, %v543
        %v545 = vrot.slane %v467, 7
        %v546 = vrot.slane %v468, 7
        %v547 = vsel %vm512, %v545, %v546
        %v548 = vrot.slane %v469, 7
        %v549 = vrot.slane %v470, 7
        %v550 = vsel %vm512, %v548, %v549
        %v551 = vrot.slane %v471, 7
        %v552 = vrot.slane %v472, 7
        %v553 = vsel %vm512, %v551, %v552
        %v554 = vrot.slane %v473, 7
        %v555 = vrot.slane %v474, 7
        %v556 = vsel %vm512, %v554, %v555
        %v557 = vrot.slane %v475, 7
        %v558 = vrot.slane %v476, 7
        %v559 = vsel %vm512, %v557, %v558
        %v560 = vrot.slane %v477, 7
        %v561 = vrot.slane %v478, 7
        %v562 = vsel %vm512, %v560, %v561
        %v612 = vsel %vm512, 0.0, %v513
        %v613 = vsel %vm512, 0.0, %v515
        %v614 = vsel %vm512, 0.0, %v518
        %v615 = vsel %vm512, 0.0, %v521
        %v616 = vsel %vm512, 0.0, %v524
        %v617 = vsel %vm512, 0.0, %v527
        %v618 = vsel %vm512, 0.0, %v530
        %v619 = vsel %vm512, 0.0, %v533
        %v620 = vsel %vm512, 0.0, %v536
        %v621 = vsel %vm512, 0.0, %v539
        %v622 = vsel %vm512, 0.0, %v542
        %v623 = vsel %vm512, 0.0, %v545
        %v624 = vsel %vm512, 0.0, %v548
        %v625 = vsel %vm512, 0.0, %v551
        %v626 = vsel %vm512, 0.0, %v554
        %v627 = vsel %vm512, 0.0, %v557
        %v628 = vsel %vm512, 0.0, %v560
        %v629 = vsel %vm512, %v513, 0.0
        %v630 = vsel %vm512, %v516, 0.0
        %v631 = vsel %vm512, %v519, 0.0
        %v632 = vsel %vm512, %v522, 0.0
        %v633 = vsel %vm512, %v525, 0.0
        %v634 = vsel %vm512, %v528, 0.0
        %v635 = vsel %vm512, %v531, 0.0
        %v636 = vsel %vm512, %v534, 0.0
        %v637 = vsel %vm512, %v537, 0.0
        %v638 = vsel %vm512, %v540, 0.0
        %v639 = vsel %vm512, %v543, 0.0
        %v640 = vsel %vm512, %v546, 0.0
        %v641 = vsel %vm512, %v549, 0.0
        %v642 = vsel %vm512, %v552, 0.0
        %v643 = vsel %vm512, %v555, 0.0
        %v644 = vsel %vm512, %v558, 0.0
        %v645 = vsel %vm512, %v561, 0.0
        %vm678 = vcmask 1046528
        %v679 = vrot.slane %v612, 1
        %v680 = vrot.slane %v514, 1
        %v681 = vsel %vm678, %v679, %v680
        %v682 = vrot.slane %v629, 1
        %v683 = vsel %vm678, %v680, %v682
        %v684 = vrot.slane %v613, 1
        %v685 = vrot.slane %v517, 1
        %v686 = vsel %vm678, %v684, %v685
        %v687 = vrot.slane %v630, 1
        %v688 = vsel %vm678, %v685, %v687
        %v689 = vrot.slane %v614, 1
        %v690 = vrot.slane %v520, 1
        %v691 = vsel %vm678, %v689, %v690
        %v692 = vrot.slane %v631, 1
        %v693 = vsel %vm678, %v690, %v692
        %v694 = vrot.slane %v615, 1
        %v695 = vrot.slane %v523, 1
        %v696 = vsel %vm678, %v694, %v695
        %v697 = vrot.slane %v632, 1
        %v698 = vsel %vm678, %v695, %v697
        %v699 = vrot.slane %v616, 1
        %v700 = vrot.slane %v526, 1
        %v701 = vsel %vm678, %v699, %v700
        %v702 = vrot.slane %v633, 1
        %v703 = vsel %vm678, %v700, %v702
        %v704 = vrot.slane %v617, 1
        %v705 = vrot.slane %v529, 1
        %v706 = vsel %vm678, %v704, %v705
        %v707 = vrot.slane %v634, 1
        %v708 = vsel %vm678, %v705, %v707
        %v709 = vrot.slane %v618, 1
        %v710 = vrot.slane %v532, 1
        %v711 = vsel %vm678, %v709, %v710
        %v712 = vrot.slane %v635, 1
        %v713 = vsel %vm678, %v710, %v712
        %v714 = vrot.slane %v619, 1
        %v715 = vrot.slane %v535, 1
        %v716 = vsel %vm678, %v714, %v715
        %v717 = vrot.slane %v636, 1
        %v718 = vsel %vm678, %v715, %v717
        %v719 = vrot.slane %v620, 1
        %v720 = vrot.slane %v538, 1
        %v721 = vsel %vm678, %v719, %v720
        %v722 = vrot.slane %v637, 1
        %v723 = vsel %vm678, %v720, %v722
        %v724 = vrot.slane %v621, 1
        %v725 = vrot.slane %v541, 1
        %v726 = vsel %vm678, %v724, %v725
        %v727 = vrot.slane %v638, 1
        %v728 = vsel %vm678, %v725, %v727
        %v729 = vrot.slane %v622, 1
        %v730 = vrot.slane %v544, 1
        %v731 = vsel %vm678, %v729, %v730
        %v732 = vrot.slane %v639, 1
        %v733 = vsel %vm678, %v730, %v732
        %v734 = vrot.slane %v623, 1
        %v735 = vrot.slane %v547, 1
        %v736 = vsel %vm678, %v734, %v735
        %v737 = vrot.slane %v640, 1
        %v738 = vsel %vm678, %v735, %v737
        %v739 = vrot.slane %v624, 1
        %v740 = vrot.slane %v550, 1
        %v741 = vsel %vm678, %v739, %v740
        %v742 = vrot.slane %v641, 1
        %v743 = vsel %vm678, %v740, %v742
        %v744 = vrot.slane %v625, 1
        %v745 = vrot.slane %v553, 1
        %v746 = vsel %vm678, %v744, %v745
        %v747 = vrot.slane %v642, 1
        %v748 = vsel %vm678, %v745, %v747
        %v749 = vrot.slane %v626, 1
        %v750 = vrot.slane %v556, 1
        %v751 = vsel %vm678, %v749, %v750
        %v752 = vrot.slane %v643, 1
        %v753 = vsel %vm678, %v750, %v752
        %v754 = vrot.slane %v627, 1
        %v755 = vrot.slane %v559, 1
        %v756 = vsel %vm678, %v754, %v755
        %v757 = vrot.slane %v644, 1
        %v758 = vsel %vm678, %v755, %v757
        %759 = vrot.lane.b32.xlu0 %v681, 3
        %v760 = vpop.permute.xlu0 %759
        %761 = vrot.lane.b32.xlu0 %v683, 3
        %v762 = vpop.permute.xlu0 %761
        %763 = vrot.lane.b32.xlu0 %v686, 3
        %v764 = vpop.permute.xlu0 %763
        %765 = vrot.lane.b32.xlu0 %v688, 3
        %v766 = vpop.permute.xlu0 %765
        %767 = vrot.lane.b32.xlu0 %v691, 3
        %v768 = vpop.permute.xlu0 %767
        %769 = vrot.lane.b32.xlu0 %v693, 3
        %v770 = vpop.permute.xlu0 %769
        %771 = vrot.lane.b32.xlu0 %v696, 3
        %v772 = vpop.permute.xlu0 %771
        %773 = vrot.lane.b32.xlu0 %v698, 3
        %v774 = vpop.permute.xlu0 %773
        %775 = vrot.lane.b32.xlu0 %v701, 3
        %v776 = vpop.permute.xlu0 %775
        %777 = vrot.lane.b32.xlu0 %v703, 3
        %v778 = vpop.permute.xlu0 %777
        %779 = vrot.lane.b32.xlu0 %v706, 3
        %v780 = vpop.permute.xlu0 %779
        %781 = vrot.lane.b32.xlu0 %v708, 3
        %v782 = vpop.permute.xlu0 %781
        %783 = vrot.lane.b32.xlu0 %v711, 3
        %v784 = vpop.permute.xlu0 %783
        %785 = vrot.lane.b32.xlu0 %v713, 3
        %v786 = vpop.permute.xlu0 %785
        %787 = vrot.lane.b32.xlu0 %v716, 3
        %v788 = vpop.permute.xlu0 %787
        %789 = vrot.lane.b32.xlu0 %v718, 3
        %v790 = vpop.permute.xlu0 %789
        %791 = vrot.lane.b32.xlu0 %v721, 3
        %v792 = vpop.permute.xlu0 %791
        %793 = vrot.lane.b32.xlu0 %v723, 3
        %v794 = vpop.permute.xlu0 %793
        %795 = vrot.lane.b32.xlu0 %v726, 3
        %v796 = vpop.permute.xlu0 %795
        %797 = vrot.lane.b32.xlu0 %v728, 3
        %v798 = vpop.permute.xlu0 %797
        %799 = vrot.lane.b32.xlu0 %v731, 3
        %v800 = vpop.permute.xlu0 %799
        %801 = vrot.lane.b32.xlu0 %v733, 3
        %v802 = vpop.permute.xlu0 %801
        %803 = vrot.lane.b32.xlu0 %v736, 3
        %v804 = vpop.permute.xlu0 %803
        %805 = vrot.lane.b32.xlu0 %v738, 3
        %v806 = vpop.permute.xlu0 %805
        %807 = vrot.lane.b32.xlu0 %v741, 3
        %v808 = vpop.permute.xlu0 %807
        %809 = vrot.lane.b32.xlu0 %v743, 3
        %v810 = vpop.permute.xlu0 %809
        %811 = vrot.lane.b32.xlu0 %v746, 3
        %v812 = vpop.permute.xlu0 %811
        %813 = vrot.lane.b32.xlu0 %v748, 3
        %v814 = vpop.permute.xlu0 %813
        %815 = vrot.lane.b32.xlu0 %v751, 3
        %v816 = vpop.permute.xlu0 %815
        %817 = vrot.lane.b32.xlu0 %v753, 3
        %v818 = vpop.permute.xlu0 %817
        %819 = vrot.lane.b32.xlu0 %v756, 3
        %v820 = vpop.permute.xlu0 %819
        %821 = vrot.lane.b32.xlu0 %v758, 3
        %v822 = vpop.permute.xlu0 %821
        %vm855 = vcmask 1045504
        %v856 = vrot.slane %v612, 2
        %v857 = vrot.slane %v514, 2
        %v858 = vsel %vm855, %v856, %v857
        %v859 = vrot.slane %v629, 2
        %v860 = vsel %vm855, %v857, %v859
        %v861 = vrot.slane %v613, 2
        %v862 = vrot.slane %v517, 2
        %v863 = vsel %vm855, %v861, %v862
        %v864 = vrot.slane %v630, 2
        %v865 = vsel %vm855, %v862, %v864
        %v866 = vrot.slane %v614, 2
        %v867 = vrot.slane %v520, 2
        %v868 = vsel %vm855, %v866, %v867
        %v869 = vrot.slane %v631, 2
        %v870 = vsel %vm855, %v867, %v869
        %v871 = vrot.slane %v615, 2
        %v872 = vrot.slane %v523, 2
        %v873 = vsel %vm855, %v871, %v872
        %v874 = vrot.slane %v632, 2
        %v875 = vsel %vm855, %v872, %v874
        %v876 = vrot.slane %v616, 2
        %v877 = vrot.slane %v526, 2
        %v878 = vsel %vm855, %v876, %v877
        %v879 = vrot.slane %v633, 2
        %v880 = vsel %vm855, %v877, %v879
        %v881 = vrot.slane %v617, 2
        %v882 = vrot.slane %v529, 2
        %v883 = vsel %vm855, %v881, %v882
        %v884 = vrot.slane %v634, 2
        %v885 = vsel %vm855, %v882, %v884
        %v886 = vrot.slane %v618, 2
        %v887 = vrot.slane %v532, 2
        %v888 = vsel %vm855, %v886, %v887
        %v889 = vrot.slane %v635, 2
        %v890 = vsel %vm855, %v887, %v889
        %v891 = vrot.slane %v619, 2
        %v892 = vrot.slane %v535, 2
        %v893 = vsel %vm855, %v891, %v892
        %v894 = vrot.slane %v636, 2
        %v895 = vsel %vm855, %v892, %v894
        %v896 = vrot.slane %v620, 2
        %v897 = vrot.slane %v538, 2
        %v898 = vsel %vm855, %v896, %v897
        %v899 = vrot.slane %v637, 2
        %v900 = vsel %vm855, %v897, %v899
        %v901 = vrot.slane %v621, 2
        %v902 = vrot.slane %v541, 2
        %v903 = vsel %vm855, %v901, %v902
        %v904 = vrot.slane %v638, 2
        %v905 = vsel %vm855, %v902, %v904
        %v906 = vrot.slane %v622, 2
        %v907 = vrot.slane %v544, 2
        %v908 = vsel %vm855, %v906, %v907
        %v909 = vrot.slane %v639, 2
        %v910 = vsel %vm855, %v907, %v909
        %v911 = vrot.slane %v623, 2
        %v912 = vrot.slane %v547, 2
        %v913 = vsel %vm855, %v911, %v912
        %v914 = vrot.slane %v640, 2
        %v915 = vsel %vm855, %v912, %v914
        %v916 = vrot.slane %v624, 2
        %v917 = vrot.slane %v550, 2
        %v918 = vsel %vm855, %v916, %v917
        %v919 = vrot.slane %v641, 2
        %v920 = vsel %vm855, %v917, %v919
        %v921 = vrot.slane %v625, 2
        %v922 = vrot.slane %v553, 2
        %v923 = vsel %vm855, %v921, %v922
        %v924 = vrot.slane %v642, 2
        %v925 = vsel %vm855, %v922, %v924
        %v926 = vrot.slane %v626, 2
        %v927 = vrot.slane %v556, 2
        %v928 = vsel %vm855, %v926, %v927
        %v929 = vrot.slane %v643, 2
        %v930 = vsel %vm855, %v927, %v929
        %v931 = vrot.slane %v627, 2
        %v932 = vrot.slane %v559, 2
        %v933 = vsel %vm855, %v931, %v932
        %v934 = vrot.slane %v644, 2
        %v935 = vsel %vm855, %v932, %v934
        %936 = vrot.lane.b32.xlu0 %v858, 6
        %v937 = vpop.permute.xlu0 %936
        %938 = vrot.lane.b32.xlu0 %v860, 6
        %v939 = vpop.permute.xlu0 %938
        %940 = vrot.lane.b32.xlu0 %v863, 6
        %v941 = vpop.permute.xlu0 %940
        %942 = vrot.lane.b32.xlu0 %v865, 6
        %v943 = vpop.permute.xlu0 %942
        %944 = vrot.lane.b32.xlu0 %v868, 6
        %v945 = vpop.permute.xlu0 %944
        %946 = vrot.lane.b32.xlu0 %v870, 6
        %v947 = vpop.permute.xlu0 %946
        %948 = vrot.lane.b32.xlu0 %v873, 6
        %v949 = vpop.permute.xlu0 %948
        %950 = vrot.lane.b32.xlu0 %v875, 6
        %v951 = vpop.permute.xlu0 %950
        %952 = vrot.lane.b32.xlu0 %v878, 6
        %v953 = vpop.permute.xlu0 %952
        %954 = vrot.lane.b32.xlu0 %v880, 6
        %v955 = vpop.permute.xlu0 %954
        %956 = vrot.lane.b32.xlu0 %v883, 6
        %v957 = vpop.permute.xlu0 %956
        %958 = vrot.lane.b32.xlu0 %v885, 6
        %v959 = vpop.permute.xlu0 %958
        %960 = vrot.lane.b32.xlu0 %v888, 6
        %v961 = vpop.permute.xlu0 %960
        %962 = vrot.lane.b32.xlu0 %v890, 6
        %v963 = vpop.permute.xlu0 %962
        %964 = vrot.lane.b32.xlu0 %v893, 6
        %v965 = vpop.permute.xlu0 %964
        %966 = vrot.lane.b32.xlu0 %v895, 6
        %v967 = vpop.permute.xlu0 %966
        %968 = vrot.lane.b32.xlu0 %v898, 6
        %v969 = vpop.permute.xlu0 %968
        %970 = vrot.lane.b32.xlu0 %v900, 6
        %v971 = vpop.permute.xlu0 %970
        %972 = vrot.lane.b32.xlu0 %v903, 6
        %v973 = vpop.permute.xlu0 %972
        %974 = vrot.lane.b32.xlu0 %v905, 6
        %v975 = vpop.permute.xlu0 %974
        %976 = vrot.lane.b32.xlu0 %v908, 6
        %v977 = vpop.permute.xlu0 %976
        %978 = vrot.lane.b32.xlu0 %v910, 6
        %v979 = vpop.permute.xlu0 %978
        %980 = vrot.lane.b32.xlu0 %v913, 6
        %v981 = vpop.permute.xlu0 %980
        %982 = vrot.lane.b32.xlu0 %v915, 6
        %v983 = vpop.permute.xlu0 %982
        %984 = vrot.lane.b32.xlu0 %v918, 6
        %v985 = vpop.permute.xlu0 %984
        %986 = vrot.lane.b32.xlu0 %v920, 6
        %v987 = vpop.permute.xlu0 %986
        %988 = vrot.lane.b32.xlu0 %v923, 6
        %v989 = vpop.permute.xlu0 %988
        %990 = vrot.lane.b32.xlu0 %v925, 6
        %v991 = vpop.permute.xlu0 %990
        %992 = vrot.lane.b32.xlu0 %v928, 6
        %v993 = vpop.permute.xlu0 %992
        %994 = vrot.lane.b32.xlu0 %v930, 6
        %v995 = vpop.permute.xlu0 %994
        %996 = vrot.lane.b32.xlu0 %v933, 6
        %v997 = vpop.permute.xlu0 %996
        %998 = vrot.lane.b32.xlu0 %v935, 6
        %v999 = vpop.permute.xlu0 %998
        %1033 = vrot.lane.b32.xlu0 %v613, 9
        %v1034 = vpop.permute.xlu0 %1033
        %1035 = vrot.lane.b32.xlu0 %v517, 9
        %v1036 = vpop.permute.xlu0 %1035
        %1037 = vrot.lane.b32.xlu0 %v614, 9
        %v1038 = vpop.permute.xlu0 %1037
        %1039 = vrot.lane.b32.xlu0 %v520, 9
        %v1040 = vpop.permute.xlu0 %1039
        %1041 = vrot.lane.b32.xlu0 %v615, 9
        %v1042 = vpop.permute.xlu0 %1041
        %1043 = vrot.lane.b32.xlu0 %v523, 9
        %v1044 = vpop.permute.xlu0 %1043
        %1045 = vrot.lane.b32.xlu0 %v616, 9
        %v1046 = vpop.permute.xlu0 %1045
        %1047 = vrot.lane.b32.xlu0 %v526, 9
        %v1048 = vpop.permute.xlu0 %1047
        %1049 = vrot.lane.b32.xlu0 %v617, 9
        %v1050 = vpop.permute.xlu0 %1049
        %1051 = vrot.lane.b32.xlu0 %v529, 9
        %v1052 = vpop.permute.xlu0 %1051
        %1053 = vrot.lane.b32.xlu0 %v618, 9
        %v1054 = vpop.permute.xlu0 %1053
        %1055 = vrot.lane.b32.xlu0 %v532, 9
        %v1056 = vpop.permute.xlu0 %1055
        %1057 = vrot.lane.b32.xlu0 %v619, 9
        %v1058 = vpop.permute.xlu0 %1057
        %1059 = vrot.lane.b32.xlu0 %v535, 9
        %v1060 = vpop.permute.xlu0 %1059
        %1061 = vrot.lane.b32.xlu0 %v620, 9
        %v1062 = vpop.permute.xlu0 %1061
        %1063 = vrot.lane.b32.xlu0 %v538, 9
        %v1064 = vpop.permute.xlu0 %1063
        %1065 = vrot.lane.b32.xlu0 %v621, 9
        %v1066 = vpop.permute.xlu0 %1065
        %1067 = vrot.lane.b32.xlu0 %v541, 9
        %v1068 = vpop.permute.xlu0 %1067
        %1069 = vrot.lane.b32.xlu0 %v622, 9
        %v1070 = vpop.permute.xlu0 %1069
        %1071 = vrot.lane.b32.xlu0 %v544, 9
        %v1072 = vpop.permute.xlu0 %1071
        %1073 = vrot.lane.b32.xlu0 %v623, 9
        %v1074 = vpop.permute.xlu0 %1073
        %1075 = vrot.lane.b32.xlu0 %v547, 9
        %v1076 = vpop.permute.xlu0 %1075
        %1077 = vrot.lane.b32.xlu0 %v624, 9
        %v1078 = vpop.permute.xlu0 %1077
        %1079 = vrot.lane.b32.xlu0 %v550, 9
        %v1080 = vpop.permute.xlu0 %1079
        %1081 = vrot.lane.b32.xlu0 %v625, 9
        %v1082 = vpop.permute.xlu0 %1081
        %1083 = vrot.lane.b32.xlu0 %v553, 9
        %v1084 = vpop.permute.xlu0 %1083
        %1085 = vrot.lane.b32.xlu0 %v626, 9
        %v1086 = vpop.permute.xlu0 %1085
        %1087 = vrot.lane.b32.xlu0 %v556, 9
        %v1088 = vpop.permute.xlu0 %1087
        %1089 = vrot.lane.b32.xlu0 %v627, 9
        %v1090 = vpop.permute.xlu0 %1089
        %1091 = vrot.lane.b32.xlu0 %v559, 9
        %v1092 = vpop.permute.xlu0 %1091
        %1093 = vrot.lane.b32.xlu0 %v628, 9
        %v1094 = vpop.permute.xlu0 %1093
        %1095 = vrot.lane.b32.xlu0 %v562, 9
        %v1096 = vpop.permute.xlu0 %1095
        %v1130 = vrot.slane %v628, 1
        %v1131 = vrot.slane %v562, 1
        %v1132 = vsel %vm678, %v1130, %v1131
        %v1133 = vrot.slane %v645, 1
        %v1134 = vsel %vm678, %v1131, %v1133
        %1135 = vrot.lane.b32.xlu0 %v686, 12
        %v1136 = vpop.permute.xlu0 %1135
        %1137 = vrot.lane.b32.xlu0 %v688, 12
        %v1138 = vpop.permute.xlu0 %1137
        %1139 = vrot.lane.b32.xlu0 %v691, 12
        %v1140 = vpop.permute.xlu0 %1139
        %1141 = vrot.lane.b32.xlu0 %v693, 12
        %v1142 = vpop.permute.xlu0 %1141
        %1143 = vrot.lane.b32.xlu0 %v696, 12
        %v1144 = vpop.permute.xlu0 %1143
        %1145 = vrot.lane.b32.xlu0 %v698, 12
        %v1146 = vpop.permute.xlu0 %1145
        %1147 = vrot.lane.b32.xlu0 %v701, 12
        %v1148 = vpop.permute.xlu0 %1147
        %1149 = vrot.lane.b32.xlu0 %v703, 12
        %v1150 = vpop.permute.xlu0 %1149
        %1151 = vrot.lane.b32.xlu0 %v706, 12
        %v1152 = vpop.permute.xlu0 %1151
        %1153 = vrot.lane.b32.xlu0 %v708, 12
        %v1154 = vpop.permute.xlu0 %1153
        %1155 = vrot.lane.b32.xlu0 %v711, 12
        %v1156 = vpop.permute.xlu0 %1155
        %1157 = vrot.lane.b32.xlu0 %v713, 12
        %v1158 = vpop.permute.xlu0 %1157
        %1159 = vrot.lane.b32.xlu0 %v716, 12
        %v1160 = vpop.permute.xlu0 %1159
        %1161 = vrot.lane.b32.xlu0 %v718, 12
        %v1162 = vpop.permute.xlu0 %1161
        %1163 = vrot.lane.b32.xlu0 %v721, 12
        %v1164 = vpop.permute.xlu0 %1163
        %1165 = vrot.lane.b32.xlu0 %v723, 12
        %v1166 = vpop.permute.xlu0 %1165
        %1167 = vrot.lane.b32.xlu0 %v726, 12
        %v1168 = vpop.permute.xlu0 %1167
        %1169 = vrot.lane.b32.xlu0 %v728, 12
        %v1170 = vpop.permute.xlu0 %1169
        %1171 = vrot.lane.b32.xlu0 %v731, 12
        %v1172 = vpop.permute.xlu0 %1171
        %1173 = vrot.lane.b32.xlu0 %v733, 12
        %v1174 = vpop.permute.xlu0 %1173
        %1175 = vrot.lane.b32.xlu0 %v736, 12
        %v1176 = vpop.permute.xlu0 %1175
        %1177 = vrot.lane.b32.xlu0 %v738, 12
        %v1178 = vpop.permute.xlu0 %1177
        %1179 = vrot.lane.b32.xlu0 %v741, 12
        %v1180 = vpop.permute.xlu0 %1179
        %1181 = vrot.lane.b32.xlu0 %v743, 12
        %v1182 = vpop.permute.xlu0 %1181
        %1183 = vrot.lane.b32.xlu0 %v746, 12
        %v1184 = vpop.permute.xlu0 %1183
        %1185 = vrot.lane.b32.xlu0 %v748, 12
        %v1186 = vpop.permute.xlu0 %1185
        %1187 = vrot.lane.b32.xlu0 %v751, 12
        %v1188 = vpop.permute.xlu0 %1187
        %1189 = vrot.lane.b32.xlu0 %v753, 12
        %v1190 = vpop.permute.xlu0 %1189
        %1191 = vrot.lane.b32.xlu0 %v756, 12
        %v1192 = vpop.permute.xlu0 %1191
        %1193 = vrot.lane.b32.xlu0 %v758, 12
        %v1194 = vpop.permute.xlu0 %1193
        %1195 = vrot.lane.b32.xlu0 %v1132, 12
        %v1196 = vpop.permute.xlu0 %1195
        %1197 = vrot.lane.b32.xlu0 %v1134, 12
        %v1198 = vpop.permute.xlu0 %1197
        %v1231 = vrot.slane %v628, 2
        %v1232 = vrot.slane %v562, 2
        %v1233 = vsel %vm855, %v1231, %v1232
        %v1234 = vrot.slane %v645, 2
        %v1235 = vsel %vm855, %v1232, %v1234
        %1236 = vrot.lane.b32.xlu0 %v863, 15
        %v1237 = vpop.permute.xlu0 %1236
        %1238 = vrot.lane.b32.xlu0 %v865, 15
        %v1239 = vpop.permute.xlu0 %1238
        %1240 = vrot.lane.b32.xlu0 %v868, 15
        %v1241 = vpop.permute.xlu0 %1240
        %1242 = vrot.lane.b32.xlu0 %v870, 15
        %v1243 = vpop.permute.xlu0 %1242
        %1244 = vrot.lane.b32.xlu0 %v873, 15
        %v1245 = vpop.permute.xlu0 %1244
        %1246 = vrot.lane.b32.xlu0 %v875, 15
        %v1247 = vpop.permute.xlu0 %1246
        %1248 = vrot.lane.b32.xlu0 %v878, 15
        %v1249 = vpop.permute.xlu0 %1248
        %1250 = vrot.lane.b32.xlu0 %v880, 15
        %v1251 = vpop.permute.xlu0 %1250
        %1252 = vrot.lane.b32.xlu0 %v883, 15
        %v1253 = vpop.permute.xlu0 %1252
        %1254 = vrot.lane.b32.xlu0 %v885, 15
        %v1255 = vpop.permute.xlu0 %1254
        %1256 = vrot.lane.b32.xlu0 %v888, 15
        %v1257 = vpop.permute.xlu0 %1256
        %1258 = vrot.lane.b32.xlu0 %v890, 15
        %v1259 = vpop.permute.xlu0 %1258
        %1260 = vrot.lane.b32.xlu0 %v893, 15
        %v1261 = vpop.permute.xlu0 %1260
        %1262 = vrot.lane.b32.xlu0 %v895, 15
        %v1263 = vpop.permute.xlu0 %1262
        %1264 = vrot.lane.b32.xlu0 %v898, 15
        %v1265 = vpop.permute.xlu0 %1264
        %1266 = vrot.lane.b32.xlu0 %v900, 15
        %v1267 = vpop.permute.xlu0 %1266
        %1268 = vrot.lane.b32.xlu0 %v903, 15
        %v1269 = vpop.permute.xlu0 %1268
        %1270 = vrot.lane.b32.xlu0 %v905, 15
        %v1271 = vpop.permute.xlu0 %1270
        %1272 = vrot.lane.b32.xlu0 %v908, 15
        %v1273 = vpop.permute.xlu0 %1272
        %1274 = vrot.lane.b32.xlu0 %v910, 15
        %v1275 = vpop.permute.xlu0 %1274
        %1276 = vrot.lane.b32.xlu0 %v913, 15
        %v1277 = vpop.permute.xlu0 %1276
        %1278 = vrot.lane.b32.xlu0 %v915, 15
        %v1279 = vpop.permute.xlu0 %1278
        %1280 = vrot.lane.b32.xlu0 %v918, 15
        %v1281 = vpop.permute.xlu0 %1280
        %1282 = vrot.lane.b32.xlu0 %v920, 15
        %v1283 = vpop.permute.xlu0 %1282
        %1284 = vrot.lane.b32.xlu0 %v923, 15
        %v1285 = vpop.permute.xlu0 %1284
        %1286 = vrot.lane.b32.xlu0 %v925, 15
        %v1287 = vpop.permute.xlu0 %1286
        %1288 = vrot.lane.b32.xlu0 %v928, 15
        %v1289 = vpop.permute.xlu0 %1288
        %1290 = vrot.lane.b32.xlu0 %v930, 15
        %v1291 = vpop.permute.xlu0 %1290
        %1292 = vrot.lane.b32.xlu0 %v933, 15
        %v1293 = vpop.permute.xlu0 %1292
        %1294 = vrot.lane.b32.xlu0 %v935, 15
        %v1295 = vpop.permute.xlu0 %1294
        %1296 = vrot.lane.b32.xlu0 %v1233, 15
        %v1297 = vpop.permute.xlu0 %1296
        %1298 = vrot.lane.b32.xlu0 %v1235, 15
        %v1299 = vpop.permute.xlu0 %1298
        %1332 = vrot.lane.b32.xlu0 %v614, 18
        %v1333 = vpop.permute.xlu0 %1332
        %1334 = vrot.lane.b32.xlu0 %v520, 18
        %v1335 = vpop.permute.xlu0 %1334
        %1336 = vrot.lane.b32.xlu0 %v615, 18
        %v1337 = vpop.permute.xlu0 %1336
        %1338 = vrot.lane.b32.xlu0 %v523, 18
        %v1339 = vpop.permute.xlu0 %1338
        %1340 = vrot.lane.b32.xlu0 %v616, 18
        %v1341 = vpop.permute.xlu0 %1340
        %1342 = vrot.lane.b32.xlu0 %v526, 18
        %v1343 = vpop.permute.xlu0 %1342
        %1344 = vrot.lane.b32.xlu0 %v617, 18
        %v1345 = vpop.permute.xlu0 %1344
        %1346 = vrot.lane.b32.xlu0 %v529, 18
        %v1347 = vpop.permute.xlu0 %1346
        %1348 = vrot.lane.b32.xlu0 %v618, 18
        %v1349 = vpop.permute.xlu0 %1348
        %1350 = vrot.lane.b32.xlu0 %v532, 18
        %v1351 = vpop.permute.xlu0 %1350
        %1352 = vrot.lane.b32.xlu0 %v619, 18
        %v1353 = vpop.permute.xlu0 %1352
        %1354 = vrot.lane.b32.xlu0 %v535, 18
        %v1355 = vpop.permute.xlu0 %1354
        %1356 = vrot.lane.b32.xlu0 %v620, 18
        %v1357 = vpop.permute.xlu0 %1356
        %1358 = vrot.lane.b32.xlu0 %v538, 18
        %v1359 = vpop.permute.xlu0 %1358
        %1360 = vrot.lane.b32.xlu0 %v621, 18
        %v1361 = vpop.permute.xlu0 %1360
        %1362 = vrot.lane.b32.xlu0 %v541, 18
        %v1363 = vpop.permute.xlu0 %1362
        %1364 = vrot.lane.b32.xlu0 %v622, 18
        %v1365 = vpop.permute.xlu0 %1364
        %1366 = vrot.lane.b32.xlu0 %v544, 18
        %v1367 = vpop.permute.xlu0 %1366
        %1368 = vrot.lane.b32.xlu0 %v623, 18
        %v1369 = vpop.permute.xlu0 %1368
        %1370 = vrot.lane.b32.xlu0 %v547, 18
        %v1371 = vpop.permute.xlu0 %1370
        %1372 = vrot.lane.b32.xlu0 %v624, 18
        %v1373 = vpop.permute.xlu0 %1372
        %1374 = vrot.lane.b32.xlu0 %v550, 18
        %v1375 = vpop.permute.xlu0 %1374
        %1376 = vrot.lane.b32.xlu0 %v625, 18
        %v1377 = vpop.permute.xlu0 %1376
        %1378 = vrot.lane.b32.xlu0 %v553, 18
        %v1379 = vpop.permute.xlu0 %1378
        %1380 = vrot.lane.b32.xlu0 %v626, 18
        %v1381 = vpop.permute.xlu0 %1380
        %1382 = vrot.lane.b32.xlu0 %v556, 18
        %v1383 = vpop.permute.xlu0 %1382
        %1384 = vrot.lane.b32.xlu0 %v627, 18
        %v1385 = vpop.permute.xlu0 %1384
        %1386 = vrot.lane.b32.xlu0 %v559, 18
        %v1387 = vpop.permute.xlu0 %1386
        %1388 = vrot.lane.b32.xlu0 %v628, 18
        %v1389 = vpop.permute.xlu0 %1388
        %1390 = vrot.lane.b32.xlu0 %v562, 18
        %v1391 = vpop.permute.xlu0 %1390
        %1392 = vrot.lane.b32.xlu0 %v612, 18
        %v1393 = vpop.permute.xlu0 %1392
        %1394 = vrot.lane.b32.xlu0 %v514, 18
        %v1395 = vpop.permute.xlu0 %1394
        %1428 = vrot.lane.b32.xlu0 %v691, 21
        %v1429 = vpop.permute.xlu0 %1428
        %1430 = vrot.lane.b32.xlu0 %v693, 21
        %v1431 = vpop.permute.xlu0 %1430
        %1432 = vrot.lane.b32.xlu0 %v696, 21
        %v1433 = vpop.permute.xlu0 %1432
        %1434 = vrot.lane.b32.xlu0 %v698, 21
        %v1435 = vpop.permute.xlu0 %1434
        %1436 = vrot.lane.b32.xlu0 %v701, 21
        %v1437 = vpop.permute.xlu0 %1436
        %1438 = vrot.lane.b32.xlu0 %v703, 21
        %v1439 = vpop.permute.xlu0 %1438
        %1440 = vrot.lane.b32.xlu0 %v706, 21
        %v1441 = vpop.permute.xlu0 %1440
        %1442 = vrot.lane.b32.xlu0 %v708, 21
        %v1443 = vpop.permute.xlu0 %1442
        %1444 = vrot.lane.b32.xlu0 %v711, 21
        %v1445 = vpop.permute.xlu0 %1444
        %1446 = vrot.lane.b32.xlu0 %v713, 21
        %v1447 = vpop.permute.xlu0 %1446
        %1448 = vrot.lane.b32.xlu0 %v716, 21
        %v1449 = vpop.permute.xlu0 %1448
        %1450 = vrot.lane.b32.xlu0 %v718, 21
        %v1451 = vpop.permute.xlu0 %1450
        %1452 = vrot.lane.b32.xlu0 %v721, 21
        %v1453 = vpop.permute.xlu0 %1452
        %1454 = vrot.lane.b32.xlu0 %v723, 21
        %v1455 = vpop.permute.xlu0 %1454
        %1456 = vrot.lane.b32.xlu0 %v726, 21
        %v1457 = vpop.permute.xlu0 %1456
        %1458 = vrot.lane.b32.xlu0 %v728, 21
        %v1459 = vpop.permute.xlu0 %1458
        %1460 = vrot.lane.b32.xlu0 %v731, 21
        %v1461 = vpop.permute.xlu0 %1460
        %1462 = vrot.lane.b32.xlu0 %v733, 21
        %v1463 = vpop.permute.xlu0 %1462
        %1464 = vrot.lane.b32.xlu0 %v736, 21
        %v1465 = vpop.permute.xlu0 %1464
        %1466 = vrot.lane.b32.xlu0 %v738, 21
        %v1467 = vpop.permute.xlu0 %1466
        %1468 = vrot.lane.b32.xlu0 %v741, 21
        %v1469 = vpop.permute.xlu0 %1468
        %1470 = vrot.lane.b32.xlu0 %v743, 21
        %v1471 = vpop.permute.xlu0 %1470
        %1472 = vrot.lane.b32.xlu0 %v746, 21
        %v1473 = vpop.permute.xlu0 %1472
        %1474 = vrot.lane.b32.xlu0 %v748, 21
        %v1475 = vpop.permute.xlu0 %1474
        %1476 = vrot.lane.b32.xlu0 %v751, 21
        %v1477 = vpop.permute.xlu0 %1476
        %1478 = vrot.lane.b32.xlu0 %v753, 21
        %v1479 = vpop.permute.xlu0 %1478
        %1480 = vrot.lane.b32.xlu0 %v756, 21
        %v1481 = vpop.permute.xlu0 %1480
        %1482 = vrot.lane.b32.xlu0 %v758, 21
        %v1483 = vpop.permute.xlu0 %1482
        %1484 = vrot.lane.b32.xlu0 %v1132, 21
        %v1485 = vpop.permute.xlu0 %1484
        %1486 = vrot.lane.b32.xlu0 %v1134, 21
        %v1487 = vpop.permute.xlu0 %1486
        %1488 = vrot.lane.b32.xlu0 %v681, 21
        %v1489 = vpop.permute.xlu0 %1488
        %1490 = vrot.lane.b32.xlu0 %v683, 21
        %v1491 = vpop.permute.xlu0 %1490
        %1524 = vrot.lane.b32.xlu0 %v868, 24
        %v1525 = vpop.permute.xlu0 %1524
        %1526 = vrot.lane.b32.xlu0 %v870, 24
        %v1527 = vpop.permute.xlu0 %1526
        %1528 = vrot.lane.b32.xlu0 %v873, 24
        %v1529 = vpop.permute.xlu0 %1528
        %1530 = vrot.lane.b32.xlu0 %v875, 24
        %v1531 = vpop.permute.xlu0 %1530
        %1532 = vrot.lane.b32.xlu0 %v878, 24
        %v1533 = vpop.permute.xlu0 %1532
        %1534 = vrot.lane.b32.xlu0 %v880, 24
        %v1535 = vpop.permute.xlu0 %1534
        %1536 = vrot.lane.b32.xlu0 %v883, 24
        %v1537 = vpop.permute.xlu0 %1536
        %1538 = vrot.lane.b32.xlu0 %v885, 24
        %v1539 = vpop.permute.xlu0 %1538
        %1540 = vrot.lane.b32.xlu0 %v888, 24
        %v1541 = vpop.permute.xlu0 %1540
        %1542 = vrot.lane.b32.xlu0 %v890, 24
        %v1543 = vpop.permute.xlu0 %1542
        %1544 = vrot.lane.b32.xlu0 %v893, 24
        %v1545 = vpop.permute.xlu0 %1544
        %1546 = vrot.lane.b32.xlu0 %v895, 24
        %v1547 = vpop.permute.xlu0 %1546
        %1548 = vrot.lane.b32.xlu0 %v898, 24
        %v1549 = vpop.permute.xlu0 %1548
        %1550 = vrot.lane.b32.xlu0 %v900, 24
        %v1551 = vpop.permute.xlu0 %1550
        %1552 = vrot.lane.b32.xlu0 %v903, 24
        %v1553 = vpop.permute.xlu0 %1552
        %1554 = vrot.lane.b32.xlu0 %v905, 24
        %v1555 = vpop.permute.xlu0 %1554
        %1556 = vrot.lane.b32.xlu0 %v908, 24
        %v1557 = vpop.permute.xlu0 %1556
        %1558 = vrot.lane.b32.xlu0 %v910, 24
        %v1559 = vpop.permute.xlu0 %1558
        %1560 = vrot.lane.b32.xlu0 %v913, 24
        %v1561 = vpop.permute.xlu0 %1560
        %1562 = vrot.lane.b32.xlu0 %v915, 24
        %v1563 = vpop.permute.xlu0 %1562
        %1564 = vrot.lane.b32.xlu0 %v918, 24
        %v1565 = vpop.permute.xlu0 %1564
        %1566 = vrot.lane.b32.xlu0 %v920, 24
        %v1567 = vpop.permute.xlu0 %1566
        %1568 = vrot.lane.b32.xlu0 %v923, 24
        %v1569 = vpop.permute.xlu0 %1568
        %1570 = vrot.lane.b32.xlu0 %v925, 24
        %v1571 = vpop.permute.xlu0 %1570
        %1572 = vrot.lane.b32.xlu0 %v928, 24
        %v1573 = vpop.permute.xlu0 %1572
        %1574 = vrot.lane.b32.xlu0 %v930, 24
        %v1575 = vpop.permute.xlu0 %1574
        %1576 = vrot.lane.b32.xlu0 %v933, 24
        %v1577 = vpop.permute.xlu0 %1576
        %1578 = vrot.lane.b32.xlu0 %v935, 24
        %v1579 = vpop.permute.xlu0 %1578
        %1580 = vrot.lane.b32.xlu0 %v1233, 24
        %v1581 = vpop.permute.xlu0 %1580
        %1582 = vrot.lane.b32.xlu0 %v1235, 24
        %v1583 = vpop.permute.xlu0 %1582
        %1584 = vrot.lane.b32.xlu0 %v858, 24
        %v1585 = vpop.permute.xlu0 %1584
        %1586 = vrot.lane.b32.xlu0 %v860, 24
        %v1587 = vpop.permute.xlu0 %1586
        %vm1620 = vcmask 23552
        %v1621 = vsel %vm1620, %v612, %v760
        %v1622 = vsel %vm1620, %v514, %v762
        %v1623 = vsel %vm1620, %v613, %v764
        %v1624 = vsel %vm1620, %v517, %v766
        %v1625 = vsel %vm1620, %v614, %v768
        %v1626 = vsel %vm1620, %v520, %v770
        %v1627 = vsel %vm1620, %v615, %v772
        %v1628 = vsel %vm1620, %v523, %v774
        %v1629 = vsel %vm1620, %v616, %v776
        %v1630 = vsel %vm1620, %v526, %v778
        %v1631 = vsel %vm1620, %v617, %v780
        %v1632 = vsel %vm1620, %v529, %v782
        %v1633 = vsel %vm1620, %v618, %v784
        %v1634 = vsel %vm1620, %v532, %v786
        %v1635 = vsel %vm1620, %v619, %v788
        %v1636 = vsel %vm1620, %v535, %v790
        %v1637 = vsel %vm1620, %v620, %v792
        %v1638 = vsel %vm1620, %v538, %v794
        %v1639 = vsel %vm1620, %v621, %v796
        %v1640 = vsel %vm1620, %v541, %v798
        %v1641 = vsel %vm1620, %v622, %v800
        %v1642 = vsel %vm1620, %v544, %v802
        %v1643 = vsel %vm1620, %v623, %v804
        %v1644 = vsel %vm1620, %v547, %v806
        %v1645 = vsel %vm1620, %v624, %v808
        %v1646 = vsel %vm1620, %v550, %v810
        %v1647 = vsel %vm1620, %v625, %v812
        %v1648 = vsel %vm1620, %v553, %v814
        %v1649 = vsel %vm1620, %v626, %v816
        %v1650 = vsel %vm1620, %v556, %v818
        %v1651 = vsel %vm1620, %v627, %v820
        %v1652 = vsel %vm1620, %v559, %v822
        %vm1653 = vcmask 48128
        %v1654 = vsel %vm1653, %v1621, %v937
        %v1655 = vsel %vm1653, %v1622, %v939
        %v1656 = vsel %vm1653, %v1623, %v941
        %v1657 = vsel %vm1653, %v1624, %v943
        %v1658 = vsel %vm1653, %v1625, %v945
        %v1659 = vsel %vm1653, %v1626, %v947
        %v1660 = vsel %vm1653, %v1627, %v949
        %v1661 = vsel %vm1653, %v1628, %v951
        %v1662 = vsel %vm1653, %v1629, %v953
        %v1663 = vsel %vm1653, %v1630, %v955
        %v1664 = vsel %vm1653, %v1631, %v957
        %v1665 = vsel %vm1653, %v1632, %v959
        %v1666 = vsel %vm1653, %v1633, %v961
        %v1667 = vsel %vm1653, %v1634, %v963
        %v1668 = vsel %vm1653, %v1635, %v965
        %v1669 = vsel %vm1653, %v1636, %v967
        %v1670 = vsel %vm1653, %v1637, %v969
        %v1671 = vsel %vm1653, %v1638, %v971
        %v1672 = vsel %vm1653, %v1639, %v973
        %v1673 = vsel %vm1653, %v1640, %v975
        %v1674 = vsel %vm1653, %v1641, %v977
        %v1675 = vsel %vm1653, %v1642, %v979
        %v1676 = vsel %vm1653, %v1643, %v981
        %v1677 = vsel %vm1653, %v1644, %v983
        %v1678 = vsel %vm1653, %v1645, %v985
        %v1679 = vsel %vm1653, %v1646, %v987
        %v1680 = vsel %vm1653, %v1647, %v989
        %v1681 = vsel %vm1653, %v1648, %v991
        %v1682 = vsel %vm1653, %v1649, %v993
        %v1683 = vsel %vm1653, %v1650, %v995
        %v1684 = vsel %vm1653, %v1651, %v997
        %v1685 = vsel %vm1653, %v1652, %v999
        %vm1686 = vcmask 72704
        %v1687 = vsel %vm1686, %v1654, %v1034
        %v1688 = vsel %vm1686, %v1655, %v1036
        %v1689 = vsel %vm1686, %v1656, %v1038
        %v1690 = vsel %vm1686, %v1657, %v1040
        %v1691 = vsel %vm1686, %v1658, %v1042
        %v1692 = vsel %vm1686, %v1659, %v1044
        %v1693 = vsel %vm1686, %v1660, %v1046
        %v1694 = vsel %vm1686, %v1661, %v1048
        %v1695 = vsel %vm1686, %v1662, %v1050
        %v1696 = vsel %vm1686, %v1663, %v1052
        %v1697 = vsel %vm1686, %v1664, %v1054
        %v1698 = vsel %vm1686, %v1665, %v1056
        %v1699 = vsel %vm1686, %v1666, %v1058
        %v1700 = vsel %vm1686, %v1667, %v1060
        %v1701 = vsel %vm1686, %v1668, %v1062
        %v1702 = vsel %vm1686, %v1669, %v1064
        %v1703 = vsel %vm1686, %v1670, %v1066
        %v1704 = vsel %vm1686, %v1671, %v1068
        %v1705 = vsel %vm1686, %v1672, %v1070
        %v1706 = vsel %vm1686, %v1673, %v1072
        %v1707 = vsel %vm1686, %v1674, %v1074
        %v1708 = vsel %vm1686, %v1675, %v1076
        %v1709 = vsel %vm1686, %v1676, %v1078
        %v1710 = vsel %vm1686, %v1677, %v1080
        %v1711 = vsel %vm1686, %v1678, %v1082
        %v1712 = vsel %vm1686, %v1679, %v1084
        %v1713 = vsel %vm1686, %v1680, %v1086
        %v1714 = vsel %vm1686, %v1681, %v1088
        %v1715 = vsel %vm1686, %v1682, %v1090
        %v1716 = vsel %vm1686, %v1683, %v1092
        %v1717 = vsel %vm1686, %v1684, %v1094
        %v1718 = vsel %vm1686, %v1685, %v1096
        %vm1719 = vcmask 97280
        %v1720 = vsel %vm1719, %v1687, %v1136
        %v1721 = vsel %vm1719, %v1688, %v1138
        %v1722 = vsel %vm1719, %v1689, %v1140
        %v1723 = vsel %vm1719, %v1690, %v1142
        %v1724 = vsel %vm1719, %v1691, %v1144
        %v1725 = vsel %vm1719, %v1692, %v1146
        %v1726 = vsel %vm1719, %v1693, %v1148
        %v1727 = vsel %vm1719, %v1694, %v1150
        %v1728 = vsel %vm1719, %v1695, %v1152
        %v1729 = vsel %vm1719, %v1696, %v1154
        %v1730 = vsel %vm1719, %v1697, %v1156
        %v1731 = vsel %vm1719, %v1698, %v1158
        %v1732 = vsel %vm1719, %v1699, %v1160
        %v1733 = vsel %vm1719, %v1700, %v1162
        %v1734 = vsel %vm1719, %v1701, %v1164
        %v1735 = vsel %vm1719, %v1702, %v1166
        %v1736 = vsel %vm1719, %v1703, %v1168
        %v1737 = vsel %vm1719, %v1704, %v1170
        %v1738 = vsel %vm1719, %v1705, %v1172
        %v1739 = vsel %vm1719, %v1706, %v1174
        %v1740 = vsel %vm1719, %v1707, %v1176
        %v1741 = vsel %vm1719, %v1708, %v1178
        %v1742 = vsel %vm1719, %v1709, %v1180
        %v1743 = vsel %vm1719, %v1710, %v1182
        %v1744 = vsel %vm1719, %v1711, %v1184
        %v1745 = vsel %vm1719, %v1712, %v1186
        %v1746 = vsel %vm1719, %v1713, %v1188
        %v1747 = vsel %vm1719, %v1714, %v1190
        %v1748 = vsel %vm1719, %v1715, %v1192
        %v1749 = vsel %vm1719, %v1716, %v1194
        %v1750 = vsel %vm1719, %v1717, %v1196
        %v1751 = vsel %vm1719, %v1718, %v1198
        %vm1752 = vcmask 121856
        %v1753 = vsel %vm1752, %v1720, %v1237
        %v1754 = vsel %vm1752, %v1721, %v1239
        %v1755 = vsel %vm1752, %v1722, %v1241
        %v1756 = vsel %vm1752, %v1723, %v1243
        %v1757 = vsel %vm1752, %v1724, %v1245
        %v1758 = vsel %vm1752, %v1725, %v1247
        %v1759 = vsel %vm1752, %v1726, %v1249
        %v1760 = vsel %vm1752, %v1727, %v1251
        %v1761 = vsel %vm1752, %v1728, %v1253
        %v1762 = vsel %vm1752, %v1729, %v1255
        %v1763 = vsel %vm1752, %v1730, %v1257
        %v1764 = vsel %vm1752, %v1731, %v1259
        %v1765 = vsel %vm1752, %v1732, %v1261
        %v1766 = vsel %vm1752, %v1733, %v1263
        %v1767 = vsel %vm1752, %v1734, %v1265
        %v1768 = vsel %vm1752, %v1735, %v1267
        %v1769 = vsel %vm1752, %v1736, %v1269
        %v1770 = vsel %vm1752, %v1737, %v1271
        %v1771 = vsel %vm1752, %v1738, %v1273
        %v1772 = vsel %vm1752, %v1739, %v1275
        %v1773 = vsel %vm1752, %v1740, %v1277
        %v1774 = vsel %vm1752, %v1741, %v1279
        %v1775 = vsel %vm1752, %v1742, %v1281
        %v1776 = vsel %vm1752, %v1743, %v1283
        %v1777 = vsel %vm1752, %v1744, %v1285
        %v1778 = vsel %vm1752, %v1745, %v1287
        %v1779 = vsel %vm1752, %v1746, %v1289
        %v1780 = vsel %vm1752, %v1747, %v1291
        %v1781 = vsel %vm1752, %v1748, %v1293
        %v1782 = vsel %vm1752, %v1749, %v1295
        %v1783 = vsel %vm1752, %v1750, %v1297
        %v1784 = vsel %vm1752, %v1751, %v1299
        %vm1785 = vcmask 146432
        %v1786 = vsel %vm1785, %v1753, %v1333
        %v1787 = vsel %vm1785, %v1754, %v1335
        %v1788 = vsel %vm1785, %v1755, %v1337
        %v1789 = vsel %vm1785, %v1756, %v1339
        %v1790 = vsel %vm1785, %v1757, %v1341
        %v1791 = vsel %vm1785, %v1758, %v1343
        %v1792 = vsel %vm1785, %v1759, %v1345
        %v1793 = vsel %vm1785, %v1760, %v1347
        %v1794 = vsel %vm1785, %v1761, %v1349
        %v1795 = vsel %vm1785, %v1762, %v1351
        %v1796 = vsel %vm1785, %v1763, %v1353
        %v1797 = vsel %vm1785, %v1764, %v1355
        %v1798 = vsel %vm1785, %v1765, %v1357
        %v1799 = vsel %vm1785, %v1766, %v1359
        %v1800 = vsel %vm1785, %v1767, %v1361
        %v1801 = vsel %vm1785, %v1768, %v1363
        %v1802 = vsel %vm1785, %v1769, %v1365
        %v1803 = vsel %vm1785, %v1770, %v1367
        %v1804 = vsel %vm1785, %v1771, %v1369
        %v1805 = vsel %vm1785, %v1772, %v1371
        %v1806 = vsel %vm1785, %v1773, %v1373
        %v1807 = vsel %vm1785, %v1774, %v1375
        %v1808 = vsel %vm1785, %v1775, %v1377
        %v1809 = vsel %vm1785, %v1776, %v1379
        %v1810 = vsel %vm1785, %v1777, %v1381
        %v1811 = vsel %vm1785, %v1778, %v1383
        %v1812 = vsel %vm1785, %v1779, %v1385
        %v1813 = vsel %vm1785, %v1780, %v1387
        %v1814 = vsel %vm1785, %v1781, %v1389
        %v1815 = vsel %vm1785, %v1782, %v1391
        %v1816 = vsel %vm1785, %v1783, %v1393
        %v1817 = vsel %vm1785, %v1784, %v1395
        %vm1818 = vcmask 171008
        %v1819 = vsel %vm1818, %v1786, %v1429
        %v1820 = vsel %vm1818, %v1787, %v1431
        %v1821 = vsel %vm1818, %v1788, %v1433
        %v1822 = vsel %vm1818, %v1789, %v1435
        %v1823 = vsel %vm1818, %v1790, %v1437
        %v1824 = vsel %vm1818, %v1791, %v1439
        %v1825 = vsel %vm1818, %v1792, %v1441
        %v1826 = vsel %vm1818, %v1793, %v1443
        %v1827 = vsel %vm1818, %v1794, %v1445
        %v1828 = vsel %vm1818, %v1795, %v1447
        %v1829 = vsel %vm1818, %v1796, %v1449
        %v1830 = vsel %vm1818, %v1797, %v1451
        %v1831 = vsel %vm1818, %v1798, %v1453
        %v1832 = vsel %vm1818, %v1799, %v1455
        %v1833 = vsel %vm1818, %v1800, %v1457
        %v1834 = vsel %vm1818, %v1801, %v1459
        %v1835 = vsel %vm1818, %v1802, %v1461
        %v1836 = vsel %vm1818, %v1803, %v1463
        %v1837 = vsel %vm1818, %v1804, %v1465
        %v1838 = vsel %vm1818, %v1805, %v1467
        %v1839 = vsel %vm1818, %v1806, %v1469
        %v1840 = vsel %vm1818, %v1807, %v1471
        %v1841 = vsel %vm1818, %v1808, %v1473
        %v1842 = vsel %vm1818, %v1809, %v1475
        %v1843 = vsel %vm1818, %v1810, %v1477
        %v1844 = vsel %vm1818, %v1811, %v1479
        %v1845 = vsel %vm1818, %v1812, %v1481
        %v1846 = vsel %vm1818, %v1813, %v1483
        %v1847 = vsel %vm1818, %v1814, %v1485
        %v1848 = vsel %vm1818, %v1815, %v1487
        %v1849 = vsel %vm1818, %v1816, %v1489
        %v1850 = vsel %vm1818, %v1817, %v1491
        %vm1851 = vcmask 195584
        %v1852 = vsel %vm1851, %v1819, %v1525
        %v1853 = vsel %vm1851, %v1820, %v1527
        %v1854 = vsel %vm1851, %v1821, %v1529
        %v1855 = vsel %vm1851, %v1822, %v1531
        %v1856 = vsel %vm1851, %v1823, %v1533
        %v1857 = vsel %vm1851, %v1824, %v1535
        %v1858 = vsel %vm1851, %v1825, %v1537
        %v1859 = vsel %vm1851, %v1826, %v1539
        %v1860 = vsel %vm1851, %v1827, %v1541
        %v1861 = vsel %vm1851, %v1828, %v1543
        %v1862 = vsel %vm1851, %v1829, %v1545
        %v1863 = vsel %vm1851, %v1830, %v1547
        %v1864 = vsel %vm1851, %v1831, %v1549
        %v1865 = vsel %vm1851, %v1832, %v1551
        %v1866 = vsel %vm1851, %v1833, %v1553
        %v1867 = vsel %vm1851, %v1834, %v1555
        %v1868 = vsel %vm1851, %v1835, %v1557
        %v1869 = vsel %vm1851, %v1836, %v1559
        %v1870 = vsel %vm1851, %v1837, %v1561
        %v1871 = vsel %vm1851, %v1838, %v1563
        %v1872 = vsel %vm1851, %v1839, %v1565
        %v1873 = vsel %vm1851, %v1840, %v1567
        %v1874 = vsel %vm1851, %v1841, %v1569
        %v1875 = vsel %vm1851, %v1842, %v1571
        %v1876 = vsel %vm1851, %v1843, %v1573
        %v1877 = vsel %vm1851, %v1844, %v1575
        %v1878 = vsel %vm1851, %v1845, %v1577
        %v1879 = vsel %vm1851, %v1846, %v1579
        %v1880 = vsel %vm1851, %v1847, %v1581
        %v1881 = vsel %vm1851, %v1848, %v1583
        %v1882 = vsel %vm1851, %v1849, %v1585
        %v1883 = vsel %vm1851, %v1850, %v1587
        %v1884 = vpack.c.bf16 %v1853, %v1852
        %v1885 = vpack.c.bf16 %v1855, %v1854
        %v1886 = vpack.c.bf16 %v1857, %v1856
        %v1887 = vpack.c.bf16 %v1859, %v1858
        %v1888 = vpack.c.bf16 %v1861, %v1860
        %v1889 = vpack.c.bf16 %v1863, %v1862
        %v1890 = vpack.c.bf16 %v1865, %v1864
        %v1891 = vpack.c.bf16 %v1867, %v1866
        %v1892 = vpack.c.bf16 %v1869, %v1868
        %v1893 = vpack.c.bf16 %v1871, %v1870
        %v1894 = vpack.c.bf16 %v1873, %v1872
        %v1895 = vpack.c.bf16 %v1875, %v1874
        %v1896 = vpack.c.bf16 %v1877, %v1876
        %v1897 = vpack.c.bf16 %v1879, %v1878
        %v1898 = vpack.c.bf16 %v1881, %v1880
        %v1899 = vpack.c.bf16 %v1883, %v1882
        %v1900 = vld [vmem:[%s1] sm:$0xf]
        %v1901 = vld [vmem:[%s1 + $0x4] sm:$0xf]
        %v1902 = vld [vmem:[%s1 + $0x8] sm:$0xf]
        %v1903 = vld [vmem:[%s1 + $0xc] sm:$0x3]
        %v1904 = vld [vmem:[%s2] sm:$0x1]
        %v1906 = vlaneseq
        %v1907 = vshrl.u32 %v1906, 7
        %v1908 = vsub.s32 0, %v1907
        %v1909 = vrot.slane %v1904, %v1908
        %v1915 = vunpack.c.l.b16 %v1900
        %v1916 = vunpack.c.l.b16 %v1901
        %v1917 = vunpack.c.l.b16 %v1902
        %v1918 = vunpack.c.l.b16 %v1903
        %v1919 = vpack.c.b16 %v1916, %v1915
        %v1920 = vpack.c.b16 %v1918, %v1917
        %vm1922 = vcmask 220160
        %v1924 = vsel %vm1922, %v1884, 0
        %v1927 = vsel %vm1922, %v1885, 0
        %v1930 = vsel %vm1922, %v1886, 0
        %v1933 = vsel %vm1922, %v1887, 0
        %v1936 = vsel %vm1922, %v1888, 0
        %v1939 = vsel %vm1922, %v1889, 0
        %v1942 = vsel %vm1922, %v1890, 0
        %v1945 = vsel %vm1922, %v1891, 0
        %v1948 = vsel %vm1922, %v1892, 0
        %v1951 = vsel %vm1922, %v1893, 0
        %v1954 = vsel %vm1922, %v1894, 0
        %v1957 = vsel %vm1922, %v1895, 0
        %v1960 = vsel %vm1922, %v1896, 0
        %v1963 = vsel %vm1922, %v1897, 0
        %v1966 = vsel %vm1922, %v1898, 0
        %v1969 = vsel %vm1922, %v1899, 0
        %vm1971 = vcmask 1044480
        %v1972 = vsel %vm1971, 4294967295, 65535
        %v1973 = vsel %vm855, %v1972, 0
        %v1975 = vand.u32 %v1920, %v1973
        %1977 = vmatprep.subr.bf16.mxu0 0
        %1978 = vmatpush1.bf16.msra.mxu0 0
        %1979 = vmatprep.subr.bf16.mxu0 0
        %1980 = vmatpush1.bf16.msra.mxu0 0
        %1981 = vmatprep.subr.bf16.mxu0 0
        %1982 = vmatpush1.bf16.msra.mxu0 0
        %1983 = vmatprep.subr.bf16.mxu0 0
        %1984 = vmatpush1.bf16.msra.mxu0 0
        %1985 = vmatprep.subr.bf16.mxu0 0
        %1986 = vmatpush1.bf16.msra.mxu0 0
        %1987 = vmatprep.subr.bf16.mxu0 0
        %1988 = vmatpush1.bf16.msra.mxu0 0
        %1989 = vmatprep.subr.bf16.mxu0 0
        %1990 = vmatpush1.bf16.msra.mxu0 %v1975
        %1991 = vmatprep.subr.bf16.mxu0 0
        %1992 = vmatpush1.bf16.msra.mxu0 %v1919
        %1993 = vmatprep.subr.bf16.mxu0 0
        %1994 = vmatpush2.bf16.msra.mxu0 0
        %1995 = vmatprep.subr.bf16.mxu0 0
        %1996 = vmatpush2.bf16.msra.mxu0 0
        %1997 = vmatprep.subr.bf16.mxu0 0
        %1998 = vmatpush2.bf16.msra.mxu0 0
        %1999 = vmatprep.subr.bf16.mxu0 0
        %2000 = vmatpush2.bf16.msra.mxu0 0
        %2001 = vmatprep.subr.bf16.mxu0 0
        %2002 = vmatpush2.bf16.msra.mxu0 0
        %2003 = vmatprep.subr.bf16.mxu0 0
        %2004 = vmatpush2.bf16.msra.mxu0 0
        %2005 = vmatprep.subr.bf16.mxu0 0
        %2006 = vmatpush2.bf16.msra.mxu0 0
        %2007 = vmatprep.subr.bf16.mxu0 0
        %2008 = vmatpush2.bf16.msra.mxu0 0
        %2009 = vmatprep.mubr.bf16.mxu0 0
        %2010 = vmatmul.mubr.bf16.gmra.mxu0 %v1924
        %v2011 = vpop.f32.mrf.mxu0
        %v2012 = vadd.f32 %v1909, %v2011
        %v2013 = vpop.f32.mrf.mxu0
        %v2014 = vpop.f32.mrf.mxu0
        %v2015 = vadd.f32 %v1909, %v2014
        %v2016 = vpop.f32.mrf.mxu0
        %2017 = vmatprep.mubr.bf16.mxu0 0
        %2018 = vmatmul.mubr.bf16.gmra.mxu0 %v1927
        %v2019 = vpop.f32.mrf.mxu0
        %v2020 = vpop.f32.mrf.mxu0
        %v2021 = vpop.f32.mrf.mxu0
        %v2022 = vpop.f32.mrf.mxu0
        %2023 = vmatprep.mubr.bf16.mxu0 0
        %2024 = vmatmul.mubr.bf16.gmra.mxu0 %v1930
        %v2025 = vpop.f32.mrf.mxu0
        %v2026 = vadd.f32 %v1909, %v2025
        %v2027 = vpop.f32.mrf.mxu0
        %v2028 = vpop.f32.mrf.mxu0
        %v2029 = vadd.f32 %v1909, %v2028
        %v2030 = vpop.f32.mrf.mxu0
        %2031 = vmatprep.mubr.bf16.mxu0 0
        %2032 = vmatmul.mubr.bf16.gmra.mxu0 %v1933
        %v2033 = vpop.f32.mrf.mxu0
        %v2034 = vpop.f32.mrf.mxu0
        %v2035 = vpop.f32.mrf.mxu0
        %v2036 = vpop.f32.mrf.mxu0
        %2037 = vmatprep.mubr.bf16.mxu0 0
        %2038 = vmatmul.mubr.bf16.gmra.mxu0 %v1936
        %v2039 = vpop.f32.mrf.mxu0
        %v2040 = vadd.f32 %v1909, %v2039
        %v2041 = vpop.f32.mrf.mxu0
        %v2042 = vpop.f32.mrf.mxu0
        %v2043 = vadd.f32 %v1909, %v2042
        %v2044 = vpop.f32.mrf.mxu0
        %2045 = vmatprep.mubr.bf16.mxu0 0
        %2046 = vmatmul.mubr.bf16.gmra.mxu0 %v1939
        %v2047 = vpop.f32.mrf.mxu0
        %v2048 = vpop.f32.mrf.mxu0
        %v2049 = vpop.f32.mrf.mxu0
        %v2050 = vpop.f32.mrf.mxu0
        %2051 = vmatprep.mubr.bf16.mxu0 0
        %2052 = vmatmul.mubr.bf16.gmra.mxu0 %v1942
        %v2053 = vpop.f32.mrf.mxu0
        %v2054 = vadd.f32 %v1909, %v2053
        %v2055 = vpop.f32.mrf.mxu0
        %v2056 = vpop.f32.mrf.mxu0
        %v2057 = vadd.f32 %v1909, %v2056
        %v2058 = vpop.f32.mrf.mxu0
        %2059 = vmatprep.mubr.bf16.mxu0 0
        %2060 = vmatmul.mubr.bf16.gmra.mxu0 %v1945
        %v2061 = vpop.f32.mrf.mxu0
        %v2062 = vpop.f32.mrf.mxu0
        %v2063 = vpop.f32.mrf.mxu0
        %v2064 = vpop.f32.mrf.mxu0
        %2065 = vmatprep.mubr.bf16.mxu0 0
        %2066 = vmatmul.mubr.bf16.gmra.mxu0 %v1948
        %v2067 = vpop.f32.mrf.mxu0
        %v2068 = vadd.f32 %v1909, %v2067
        %v2069 = vpop.f32.mrf.mxu0
        %v2070 = vpop.f32.mrf.mxu0
        %v2071 = vadd.f32 %v1909, %v2070
        %v2072 = vpop.f32.mrf.mxu0
        %2073 = vmatprep.mubr.bf16.mxu0 0
        %2074 = vmatmul.mubr.bf16.gmra.mxu0 %v1951
        %v2075 = vpop.f32.mrf.mxu0
        %v2076 = vpop.f32.mrf.mxu0
        %v2077 = vpop.f32.mrf.mxu0
        %v2078 = vpop.f32.mrf.mxu0
        %2079 = vmatprep.mubr.bf16.mxu0 0
        %2080 = vmatmul.mubr.bf16.gmra.mxu0 %v1954
        %v2081 = vpop.f32.mrf.mxu0
        %v2082 = vadd.f32 %v1909, %v2081
        %v2083 = vpop.f32.mrf.mxu0
        %v2084 = vpop.f32.mrf.mxu0
        %v2085 = vadd.f32 %v1909, %v2084
        %v2086 = vpop.f32.mrf.mxu0
        %2087 = vmatprep.mubr.bf16.mxu0 0
        %2088 = vmatmul.mubr.bf16.gmra.mxu0 %v1957
        %v2089 = vpop.f32.mrf.mxu0
        %v2090 = vpop.f32.mrf.mxu0
        %v2091 = vpop.f32.mrf.mxu0
        %v2092 = vpop.f32.mrf.mxu0
        %2093 = vmatprep.mubr.bf16.mxu0 0
        %2094 = vmatmul.mubr.bf16.gmra.mxu0 %v1960
        %v2095 = vpop.f32.mrf.mxu0
        %v2096 = vadd.f32 %v1909, %v2095
        %v2097 = vpop.f32.mrf.mxu0
        %v2098 = vpop.f32.mrf.mxu0
        %v2099 = vadd.f32 %v1909, %v2098
        %v2100 = vpop.f32.mrf.mxu0
        %2101 = vmatprep.mubr.bf16.mxu0 0
        %2102 = vmatmul.mubr.bf16.gmra.mxu0 %v1963
        %v2103 = vpop.f32.mrf.mxu0
        %v2104 = vpop.f32.mrf.mxu0
        %v2105 = vpop.f32.mrf.mxu0
        %v2106 = vpop.f32.mrf.mxu0
        %2107 = vmatprep.mubr.bf16.mxu0 0
        %2108 = vmatmul.mubr.bf16.gmra.mxu0 %v1966
        %v2109 = vpop.f32.mrf.mxu0
        %v2110 = vadd.f32 %v1909, %v2109
        %v2111 = vpop.f32.mrf.mxu0
        %v2112 = vpop.f32.mrf.mxu0
        %v2113 = vadd.f32 %v1909, %v2112
        %v2114 = vpop.f32.mrf.mxu0
        %2115 = vmatprep.mubr.bf16.mxu0 0
        %2116 = vmatmul.mubr.bf16.gmra.mxu0 %v1969
        %v2117 = vpop.f32.mrf.mxu0
        %v2118 = vpop.f32.mrf.mxu0
        %v2119 = vpop.f32.mrf.mxu0
        %v2120 = vpop.f32.mrf.mxu0
        %2121 = vdwg.mxu0
        %v2122 = vmax.f32 %v2012, 0.0
        %v2123 = vmax.f32 %v2015, 0.0
        %v2124 = vmax.f32 %v2026, 0.0
        %v2125 = vmax.f32 %v2029, 0.0
        %v2126 = vmax.f32 %v2040, 0.0
        %v2127 = vmax.f32 %v2043, 0.0
        %v2128 = vmax.f32 %v2054, 0.0
        %v2129 = vmax.f32 %v2057, 0.0
        %v2130 = vmax.f32 %v2068, 0.0
        %v2131 = vmax.f32 %v2071, 0.0
        %v2132 = vmax.f32 %v2082, 0.0
        %v2133 = vmax.f32 %v2085, 0.0
        %v2134 = vmax.f32 %v2096, 0.0
        %v2135 = vmax.f32 %v2099, 0.0
        %v2136 = vmax.f32 %v2110, 0.0
        %v2137 = vmax.f32 %v2113, 0.0
        %v2154 = vcombine.high %v2122, %v2122
        %v2156 = vunpack.c.l.s4 1983009808
        %v2157 = vunpack.c.0.s8 %v2156
        %v2158 = vlaneseq
        %v2159 = vshrl.u32 %v2158, 7
        %v2160 = vsub.s32 %v2157, %v2159
        %v2161 = vrot.slane %v2122, %v2160
        %v2163 = vunpack.c.l.s4 1983009808
        %v2164 = vunpack.c.0.s8 %v2163
        %v2165 = vlaneseq
        %v2166 = vshrl.u32 %v2165, 7
        %v2167 = vsub.s32 %v2164, %v2166
        %v2168 = vrot.slane %v2154, %v2167
        %v2169 = vcombine.high %v2161, %v2161
        %v2170 = vcombine.high %v2168, %v2168
        %v2171 = vcombine.high %v2123, %v2123
        %v2173 = vunpack.c.l.s4 1983009808
        %v2174 = vunpack.c.0.s8 %v2173
        %v2175 = vlaneseq
        %v2176 = vshrl.u32 %v2175, 7
        %v2177 = vsub.s32 %v2174, %v2176
        %v2178 = vrot.slane %v2123, %v2177
        %v2180 = vunpack.c.l.s4 1983009808
        %v2181 = vunpack.c.0.s8 %v2180
        %v2182 = vlaneseq
        %v2183 = vshrl.u32 %v2182, 7
        %v2184 = vsub.s32 %v2181, %v2183
        %v2185 = vrot.slane %v2171, %v2184
        %v2186 = vcombine.high %v2178, %v2178
        %v2187 = vcombine.high %v2185, %v2185
        %v2188 = vcombine.high %v2124, %v2124
        %v2190 = vunpack.c.l.s4 1983009808
        %v2191 = vunpack.c.0.s8 %v2190
        %v2192 = vlaneseq
        %v2193 = vshrl.u32 %v2192, 7
        %v2194 = vsub.s32 %v2191, %v2193
        %v2195 = vrot.slane %v2124, %v2194
        %v2197 = vunpack.c.l.s4 1983009808
        %v2198 = vunpack.c.0.s8 %v2197
        %v2199 = vlaneseq
        %v2200 = vshrl.u32 %v2199, 7
        %v2201 = vsub.s32 %v2198, %v2200
        %v2202 = vrot.slane %v2188, %v2201
        %v2203 = vcombine.high %v2195, %v2195
        %v2204 = vcombine.high %v2202, %v2202
        %v2205 = vcombine.high %v2125, %v2125
        %v2207 = vunpack.c.l.s4 1983009808
        %v2208 = vunpack.c.0.s8 %v2207
        %v2209 = vlaneseq
        %v2210 = vshrl.u32 %v2209, 7
        %v2211 = vsub.s32 %v2208, %v2210
        %v2212 = vrot.slane %v2125, %v2211
        %v2214 = vunpack.c.l.s4 1983009808
        %v2215 = vunpack.c.0.s8 %v2214
        %v2216 = vlaneseq
        %v2217 = vshrl.u32 %v2216, 7
        %v2218 = vsub.s32 %v2215, %v2217
        %v2219 = vrot.slane %v2205, %v2218
        %v2220 = vcombine.high %v2212, %v2212
        %v2221 = vcombine.high %v2219, %v2219
        %v2222 = vcombine.high %v2126, %v2126
        %v2224 = vunpack.c.l.s4 1983009808
        %v2225 = vunpack.c.0.s8 %v2224
        %v2226 = vlaneseq
        %v2227 = vshrl.u32 %v2226, 7
        %v2228 = vsub.s32 %v2225, %v2227
        %v2229 = vrot.slane %v2126, %v2228
        %v2231 = vunpack.c.l.s4 1983009808
        %v2232 = vunpack.c.0.s8 %v2231
        %v2233 = vlaneseq
        %v2234 = vshrl.u32 %v2233, 7
        %v2235 = vsub.s32 %v2232, %v2234
        %v2236 = vrot.slane %v2222, %v2235
        %v2237 = vcombine.high %v2229, %v2229
        %v2238 = vcombine.high %v2236, %v2236
        %v2239 = vcombine.high %v2127, %v2127
        %v2241 = vunpack.c.l.s4 1983009808
        %v2242 = vunpack.c.0.s8 %v2241
        %v2243 = vlaneseq
        %v2244 = vshrl.u32 %v2243, 7
        %v2245 = vsub.s32 %v2242, %v2244
        %v2246 = vrot.slane %v2127, %v2245
        %v2248 = vunpack.c.l.s4 1983009808
        %v2249 = vunpack.c.0.s8 %v2248
        %v2250 = vlaneseq
        %v2251 = vshrl.u32 %v2250, 7
        %v2252 = vsub.s32 %v2249, %v2251
        %v2253 = vrot.slane %v2239, %v2252
        %v2254 = vcombine.high %v2246, %v2246
        %v2255 = vcombine.high %v2253, %v2253
        %v2256 = vcombine.high %v2128, %v2128
        %v2258 = vunpack.c.l.s4 1983009808
        %v2259 = vunpack.c.0.s8 %v2258
        %v2260 = vlaneseq
        %v2261 = vshrl.u32 %v2260, 7
        %v2262 = vsub.s32 %v2259, %v2261
        %v2263 = vrot.slane %v2128, %v2262
        %v2265 = vunpack.c.l.s4 1983009808
        %v2266 = vunpack.c.0.s8 %v2265
        %v2267 = vlaneseq
        %v2268 = vshrl.u32 %v2267, 7
        %v2269 = vsub.s32 %v2266, %v2268
        %v2270 = vrot.slane %v2256, %v2269
        %v2271 = vcombine.high %v2263, %v2263
        %v2272 = vcombine.high %v2270, %v2270
        %v2273 = vcombine.high %v2129, %v2129
        %v2275 = vunpack.c.l.s4 1983009808
        %v2276 = vunpack.c.0.s8 %v2275
        %v2277 = vlaneseq
        %v2278 = vshrl.u32 %v2277, 7
        %v2279 = vsub.s32 %v2276, %v2278
        %v2280 = vrot.slane %v2129, %v2279
        %v2282 = vunpack.c.l.s4 1983009808
        %v2283 = vunpack.c.0.s8 %v2282
        %v2284 = vlaneseq
        %v2285 = vshrl.u32 %v2284, 7
        %v2286 = vsub.s32 %v2283, %v2285
        %v2287 = vrot.slane %v2273, %v2286
        %v2288 = vcombine.high %v2280, %v2280
        %v2289 = vcombine.high %v2287, %v2287
        %v2290 = vcombine.high %v2130, %v2130
        %v2292 = vunpack.c.l.s4 1983009808
        %v2293 = vunpack.c.0.s8 %v2292
        %v2294 = vlaneseq
        %v2295 = vshrl.u32 %v2294, 7
        %v2296 = vsub.s32 %v2293, %v2295
        %v2297 = vrot.slane %v2130, %v2296
        %v2299 = vunpack.c.l.s4 1983009808
        %v2300 = vunpack.c.0.s8 %v2299
        %v2301 = vlaneseq
        %v2302 = vshrl.u32 %v2301, 7
        %v2303 = vsub.s32 %v2300, %v2302
        %v2304 = vrot.slane %v2290, %v2303
        %v2305 = vcombine.high %v2297, %v2297
        %v2306 = vcombine.high %v2304, %v2304
        %v2307 = vcombine.high %v2131, %v2131
        %v2309 = vunpack.c.l.s4 1983009808
        %v2310 = vunpack.c.0.s8 %v2309
        %v2311 = vlaneseq
        %v2312 = vshrl.u32 %v2311, 7
        %v2313 = vsub.s32 %v2310, %v2312
        %v2314 = vrot.slane %v2131, %v2313
        %v2316 = vunpack.c.l.s4 1983009808
        %v2317 = vunpack.c.0.s8 %v2316
        %v2318 = vlaneseq
        %v2319 = vshrl.u32 %v2318, 7
        %v2320 = vsub.s32 %v2317, %v2319
        %v2321 = vrot.slane %v2307, %v2320
        %v2322 = vcombine.high %v2314, %v2314
        %v2323 = vcombine.high %v2321, %v2321
        %v2324 = vcombine.high %v2132, %v2132
        %v2326 = vunpack.c.l.s4 1983009808
        %v2327 = vunpack.c.0.s8 %v2326
        %v2328 = vlaneseq
        %v2329 = vshrl.u32 %v2328, 7
        %v2330 = vsub.s32 %v2327, %v2329
        %v2331 = vrot.slane %v2132, %v2330
        %v2333 = vunpack.c.l.s4 1983009808
        %v2334 = vunpack.c.0.s8 %v2333
        %v2335 = vlaneseq
        %v2336 = vshrl.u32 %v2335, 7
        %v2337 = vsub.s32 %v2334, %v2336
        %v2338 = vrot.slane %v2324, %v2337
        %v2339 = vcombine.high %v2331, %v2331
        %v2340 = vcombine.high %v2338, %v2338
        %v2341 = vcombine.high %v2133, %v2133
        %v2343 = vunpack.c.l.s4 1983009808
        %v2344 = vunpack.c.0.s8 %v2343
        %v2345 = vlaneseq
        %v2346 = vshrl.u32 %v2345, 7
        %v2347 = vsub.s32 %v2344, %v2346
        %v2348 = vrot.slane %v2133, %v2347
        %v2350 = vunpack.c.l.s4 1983009808
        %v2351 = vunpack.c.0.s8 %v2350
        %v2352 = vlaneseq
        %v2353 = vshrl.u32 %v2352, 7
        %v2354 = vsub.s32 %v2351, %v2353
        %v2355 = vrot.slane %v2341, %v2354
        %v2356 = vcombine.high %v2348, %v2348
        %v2357 = vcombine.high %v2355, %v2355
        %v2358 = vcombine.high %v2134, %v2134
        %v2360 = vunpack.c.l.s4 1983009808
        %v2361 = vunpack.c.0.s8 %v2360
        %v2362 = vlaneseq
        %v2363 = vshrl.u32 %v2362, 7
        %v2364 = vsub.s32 %v2361, %v2363
        %v2365 = vrot.slane %v2134, %v2364
        %v2367 = vunpack.c.l.s4 1983009808
        %v2368 = vunpack.c.0.s8 %v2367
        %v2369 = vlaneseq
        %v2370 = vshrl.u32 %v2369, 7
        %v2371 = vsub.s32 %v2368, %v2370
        %v2372 = vrot.slane %v2358, %v2371
        %v2373 = vcombine.high %v2365, %v2365
        %v2374 = vcombine.high %v2372, %v2372
        %v2375 = vcombine.high %v2135, %v2135
        %v2377 = vunpack.c.l.s4 1983009808
        %v2378 = vunpack.c.0.s8 %v2377
        %v2379 = vlaneseq
        %v2380 = vshrl.u32 %v2379, 7
        %v2381 = vsub.s32 %v2378, %v2380
        %v2382 = vrot.slane %v2135, %v2381
        %v2384 = vunpack.c.l.s4 1983009808
        %v2385 = vunpack.c.0.s8 %v2384
        %v2386 = vlaneseq
        %v2387 = vshrl.u32 %v2386, 7
        %v2388 = vsub.s32 %v2385, %v2387
        %v2389 = vrot.slane %v2375, %v2388
        %v2390 = vcombine.high %v2382, %v2382
        %v2391 = vcombine.high %v2389, %v2389
        %v2392 = vcombine.high %v2136, %v2136
        %v2394 = vunpack.c.l.s4 1983009808
        %v2395 = vunpack.c.0.s8 %v2394
        %v2396 = vlaneseq
        %v2397 = vshrl.u32 %v2396, 7
        %v2398 = vsub.s32 %v2395, %v2397
        %v2399 = vrot.slane %v2136, %v2398
        %v2401 = vunpack.c.l.s4 1983009808
        %v2402 = vunpack.c.0.s8 %v2401
        %v2403 = vlaneseq
        %v2404 = vshrl.u32 %v2403, 7
        %v2405 = vsub.s32 %v2402, %v2404
        %v2406 = vrot.slane %v2392, %v2405
        %v2407 = vcombine.high %v2399, %v2399
        %v2408 = vcombine.high %v2406, %v2406
        %v2409 = vcombine.high %v2137, %v2137
        %v2411 = vunpack.c.l.s4 1983009808
        %v2412 = vunpack.c.0.s8 %v2411
        %v2413 = vlaneseq
        %v2414 = vshrl.u32 %v2413, 7
        %v2415 = vsub.s32 %v2412, %v2414
        %v2416 = vrot.slane %v2137, %v2415
        %v2418 = vunpack.c.l.s4 1983009808
        %v2419 = vunpack.c.0.s8 %v2418
        %v2420 = vlaneseq
        %v2421 = vshrl.u32 %v2420, 7
        %v2422 = vsub.s32 %v2419, %v2421
        %v2423 = vrot.slane %v2409, %v2422
        %v2424 = vcombine.high %v2416, %v2416
        %v2425 = vcombine.high %v2423, %v2423
        %v2426 = vlaneseq
        %v2427 = vshrl.u32 %v2426, 7
        %v2428 = vsub.s32 0, %v2427
        %v2429 = vrot.slane %v2161, %v2428
        %v2430 = vlaneseq
        %v2431 = vshrl.u32 %v2430, 7
        %v2432 = vsub.s32 0, %v2431
        %v2433 = vrot.slane %v2169, %v2432
        %v2434 = vlaneseq
        %v2435 = vshrl.u32 %v2434, 7
        %v2436 = vsub.s32 0, %v2435
        %v2437 = vrot.slane %v2168, %v2436
        %v2438 = vlaneseq
        %v2439 = vshrl.u32 %v2438, 7
        %v2440 = vsub.s32 0, %v2439
        %v2441 = vrot.slane %v2170, %v2440
        %v2442 = vlaneseq
        %v2443 = vshrl.u32 %v2442, 7
        %v2444 = vsub.s32 0, %v2443
        %v2445 = vrot.slane %v2178, %v2444
        %v2446 = vlaneseq
        %v2447 = vshrl.u32 %v2446, 7
        %v2448 = vsub.s32 0, %v2447
        %v2449 = vrot.slane %v2186, %v2448
        %v2450 = vlaneseq
        %v2451 = vshrl.u32 %v2450, 7
        %v2452 = vsub.s32 0, %v2451
        %v2453 = vrot.slane %v2185, %v2452
        %v2454 = vlaneseq
        %v2455 = vshrl.u32 %v2454, 7
        %v2456 = vsub.s32 0, %v2455
        %v2457 = vrot.slane %v2187, %v2456
        %v2458 = vlaneseq
        %v2459 = vshrl.u32 %v2458, 7
        %v2460 = vsub.s32 0, %v2459
        %v2461 = vrot.slane %v2195, %v2460
        %v2462 = vlaneseq
        %v2463 = vshrl.u32 %v2462, 7
        %v2464 = vsub.s32 0, %v2463
        %v2465 = vrot.slane %v2203, %v2464
        %v2466 = vlaneseq
        %v2467 = vshrl.u32 %v2466, 7
        %v2468 = vsub.s32 0, %v2467
        %v2469 = vrot.slane %v2202, %v2468
        %v2470 = vlaneseq
        %v2471 = vshrl.u32 %v2470, 7
        %v2472 = vsub.s32 0, %v2471
        %v2473 = vrot.slane %v2204, %v2472
        %v2474 = vlaneseq
        %v2475 = vshrl.u32 %v2474, 7
        %v2476 = vsub.s32 0, %v2475
        %v2477 = vrot.slane %v2212, %v2476
        %v2478 = vlaneseq
        %v2479 = vshrl.u32 %v2478, 7
        %v2480 = vsub.s32 0, %v2479
        %v2481 = vrot.slane %v2220, %v2480
        %v2482 = vlaneseq
        %v2483 = vshrl.u32 %v2482, 7
        %v2484 = vsub.s32 0, %v2483
        %v2485 = vrot.slane %v2219, %v2484
        %v2486 = vlaneseq
        %v2487 = vshrl.u32 %v2486, 7
        %v2488 = vsub.s32 0, %v2487
        %v2489 = vrot.slane %v2221, %v2488
        %v2490 = vlaneseq
        %v2491 = vshrl.u32 %v2490, 7
        %v2492 = vsub.s32 0, %v2491
        %v2493 = vrot.slane %v2229, %v2492
        %v2494 = vlaneseq
        %v2495 = vshrl.u32 %v2494, 7
        %v2496 = vsub.s32 0, %v2495
        %v2497 = vrot.slane %v2237, %v2496
        %v2498 = vlaneseq
        %v2499 = vshrl.u32 %v2498, 7
        %v2500 = vsub.s32 0, %v2499
        %v2501 = vrot.slane %v2236, %v2500
        %v2502 = vlaneseq
        %v2503 = vshrl.u32 %v2502, 7
        %v2504 = vsub.s32 0, %v2503
        %v2505 = vrot.slane %v2238, %v2504
        %v2506 = vlaneseq
        %v2507 = vshrl.u32 %v2506, 7
        %v2508 = vsub.s32 0, %v2507
        %v2509 = vrot.slane %v2246, %v2508
        %v2510 = vlaneseq
        %v2511 = vshrl.u32 %v2510, 7
        %v2512 = vsub.s32 0, %v2511
        %v2513 = vrot.slane %v2254, %v2512
        %v2514 = vlaneseq
        %v2515 = vshrl.u32 %v2514, 7
        %v2516 = vsub.s32 0, %v2515
        %v2517 = vrot.slane %v2253, %v2516
        %v2518 = vlaneseq
        %v2519 = vshrl.u32 %v2518, 7
        %v2520 = vsub.s32 0, %v2519
        %v2521 = vrot.slane %v2255, %v2520
        %v2522 = vlaneseq
        %v2523 = vshrl.u32 %v2522, 7
        %v2524 = vsub.s32 0, %v2523
        %v2525 = vrot.slane %v2263, %v2524
        %v2526 = vlaneseq
        %v2527 = vshrl.u32 %v2526, 7
        %v2528 = vsub.s32 0, %v2527
        %v2529 = vrot.slane %v2271, %v2528
        %v2530 = vlaneseq
        %v2531 = vshrl.u32 %v2530, 7
        %v2532 = vsub.s32 0, %v2531
        %v2533 = vrot.slane %v2270, %v2532
        %v2534 = vlaneseq
        %v2535 = vshrl.u32 %v2534, 7
        %v2536 = vsub.s32 0, %v2535
        %v2537 = vrot.slane %v2272, %v2536
        %v2538 = vlaneseq
        %v2539 = vshrl.u32 %v2538, 7
        %v2540 = vsub.s32 0, %v2539
        %v2541 = vrot.slane %v2280, %v2540
        %v2542 = vlaneseq
        %v2543 = vshrl.u32 %v2542, 7
        %v2544 = vsub.s32 0, %v2543
        %v2545 = vrot.slane %v2288, %v2544
        %v2546 = vlaneseq
        %v2547 = vshrl.u32 %v2546, 7
        %v2548 = vsub.s32 0, %v2547
        %v2549 = vrot.slane %v2287, %v2548
        %v2550 = vlaneseq
        %v2551 = vshrl.u32 %v2550, 7
        %v2552 = vsub.s32 0, %v2551
        %v2553 = vrot.slane %v2289, %v2552
        %v2554 = vlaneseq
        %v2555 = vshrl.u32 %v2554, 7
        %v2556 = vsub.s32 0, %v2555
        %v2557 = vrot.slane %v2297, %v2556
        %v2558 = vlaneseq
        %v2559 = vshrl.u32 %v2558, 7
        %v2560 = vsub.s32 0, %v2559
        %v2561 = vrot.slane %v2305, %v2560
        %v2562 = vlaneseq
        %v2563 = vshrl.u32 %v2562, 7
        %v2564 = vsub.s32 0, %v2563
        %v2565 = vrot.slane %v2304, %v2564
        %v2566 = vlaneseq
        %v2567 = vshrl.u32 %v2566, 7
        %v2568 = vsub.s32 0, %v2567
        %v2569 = vrot.slane %v2306, %v2568
        %v2570 = vlaneseq
        %v2571 = vshrl.u32 %v2570, 7
        %v2572 = vsub.s32 0, %v2571
        %v2573 = vrot.slane %v2314, %v2572
        %v2574 = vlaneseq
        %v2575 = vshrl.u32 %v2574, 7
        %v2576 = vsub.s32 0, %v2575
        %v2577 = vrot.slane %v2322, %v2576
        %v2578 = vlaneseq
        %v2579 = vshrl.u32 %v2578, 7
        %v2580 = vsub.s32 0, %v2579
        %v2581 = vrot.slane %v2321, %v2580
        %v2582 = vlaneseq
        %v2583 = vshrl.u32 %v2582, 7
        %v2584 = vsub.s32 0, %v2583
        %v2585 = vrot.slane %v2323, %v2584
        %v2586 = vlaneseq
        %v2587 = vshrl.u32 %v2586, 7
        %v2588 = vsub.s32 0, %v2587
        %v2589 = vrot.slane %v2331, %v2588
        %v2590 = vlaneseq
        %v2591 = vshrl.u32 %v2590, 7
        %v2592 = vsub.s32 0, %v2591
        %v2593 = vrot.slane %v2339, %v2592
        %v2594 = vlaneseq
        %v2595 = vshrl.u32 %v2594, 7
        %v2596 = vsub.s32 0, %v2595
        %v2597 = vrot.slane %v2338, %v2596
        %v2598 = vlaneseq
        %v2599 = vshrl.u32 %v2598, 7
        %v2600 = vsub.s32 0, %v2599
        %v2601 = vrot.slane %v2340, %v2600
        %v2602 = vlaneseq
        %v2603 = vshrl.u32 %v2602, 7
        %v2604 = vsub.s32 0, %v2603
        %v2605 = vrot.slane %v2348, %v2604
        %v2606 = vlaneseq
        %v2607 = vshrl.u32 %v2606, 7
        %v2608 = vsub.s32 0, %v2607
        %v2609 = vrot.slane %v2356, %v2608
        %v2610 = vlaneseq
        %v2611 = vshrl.u32 %v2610, 7
        %v2612 = vsub.s32 0, %v2611
        %v2613 = vrot.slane %v2355, %v2612
        %v2614 = vlaneseq
        %v2615 = vshrl.u32 %v2614, 7
        %v2616 = vsub.s32 0, %v2615
        %v2617 = vrot.slane %v2357, %v2616
        %v2618 = vlaneseq
        %v2619 = vshrl.u32 %v2618, 7
        %v2620 = vsub.s32 0, %v2619
        %v2621 = vrot.slane %v2365, %v2620
        %v2622 = vlaneseq
        %v2623 = vshrl.u32 %v2622, 7
        %v2624 = vsub.s32 0, %v2623
        %v2625 = vrot.slane %v2373, %v2624
        %v2626 = vlaneseq
        %v2627 = vshrl.u32 %v2626, 7
        %v2628 = vsub.s32 0, %v2627
        %v2629 = vrot.slane %v2372, %v2628
        %v2630 = vlaneseq
        %v2631 = vshrl.u32 %v2630, 7
        %v2632 = vsub.s32 0, %v2631
        %v2633 = vrot.slane %v2374, %v2632
        %v2634 = vlaneseq
        %v2635 = vshrl.u32 %v2634, 7
        %v2636 = vsub.s32 0, %v2635
        %v2637 = vrot.slane %v2382, %v2636
        %v2638 = vlaneseq
        %v2639 = vshrl.u32 %v2638, 7
        %v2640 = vsub.s32 0, %v2639
        %v2641 = vrot.slane %v2390, %v2640
        %v2642 = vlaneseq
        %v2643 = vshrl.u32 %v2642, 7
        %v2644 = vsub.s32 0, %v2643
        %v2645 = vrot.slane %v2389, %v2644
        %v2646 = vlaneseq
        %v2647 = vshrl.u32 %v2646, 7
        %v2648 = vsub.s32 0, %v2647
        %v2649 = vrot.slane %v2391, %v2648
        %v2650 = vlaneseq
        %v2651 = vshrl.u32 %v2650, 7
        %v2652 = vsub.s32 0, %v2651
        %v2653 = vrot.slane %v2399, %v2652
        %v2654 = vlaneseq
        %v2655 = vshrl.u32 %v2654, 7
        %v2656 = vsub.s32 0, %v2655
        %v2657 = vrot.slane %v2407, %v2656
        %v2658 = vlaneseq
        %v2659 = vshrl.u32 %v2658, 7
        %v2660 = vsub.s32 0, %v2659
        %v2661 = vrot.slane %v2406, %v2660
        %v2662 = vlaneseq
        %v2663 = vshrl.u32 %v2662, 7
        %v2664 = vsub.s32 0, %v2663
        %v2665 = vrot.slane %v2408, %v2664
        %v2666 = vlaneseq
        %v2667 = vshrl.u32 %v2666, 7
        %v2668 = vsub.s32 0, %v2667
        %v2669 = vrot.slane %v2416, %v2668
        %v2670 = vlaneseq
        %v2671 = vshrl.u32 %v2670, 7
        %v2672 = vsub.s32 0, %v2671
        %v2673 = vrot.slane %v2424, %v2672
        %v2674 = vlaneseq
        %v2675 = vshrl.u32 %v2674, 7
        %v2676 = vsub.s32 0, %v2675
        %v2677 = vrot.slane %v2423, %v2676
        %v2678 = vlaneseq
        %v2679 = vshrl.u32 %v2678, 7
        %v2680 = vsub.s32 0, %v2679
        %v2681 = vrot.slane %v2425, %v2680
        %vm2682 = vcmask 1041409
        %v2683 = vsel %vm2682, %v2433, %v2429
        %vm2684 = vcmask 1042434
        %v2685 = vsel %vm2684, %v2437, %v2683
        %vm2686 = vcmask 1043459
        %v2687 = vsel %vm2686, %v2441, %v2685
        %vm2688 = vcmask 1044484
        %v2689 = vsel %vm2688, %v2445, %v2687
        %vm2690 = vcmask 1045509
        %v2691 = vsel %vm2690, %v2449, %v2689
        %vm2692 = vcmask 1046534
        %v2693 = vsel %vm2692, %v2453, %v2691
        %vm2694 = vcmask 1047559
        %v2695 = vsel %vm2694, %v2457, %v2693
        %v2696 = vsel %vm2682, %v2465, %v2461
        %v2697 = vsel %vm2684, %v2469, %v2696
        %v2698 = vsel %vm2686, %v2473, %v2697
        %v2699 = vsel %vm2688, %v2477, %v2698
        %v2700 = vsel %vm2690, %v2481, %v2699
        %v2701 = vsel %vm2692, %v2485, %v2700
        %v2702 = vsel %vm2694, %v2489, %v2701
        %v2703 = vsel %vm2682, %v2497, %v2493
        %v2704 = vsel %vm2684, %v2501, %v2703
        %v2705 = vsel %vm2686, %v2505, %v2704
        %v2706 = vsel %vm2688, %v2509, %v2705
        %v2707 = vsel %vm2690, %v2513, %v2706
        %v2708 = vsel %vm2692, %v2517, %v2707
        %v2709 = vsel %vm2694, %v2521, %v2708
        %v2710 = vsel %vm2682, %v2529, %v2525
        %v2711 = vsel %vm2684, %v2533, %v2710
        %v2712 = vsel %vm2686, %v2537, %v2711
        %v2713 = vsel %vm2688, %v2541, %v2712
        %v2714 = vsel %vm2690, %v2545, %v2713
        %v2715 = vsel %vm2692, %v2549, %v2714
        %v2716 = vsel %vm2694, %v2553, %v2715
        %v2717 = vsel %vm2682, %v2561, %v2557
        %v2718 = vsel %vm2684, %v2565, %v2717
        %v2719 = vsel %vm2686, %v2569, %v2718
        %v2720 = vsel %vm2688, %v2573, %v2719
        %v2721 = vsel %vm2690, %v2577, %v2720
        %v2722 = vsel %vm2692, %v2581, %v2721
        %v2723 = vsel %vm2694, %v2585, %v2722
        %v2724 = vsel %vm2682, %v2593, %v2589
        %v2725 = vsel %vm2684, %v2597, %v2724
        %v2726 = vsel %vm2686, %v2601, %v2725
        %v2727 = vsel %vm2688, %v2605, %v2726
        %v2728 = vsel %vm2690, %v2609, %v2727
        %v2729 = vsel %vm2692, %v2613, %v2728
        %v2730 = vsel %vm2694, %v2617, %v2729
        %v2731 = vsel %vm2682, %v2625, %v2621
        %v2732 = vsel %vm2684, %v2629, %v2731
        %v2733 = vsel %vm2686, %v2633, %v2732
        %v2734 = vsel %vm2688, %v2637, %v2733
        %v2735 = vsel %vm2690, %v2641, %v2734
        %v2736 = vsel %vm2692, %v2645, %v2735
        %v2737 = vsel %vm2694, %v2649, %v2736
        %v2738 = vsel %vm2682, %v2657, %v2653
        %v2739 = vsel %vm2684, %v2661, %v2738
        %v2740 = vsel %vm2686, %v2665, %v2739
        %v2741 = vsel %vm2688, %v2669, %v2740
        %v2742 = vsel %vm2690, %v2673, %v2741
        %v2743 = vsel %vm2692, %v2677, %v2742
        %v2744 = vsel %vm2694, %v2681, %v2743
        %v2745 = vrot.slane %v2695, 7
        %v2746 = vrot.slane %v2702, 7
        %v2747 = vrot.slane %v2709, 7
        %v2748 = vrot.slane %v2716, 7
        %v2749 = vrot.slane %v2723, 7
        %v2750 = vrot.slane %v2730, 7
        %v2751 = vrot.slane %v2737, 7
        %v2752 = vrot.slane %v2744, 7
        %v2761 = vsel %vm512, 0.0, %v2745
        %v2762 = vsel %vm512, 0.0, %v2746
        %v2763 = vsel %vm512, 0.0, %v2747
        %v2764 = vsel %vm512, 0.0, %v2748
        %v2765 = vsel %vm512, 0.0, %v2749
        %v2766 = vsel %vm512, 0.0, %v2750
        %v2767 = vsel %vm512, 0.0, %v2751
        %v2768 = vsel %vm512, 0.0, %v2752
        %v2769 = vsel %vm512, %v2745, 0.0
        %v2770 = vsel %vm512, %v2746, 0.0
        %v2771 = vsel %vm512, %v2747, 0.0
        %v2772 = vsel %vm512, %v2748, 0.0
        %v2773 = vsel %vm512, %v2749, 0.0
        %v2774 = vsel %vm512, %v2750, 0.0
        %v2775 = vsel %vm512, %v2751, 0.0
        %v2776 = vsel %vm512, %v2752, 0.0
        %v2791 = vsel %vm678, %v679, %v682
        %v2792 = vrot.slane %v2761, 1
        %v2793 = vrot.slane %v2769, 1
        %v2794 = vsel %vm678, %v2792, %v2793
        %v2795 = vrot.slane %v2762, 1
        %v2796 = vrot.slane %v2770, 1
        %v2797 = vsel %vm678, %v2795, %v2796
        %v2798 = vrot.slane %v2763, 1
        %v2799 = vrot.slane %v2771, 1
        %v2800 = vsel %vm678, %v2798, %v2799
        %v2801 = vrot.slane %v2764, 1
        %v2802 = vrot.slane %v2772, 1
        %v2803 = vsel %vm678, %v2801, %v2802
        %v2804 = vrot.slane %v2765, 1
        %v2805 = vrot.slane %v2773, 1
        %v2806 = vsel %vm678, %v2804, %v2805
        %v2807 = vrot.slane %v2766, 1
        %v2808 = vrot.slane %v2774, 1
        %v2809 = vsel %vm678, %v2807, %v2808
        %v2810 = vrot.slane %v2767, 1
        %v2811 = vrot.slane %v2775, 1
        %v2812 = vsel %vm678, %v2810, %v2811
        %2813 = vrot.lane.b32.xlu0 %v2791, 16
        %v2814 = vpop.permute.xlu0 %2813
        %2815 = vrot.lane.b32.xlu0 %v2794, 16
        %v2816 = vpop.permute.xlu0 %2815
        %2817 = vrot.lane.b32.xlu0 %v2797, 16
        %v2818 = vpop.permute.xlu0 %2817
        %2819 = vrot.lane.b32.xlu0 %v2800, 16
        %v2820 = vpop.permute.xlu0 %2819
        %2821 = vrot.lane.b32.xlu0 %v2803, 16
        %v2822 = vpop.permute.xlu0 %2821
        %2823 = vrot.lane.b32.xlu0 %v2806, 16
        %v2824 = vpop.permute.xlu0 %2823
        %2825 = vrot.lane.b32.xlu0 %v2809, 16
        %v2826 = vpop.permute.xlu0 %2825
        %2827 = vrot.lane.b32.xlu0 %v2812, 16
        %v2828 = vpop.permute.xlu0 %2827
        %v2837 = vsel %vm855, %v856, %v859
        %v2838 = vrot.slane %v2761, 2
        %v2839 = vrot.slane %v2769, 2
        %v2840 = vsel %vm855, %v2838, %v2839
        %v2841 = vrot.slane %v2762, 2
        %v2842 = vrot.slane %v2770, 2
        %v2843 = vsel %vm855, %v2841, %v2842
        %v2844 = vrot.slane %v2763, 2
        %v2845 = vrot.slane %v2771, 2
        %v2846 = vsel %vm855, %v2844, %v2845
        %v2847 = vrot.slane %v2764, 2
        %v2848 = vrot.slane %v2772, 2
        %v2849 = vsel %vm855, %v2847, %v2848
        %v2850 = vrot.slane %v2765, 2
        %v2851 = vrot.slane %v2773, 2
        %v2852 = vsel %vm855, %v2850, %v2851
        %v2853 = vrot.slane %v2766, 2
        %v2854 = vrot.slane %v2774, 2
        %v2855 = vsel %vm855, %v2853, %v2854
        %v2856 = vrot.slane %v2767, 2
        %v2857 = vrot.slane %v2775, 2
        %v2858 = vsel %vm855, %v2856, %v2857
        %2859 = vrot.lane.b32.xlu0 %v2837, 32
        %v2860 = vpop.permute.xlu0 %2859
        %2861 = vrot.lane.b32.xlu0 %v2840, 32
        %v2862 = vpop.permute.xlu0 %2861
        %2863 = vrot.lane.b32.xlu0 %v2843, 32
        %v2864 = vpop.permute.xlu0 %2863
        %2865 = vrot.lane.b32.xlu0 %v2846, 32
        %v2866 = vpop.permute.xlu0 %2865
        %2867 = vrot.lane.b32.xlu0 %v2849, 32
        %v2868 = vpop.permute.xlu0 %2867
        %2869 = vrot.lane.b32.xlu0 %v2852, 32
        %v2870 = vpop.permute.xlu0 %2869
        %2871 = vrot.lane.b32.xlu0 %v2855, 32
        %v2872 = vpop.permute.xlu0 %2871
        %2873 = vrot.lane.b32.xlu0 %v2858, 32
        %v2874 = vpop.permute.xlu0 %2873
        %2884 = vrot.lane.b32.xlu0 %v2761, 48
        %v2885 = vpop.permute.xlu0 %2884
        %2886 = vrot.lane.b32.xlu0 %v2762, 48
        %v2887 = vpop.permute.xlu0 %2886
        %2888 = vrot.lane.b32.xlu0 %v2763, 48
        %v2889 = vpop.permute.xlu0 %2888
        %2890 = vrot.lane.b32.xlu0 %v2764, 48
        %v2891 = vpop.permute.xlu0 %2890
        %2892 = vrot.lane.b32.xlu0 %v2765, 48
        %v2893 = vpop.permute.xlu0 %2892
        %2894 = vrot.lane.b32.xlu0 %v2766, 48
        %v2895 = vpop.permute.xlu0 %2894
        %2896 = vrot.lane.b32.xlu0 %v2767, 48
        %v2897 = vpop.permute.xlu0 %2896
        %2898 = vrot.lane.b32.xlu0 %v2768, 48
        %v2899 = vpop.permute.xlu0 %2898
        %v2909 = vrot.slane %v2768, 1
        %v2910 = vrot.slane %v2776, 1
        %v2911 = vsel %vm678, %v2909, %v2910
        %2912 = vrot.lane.b32.xlu0 %v2794, 64
        %v2913 = vpop.permute.xlu0 %2912
        %2914 = vrot.lane.b32.xlu0 %v2797, 64
        %v2915 = vpop.permute.xlu0 %2914
        %2916 = vrot.lane.b32.xlu0 %v2800, 64
        %v2917 = vpop.permute.xlu0 %2916
        %2918 = vrot.lane.b32.xlu0 %v2803, 64
        %v2919 = vpop.permute.xlu0 %2918
        %2920 = vrot.lane.b32.xlu0 %v2806, 64
        %v2921 = vpop.permute.xlu0 %2920
        %2922 = vrot.lane.b32.xlu0 %v2809, 64
        %v2923 = vpop.permute.xlu0 %2922
        %2924 = vrot.lane.b32.xlu0 %v2812, 64
        %v2925 = vpop.permute.xlu0 %2924
        %2926 = vrot.lane.b32.xlu0 %v2911, 64
        %v2927 = vpop.permute.xlu0 %2926
        %v2936 = vrot.slane %v2768, 2
        %v2937 = vrot.slane %v2776, 2
        %v2938 = vsel %vm855, %v2936, %v2937
        %2939 = vrot.lane.b32.xlu0 %v2840, 80
        %v2940 = vpop.permute.xlu0 %2939
        %2941 = vrot.lane.b32.xlu0 %v2843, 80
        %v2942 = vpop.permute.xlu0 %2941
        %2943 = vrot.lane.b32.xlu0 %v2846, 80
        %v2944 = vpop.permute.xlu0 %2943
        %2945 = vrot.lane.b32.xlu0 %v2849, 80
        %v2946 = vpop.permute.xlu0 %2945
        %2947 = vrot.lane.b32.xlu0 %v2852, 80
        %v2948 = vpop.permute.xlu0 %2947
        %2949 = vrot.lane.b32.xlu0 %v2855, 80
        %v2950 = vpop.permute.xlu0 %2949
        %2951 = vrot.lane.b32.xlu0 %v2858, 80
        %v2952 = vpop.permute.xlu0 %2951
        %2953 = vrot.lane.b32.xlu0 %v2938, 80
        %v2954 = vpop.permute.xlu0 %2953
        %2963 = vrot.lane.b32.xlu0 %v2762, 96
        %v2964 = vpop.permute.xlu0 %2963
        %2965 = vrot.lane.b32.xlu0 %v2763, 96
        %v2966 = vpop.permute.xlu0 %2965
        %2967 = vrot.lane.b32.xlu0 %v2764, 96
        %v2968 = vpop.permute.xlu0 %2967
        %2969 = vrot.lane.b32.xlu0 %v2765, 96
        %v2970 = vpop.permute.xlu0 %2969
        %2971 = vrot.lane.b32.xlu0 %v2766, 96
        %v2972 = vpop.permute.xlu0 %2971
        %2973 = vrot.lane.b32.xlu0 %v2767, 96
        %v2974 = vpop.permute.xlu0 %2973
        %2975 = vrot.lane.b32.xlu0 %v2768, 96
        %v2976 = vpop.permute.xlu0 %2975
        %2977 = vrot.lane.b32.xlu0 %v612, 96
        %v2978 = vpop.permute.xlu0 %2977
        %2987 = vrot.lane.b32.xlu0 %v2797, 112
        %v2988 = vpop.permute.xlu0 %2987
        %2989 = vrot.lane.b32.xlu0 %v2800, 112
        %v2990 = vpop.permute.xlu0 %2989
        %2991 = vrot.lane.b32.xlu0 %v2803, 112
        %v2992 = vpop.permute.xlu0 %2991
        %2993 = vrot.lane.b32.xlu0 %v2806, 112
        %v2994 = vpop.permute.xlu0 %2993
        %2995 = vrot.lane.b32.xlu0 %v2809, 112
        %v2996 = vpop.permute.xlu0 %2995
        %2997 = vrot.lane.b32.xlu0 %v2812, 112
        %v2998 = vpop.permute.xlu0 %2997
        %2999 = vrot.lane.b32.xlu0 %v2911, 112
        %v3000 = vpop.permute.xlu0 %2999
        %3001 = vrot.lane.b32.xlu0 %v2791, 112
        %v3002 = vpop.permute.xlu0 %3001
        %vm3019 = vcmask 130048
        %v3020 = vsel %vm3019, %v612, %v2814
        %v3021 = vsel %vm3019, %v2761, %v2816
        %v3022 = vsel %vm3019, %v2762, %v2818
        %v3023 = vsel %vm3019, %v2763, %v2820
        %v3024 = vsel %vm3019, %v2764, %v2822
        %v3025 = vsel %vm3019, %v2765, %v2824
        %v3026 = vsel %vm3019, %v2766, %v2826
        %v3027 = vsel %vm3019, %v2767, %v2828
        %vm3028 = vcmask 261120
        %v3029 = vsel %vm3028, %v3020, %v2860
        %v3030 = vsel %vm3028, %v3021, %v2862
        %v3031 = vsel %vm3028, %v3022, %v2864
        %v3032 = vsel %vm3028, %v3023, %v2866
        %v3033 = vsel %vm3028, %v3024, %v2868
        %v3034 = vsel %vm3028, %v3025, %v2870
        %v3035 = vsel %vm3028, %v3026, %v2872
        %v3036 = vsel %vm3028, %v3027, %v2874
        %vm3037 = vcmask 392192
        %v3038 = vsel %vm3037, %v3029, %v2885
        %v3039 = vsel %vm3037, %v3030, %v2887
        %v3040 = vsel %vm3037, %v3031, %v2889
        %v3041 = vsel %vm3037, %v3032, %v2891
        %v3042 = vsel %vm3037, %v3033, %v2893
        %v3043 = vsel %vm3037, %v3034, %v2895
        %v3044 = vsel %vm3037, %v3035, %v2897
        %v3045 = vsel %vm3037, %v3036, %v2899
        %vm3046 = vcmask 523264
        %v3047 = vsel %vm3046, %v3038, %v2913
        %v3048 = vsel %vm3046, %v3039, %v2915
        %v3049 = vsel %vm3046, %v3040, %v2917
        %v3050 = vsel %vm3046, %v3041, %v2919
        %v3051 = vsel %vm3046, %v3042, %v2921
        %v3052 = vsel %vm3046, %v3043, %v2923
        %v3053 = vsel %vm3046, %v3044, %v2925
        %v3054 = vsel %vm3046, %v3045, %v2927
        %vm3055 = vcmask 654336
        %v3056 = vsel %vm3055, %v3047, %v2940
        %v3057 = vsel %vm3055, %v3048, %v2942
        %v3058 = vsel %vm3055, %v3049, %v2944
        %v3059 = vsel %vm3055, %v3050, %v2946
        %v3060 = vsel %vm3055, %v3051, %v2948
        %v3061 = vsel %vm3055, %v3052, %v2950
        %v3062 = vsel %vm3055, %v3053, %v2952
        %v3063 = vsel %vm3055, %v3054, %v2954
        %vm3064 = vcmask 785408
        %v3065 = vsel %vm3064, %v3056, %v2964
        %v3066 = vsel %vm3064, %v3057, %v2966
        %v3067 = vsel %vm3064, %v3058, %v2968
        %v3068 = vsel %vm3064, %v3059, %v2970
        %v3069 = vsel %vm3064, %v3060, %v2972
        %v3070 = vsel %vm3064, %v3061, %v2974
        %v3071 = vsel %vm3064, %v3062, %v2976
        %v3072 = vsel %vm3064, %v3063, %v2978
        %vm3073 = vcmask 916480
        %v3074 = vsel %vm3073, %v3065, %v2988
        %v3075 = vsel %vm3073, %v3066, %v2990
        %v3076 = vsel %vm3073, %v3067, %v2992
        %v3077 = vsel %vm3073, %v3068, %v2994
        %v3078 = vsel %vm3073, %v3069, %v2996
        %v3079 = vsel %vm3073, %v3070, %v2998
        %v3080 = vsel %vm3073, %v3071, %v3000
        %v3081 = vsel %vm3073, %v3072, %v3002
        %v3082 = vpack.c.bf16 %v3075, %v3074
        %v3083 = vpack.c.bf16 %v2846, %v2843
        %v3084 = vpack.c.bf16 %v3077, %v3076
        %v3085 = vpack.c.bf16 %v2852, %v2849
        %v3086 = vpack.c.bf16 %v3079, %v3078
        %v3087 = vpack.c.bf16 %v2858, %v2855
        %v3088 = vpack.c.bf16 %v3081, %v3080
        %v3089 = vpack.c.bf16 %v2837, %v2938
        %v3090 = vld [vmem:[%s3] sm:$0xf]
        %v3091 = vld [vmem:[%s3 + $0x4] sm:$0xf]
        %v3092 = vld [vmem:[%s3 + $0x8] sm:$0xf]
        %v3093 = vld [vmem:[%s3 + $0xc] sm:$0xf]
        %v3094 = vld [vmem:[%s3 + $0x10] sm:$0xf]
        %v3095 = vld [vmem:[%s3 + $0x14] sm:$0xf]
        %v3096 = vld [vmem:[%s3 + $0x18] sm:$0xf]
        %v3097 = vld [vmem:[%s3 + $0x1c] sm:$0xf]
        %v3098 = vld [vmem:[%s3 + $0x20] sm:$0xf]
        %v3099 = vld [vmem:[%s3 + $0x24] sm:$0xf]
        %v3100 = vld [vmem:[%s3 + $0x28] sm:$0xf]
        %v3101 = vld [vmem:[%s3 + $0x2c] sm:$0xf]
        %v3102 = vld [vmem:[%s3 + $0x30] sm:$0xf]
        %v3103 = vld [vmem:[%s3 + $0x34] sm:$0xf]
        %v3104 = vld [vmem:[%s3 + $0x38] sm:$0xf]
        %v3105 = vld [vmem:[%s3 + $0x3c] sm:$0xf]
        %v3106 = vld [vmem:[%s3 + $0x40] sm:$0xf]
        %v3107 = vld [vmem:[%s3 + $0x44] sm:$0xf]
        %v3108 = vld [vmem:[%s4] sm:$0x1]
        %v3110 = vlaneseq
        %v3111 = vshrl.u32 %v3110, 7
        %v3112 = vsub.s32 0, %v3111
        %v3113 = vrot.slane %v3108, %v3112
        %v3133 = vunpack.c.l.b16 %v3090
        %v3134 = vunpack.c.l.b16 %v3091
        %v3135 = vunpack.c.l.b16 %v3092
        %v3136 = vunpack.c.l.b16 %v3093
        %v3137 = vunpack.c.l.b16 %v3094
        %v3138 = vunpack.c.l.b16 %v3095
        %v3139 = vunpack.c.l.b16 %v3096
        %v3140 = vunpack.c.l.b16 %v3097
        %v3141 = vunpack.c.l.b16 %v3098
        %v3142 = vunpack.c.l.b16 %v3099
        %v3143 = vunpack.c.l.b16 %v3100
        %v3144 = vunpack.c.l.b16 %v3101
        %v3145 = vunpack.c.l.b16 %v3102
        %v3146 = vunpack.c.l.b16 %v3103
        %v3147 = vunpack.c.l.b16 %v3104
        %v3148 = vunpack.c.l.b16 %v3105
        %v3149 = vunpack.c.l.b16 %v3106
        %v3150 = vunpack.c.l.b16 %v3107
        %v3151 = vpack.c.b16 %v3134, %v3133
        %v3152 = vpack.c.b16 %v3136, %v3135
        %v3153 = vpack.c.b16 %v3138, %v3137
        %v3154 = vpack.c.b16 %v3140, %v3139
        %v3155 = vpack.c.b16 %v3142, %v3141
        %v3156 = vpack.c.b16 %v3144, %v3143
        %v3157 = vpack.c.b16 %v3146, %v3145
        %v3158 = vpack.c.b16 %v3148, %v3147
        %v3159 = vpack.c.b16 %v3150, %v3149
        %v3170 = vsel %vm3019, %v3083, 0
        %v3173 = vsel %vm3019, %v3085, 0
        %v3176 = vsel %vm3019, %v3087, 0
        %v3179 = vsel %vm3019, %v3089, 0
        %3181 = vmatprep.subr.bf16.mxu0 0
        %3182 = vmatpush1.bf16.msra.mxu0 %v3158
        %3183 = vmatprep.subr.bf16.mxu0 0
        %3184 = vmatpush1.bf16.msra.mxu0 %v3157
        %3185 = vmatprep.subr.bf16.mxu0 0
        %3186 = vmatpush1.bf16.msra.mxu0 %v3156
        %3187 = vmatprep.subr.bf16.mxu0 0
        %3188 = vmatpush1.bf16.msra.mxu0 %v3155
        %3189 = vmatprep.subr.bf16.mxu0 0
        %3190 = vmatpush1.bf16.msra.mxu0 %v3154
        %3191 = vmatprep.subr.bf16.mxu0 0
        %3192 = vmatpush1.bf16.msra.mxu0 %v3153
        %3193 = vmatprep.subr.bf16.mxu0 0
        %3194 = vmatpush1.bf16.msra.mxu0 %v3152
        %3195 = vmatprep.subr.bf16.mxu0 0
        %3196 = vmatpush1.bf16.msra.mxu0 %v3151
        %3197 = vmatprep.subr.bf16.mxu0 0
        %3198 = vmatpush2.bf16.msra.mxu0 0
        %3199 = vmatprep.subr.bf16.mxu0 0
        %3200 = vmatpush2.bf16.msra.mxu0 0
        %3201 = vmatprep.subr.bf16.mxu0 0
        %3202 = vmatpush2.bf16.msra.mxu0 0
        %3203 = vmatprep.subr.bf16.mxu0 0
        %3204 = vmatpush2.bf16.msra.mxu0 0
        %3205 = vmatprep.subr.bf16.mxu0 0
        %3206 = vmatpush2.bf16.msra.mxu0 0
        %3207 = vmatprep.subr.bf16.mxu0 0
        %3208 = vmatpush2.bf16.msra.mxu0 0
        %3209 = vmatprep.subr.bf16.mxu0 0
        %3210 = vmatpush2.bf16.msra.mxu0 0
        %3211 = vmatprep.subr.bf16.mxu0 0
        %3212 = vmatpush2.bf16.msra.mxu0 %v3159
        %3213 = vmatprep.mubr.bf16.mxu0 %v3170
        %3214 = vmatmul.mubr.bf16.gmra.mxu0 %v3082
        %v3215 = vpop.f32.mrf.mxu0
        %v3216 = vadd.f32 %v3113, %v3215
        %v3217 = vpop.f32.mrf.mxu0
        %v3218 = vpop.f32.mrf.mxu0
        %v3219 = vpop.f32.mrf.mxu0
        %3220 = vmatprep.mubr.bf16.mxu0 %v3173
        %3221 = vmatmul.mubr.bf16.gmra.mxu0 %v3084
        %v3222 = vpop.f32.mrf.mxu0
        %v3223 = vadd.f32 %v3113, %v3222
        %v3224 = vpop.f32.mrf.mxu0
        %v3225 = vpop.f32.mrf.mxu0
        %v3226 = vpop.f32.mrf.mxu0
        %3227 = vmatprep.mubr.bf16.mxu0 %v3176
        %3228 = vmatmul.mubr.bf16.gmra.mxu0 %v3086
        %v3229 = vpop.f32.mrf.mxu0
        %v3230 = vadd.f32 %v3113, %v3229
        %v3231 = vpop.f32.mrf.mxu0
        %v3232 = vpop.f32.mrf.mxu0
        %v3233 = vpop.f32.mrf.mxu0
        %3234 = vmatprep.mubr.bf16.mxu0 %v3179
        %3235 = vmatmul.mubr.bf16.gmra.mxu0 %v3088
        %v3236 = vpop.f32.mrf.mxu0
        %v3237 = vadd.f32 %v3113, %v3236
        %v3238 = vpop.f32.mrf.mxu0
        %v3239 = vpop.f32.mrf.mxu0
        %v3240 = vpop.f32.mrf.mxu0
        %3241 = vdwg.mxu0
        %v3242 = vmax.f32 %v3216, 0.0
        %v3243 = vmax.f32 %v3223, 0.0
        %v3244 = vmax.f32 %v3230, 0.0
        %v3245 = vmax.f32 %v3237, 0.0
        %v3250 = vcombine.high %v3242, %v3242
        %v3252 = vunpack.c.l.s4 1983009808
        %v3253 = vunpack.c.0.s8 %v3252
        %v3254 = vlaneseq
        %v3255 = vshrl.u32 %v3254, 7
        %v3256 = vsub.s32 %v3253, %v3255
        %v3257 = vrot.slane %v3242, %v3256
        %v3259 = vunpack.c.l.s4 1983009808
        %v3260 = vunpack.c.0.s8 %v3259
        %v3261 = vlaneseq
        %v3262 = vshrl.u32 %v3261, 7
        %v3263 = vsub.s32 %v3260, %v3262
        %v3264 = vrot.slane %v3250, %v3263
        %v3265 = vcombine.high %v3257, %v3257
        %v3266 = vcombine.high %v3264, %v3264
        %v3267 = vcombine.high %v3243, %v3243
        %v3269 = vunpack.c.l.s4 1983009808
        %v3270 = vunpack.c.0.s8 %v3269
        %v3271 = vlaneseq
        %v3272 = vshrl.u32 %v3271, 7
        %v3273 = vsub.s32 %v3270, %v3272
        %v3274 = vrot.slane %v3243, %v3273
        %v3276 = vunpack.c.l.s4 1983009808
        %v3277 = vunpack.c.0.s8 %v3276
        %v3278 = vlaneseq
        %v3279 = vshrl.u32 %v3278, 7
        %v3280 = vsub.s32 %v3277, %v3279
        %v3281 = vrot.slane %v3267, %v3280
        %v3282 = vcombine.high %v3274, %v3274
        %v3283 = vcombine.high %v3281, %v3281
        %v3284 = vcombine.high %v3244, %v3244
        %v3286 = vunpack.c.l.s4 1983009808
        %v3287 = vunpack.c.0.s8 %v3286
        %v3288 = vlaneseq
        %v3289 = vshrl.u32 %v3288, 7
        %v3290 = vsub.s32 %v3287, %v3289
        %v3291 = vrot.slane %v3244, %v3290
        %v3293 = vunpack.c.l.s4 1983009808
        %v3294 = vunpack.c.0.s8 %v3293
        %v3295 = vlaneseq
        %v3296 = vshrl.u32 %v3295, 7
        %v3297 = vsub.s32 %v3294, %v3296
        %v3298 = vrot.slane %v3284, %v3297
        %v3299 = vcombine.high %v3291, %v3291
        %v3300 = vcombine.high %v3298, %v3298
        %v3301 = vcombine.high %v3245, %v3245
        %v3303 = vunpack.c.l.s4 1983009808
        %v3304 = vunpack.c.0.s8 %v3303
        %v3305 = vlaneseq
        %v3306 = vshrl.u32 %v3305, 7
        %v3307 = vsub.s32 %v3304, %v3306
        %v3308 = vrot.slane %v3245, %v3307
        %v3310 = vunpack.c.l.s4 1983009808
        %v3311 = vunpack.c.0.s8 %v3310
        %v3312 = vlaneseq
        %v3313 = vshrl.u32 %v3312, 7
        %v3314 = vsub.s32 %v3311, %v3313
        %v3315 = vrot.slane %v3301, %v3314
        %v3316 = vcombine.high %v3308, %v3308
        %v3317 = vcombine.high %v3315, %v3315
        %v3318 = vlaneseq
        %v3319 = vshrl.u32 %v3318, 7
        %v3320 = vsub.s32 0, %v3319
        %v3321 = vrot.slane %v3257, %v3320
        %v3322 = vlaneseq
        %v3323 = vshrl.u32 %v3322, 7
        %v3324 = vsub.s32 0, %v3323
        %v3325 = vrot.slane %v3265, %v3324
        %v3326 = vlaneseq
        %v3327 = vshrl.u32 %v3326, 7
        %v3328 = vsub.s32 0, %v3327
        %v3329 = vrot.slane %v3264, %v3328
        %v3330 = vlaneseq
        %v3331 = vshrl.u32 %v3330, 7
        %v3332 = vsub.s32 0, %v3331
        %v3333 = vrot.slane %v3266, %v3332
        %v3334 = vlaneseq
        %v3335 = vshrl.u32 %v3334, 7
        %v3336 = vsub.s32 0, %v3335
        %v3337 = vrot.slane %v3274, %v3336
        %v3338 = vlaneseq
        %v3339 = vshrl.u32 %v3338, 7
        %v3340 = vsub.s32 0, %v3339
        %v3341 = vrot.slane %v3282, %v3340
        %v3342 = vlaneseq
        %v3343 = vshrl.u32 %v3342, 7
        %v3344 = vsub.s32 0, %v3343
        %v3345 = vrot.slane %v3281, %v3344
        %v3346 = vlaneseq
        %v3347 = vshrl.u32 %v3346, 7
        %v3348 = vsub.s32 0, %v3347
        %v3349 = vrot.slane %v3283, %v3348
        %v3350 = vlaneseq
        %v3351 = vshrl.u32 %v3350, 7
        %v3352 = vsub.s32 0, %v3351
        %v3353 = vrot.slane %v3291, %v3352
        %v3354 = vlaneseq
        %v3355 = vshrl.u32 %v3354, 7
        %v3356 = vsub.s32 0, %v3355
        %v3357 = vrot.slane %v3299, %v3356
        %v3358 = vlaneseq
        %v3359 = vshrl.u32 %v3358, 7
        %v3360 = vsub.s32 0, %v3359
        %v3361 = vrot.slane %v3298, %v3360
        %v3362 = vlaneseq
        %v3363 = vshrl.u32 %v3362, 7
        %v3364 = vsub.s32 0, %v3363
        %v3365 = vrot.slane %v3300, %v3364
        %v3366 = vlaneseq
        %v3367 = vshrl.u32 %v3366, 7
        %v3368 = vsub.s32 0, %v3367
        %v3369 = vrot.slane %v3308, %v3368
        %v3370 = vlaneseq
        %v3371 = vshrl.u32 %v3370, 7
        %v3372 = vsub.s32 0, %v3371
        %v3373 = vrot.slane %v3316, %v3372
        %v3374 = vlaneseq
        %v3375 = vshrl.u32 %v3374, 7
        %v3376 = vsub.s32 0, %v3375
        %v3377 = vrot.slane %v3315, %v3376
        %v3378 = vlaneseq
        %v3379 = vshrl.u32 %v3378, 7
        %v3380 = vsub.s32 0, %v3379
        %v3381 = vrot.slane %v3317, %v3380
        %v3382 = vsel %vm2682, %v3325, %v3321
        %v3383 = vsel %vm2684, %v3329, %v3382
        %v3384 = vsel %vm2686, %v3333, %v3383
        %v3385 = vsel %vm2682, %v3341, %v3337
        %v3386 = vsel %vm2684, %v3345, %v3385
        %v3387 = vsel %vm2686, %v3349, %v3386
        %v3388 = vsel %vm2682, %v3357, %v3353
        %v3389 = vsel %vm2684, %v3361, %v3388
        %v3390 = vsel %vm2686, %v3365, %v3389
        %v3391 = vsel %vm2682, %v3373, %v3369
        %v3392 = vsel %vm2684, %v3377, %v3391
        %v3393 = vsel %vm2686, %v3381, %v3392
        %v3394 = vrot.slane %v3384, 7
        %v3395 = vrot.slane %v3387, 7
        %v3396 = vrot.slane %v3390, 7
        %v3397 = vrot.slane %v3393, 7
        %v3402 = vsel %vm512, 0.0, %v3394
        %v3403 = vsel %vm512, 0.0, %v3395
        %v3404 = vsel %vm512, 0.0, %v3396
        %v3405 = vsel %vm512, 0.0, %v3397
        %v3406 = vsel %vm1971, %v612, 0.0
        %v3407 = vsel %vm1971, %v3402, 0.0
        %v3408 = vsel %vm1971, %v3403, 0.0
        %v3409 = vsel %vm1971, %v3404, 0.0
        %v3410 = vsel %vm1971, %v3405, 0.0
        %v3415 = vrot.slane %v3406, 1
        %v3416 = vrot.slane %v3407, 1
        %v3417 = vrot.slane %v3408, 1
        %v3418 = vrot.slane %v3409, 1
        %3419 = vrot.lane.b32.xlu0 %v3415, 32
        %v3420 = vpop.permute.xlu0 %3419
        %3421 = vrot.lane.b32.xlu0 %v3416, 32
        %v3422 = vpop.permute.xlu0 %3421
        %3423 = vrot.lane.b32.xlu0 %v3417, 32
        %v3424 = vpop.permute.xlu0 %3423
        %3425 = vrot.lane.b32.xlu0 %v3418, 32
        %v3426 = vpop.permute.xlu0 %3425
        %v3431 = vrot.slane %v3406, 2
        %v3432 = vrot.slane %v3407, 2
        %v3433 = vrot.slane %v3408, 2
        %v3434 = vrot.slane %v3409, 2
        %3435 = vrot.lane.b32.xlu0 %v3431, 64
        %v3436 = vpop.permute.xlu0 %3435
        %3437 = vrot.lane.b32.xlu0 %v3432, 64
        %v3438 = vpop.permute.xlu0 %3437
        %3439 = vrot.lane.b32.xlu0 %v3433, 64
        %v3440 = vpop.permute.xlu0 %3439
        %3441 = vrot.lane.b32.xlu0 %v3434, 64
        %v3442 = vpop.permute.xlu0 %3441
        %3448 = vrot.lane.b32.xlu0 %v3407, 96
        %v3449 = vpop.permute.xlu0 %3448
        %3450 = vrot.lane.b32.xlu0 %v3408, 96
        %v3451 = vpop.permute.xlu0 %3450
        %3452 = vrot.lane.b32.xlu0 %v3409, 96
        %v3453 = vpop.permute.xlu0 %3452
        %3454 = vrot.lane.b32.xlu0 %v3410, 96
        %v3455 = vpop.permute.xlu0 %3454
        %v3460 = vrot.slane %v3410, 1
        %v3465 = vrot.slane %v3410, 2
        %3466 = vrot.lane.b32.xlu0 %v3432, 32
        %v3467 = vpop.permute.xlu0 %3466
        %3468 = vrot.lane.b32.xlu0 %v3433, 32
        %v3469 = vpop.permute.xlu0 %3468
        %3470 = vrot.lane.b32.xlu0 %v3434, 32
        %v3471 = vpop.permute.xlu0 %3470
        %3472 = vrot.lane.b32.xlu0 %v3465, 32
        %v3473 = vpop.permute.xlu0 %3472
        %3478 = vrot.lane.b32.xlu0 %v3408, 64
        %v3479 = vpop.permute.xlu0 %3478
        %3480 = vrot.lane.b32.xlu0 %v3409, 64
        %v3481 = vpop.permute.xlu0 %3480
        %3482 = vrot.lane.b32.xlu0 %v3410, 64
        %v3483 = vpop.permute.xlu0 %3482
        %3484 = vrot.lane.b32.xlu0 %v3406, 64
        %v3485 = vpop.permute.xlu0 %3484
        %3490 = vrot.lane.b32.xlu0 %v3417, 96
        %v3491 = vpop.permute.xlu0 %3490
        %3492 = vrot.lane.b32.xlu0 %v3418, 96
        %v3493 = vpop.permute.xlu0 %3492
        %3494 = vrot.lane.b32.xlu0 %v3460, 96
        %v3495 = vpop.permute.xlu0 %3494
        %3496 = vrot.lane.b32.xlu0 %v3415, 96
        %v3497 = vpop.permute.xlu0 %3496
        %v3502 = vsel %vm3028, %v3406, %v3420
        %v3503 = vsel %vm3028, %v3407, %v3422
        %v3504 = vsel %vm3028, %v3408, %v3424
        %v3505 = vsel %vm3028, %v3409, %v3426
        %v3506 = vsel %vm3046, %v3502, %v3436
        %v3507 = vsel %vm3046, %v3503, %v3438
        %v3508 = vsel %vm3046, %v3504, %v3440
        %v3509 = vsel %vm3046, %v3505, %v3442
        %v3510 = vsel %vm3064, %v3506, %v3449
        %v3511 = vsel %vm3064, %v3507, %v3451
        %v3512 = vsel %vm3064, %v3508, %v3453
        %v3513 = vsel %vm3064, %v3509, %v3455
        %v3514 = vsel %vm3028, %v3416, %v3467
        %v3515 = vsel %vm3028, %v3417, %v3469
        %v3516 = vsel %vm3028, %v3418, %v3471
        %v3517 = vsel %vm3028, %v3460, %v3473
        %v3518 = vsel %vm3046, %v3514, %v3479
        %v3519 = vsel %vm3046, %v3515, %v3481
        %v3520 = vsel %vm3046, %v3516, %v3483
        %v3521 = vsel %vm3046, %v3517, %v3485
        %v3522 = vsel %vm3064, %v3518, %v3491
        %v3523 = vsel %vm3064, %v3519, %v3493
        %v3524 = vsel %vm3064, %v3520, %v3495
        %v3525 = vsel %vm3064, %v3521, %v3497
        %v3534 = vcombine.low %v3510, %v3522
        %v3535 = vcombine.low %v3511, %v3523
        %v3536 = vcombine.low %v3512, %v3524
        %v3537 = vcombine.low %v3513, %v3525
        %v3538 = vcombine.low %v3534, %v3535
        %v3539 = vcombine.high %v3534, %v3535
        %v3540 = vcombine.low %v3433, %v3434
        %v3541 = vcombine.low %v3536, %v3537
        %v3542 = vcombine.high %v3536, %v3537
        %v3543 = vcombine.low %v3465, %v3431
        %v3550 = vpack.c.bf16 %v3541, %v3538
        %v3551 = vpack.c.bf16 %v3542, %v3539
        %v3552 = vpack.c.bf16 %v3543, %v3540
        %v3553 = vld [vmem:[%s5] sm:$0xf]
        %v3554 = vld [vmem:[%s5 + $0x4] sm:$0xf]
        %v3555 = vld [vmem:[%s5 + $0x8] sm:$0xf]
        %v3556 = vld [vmem:[%s5 + $0xc] sm:$0xf]
        %v3557 = vld [vmem:[%s5 + $0x10] sm:$0xf]
        %v3558 = vld [vmem:[%s5 + $0x14] sm:$0xf]
        %v3559 = vld [vmem:[%s5 + $0x18] sm:$0xf]
        %v3560 = vld [vmem:[%s5 + $0x1c] sm:$0xf]
        %v3561 = vld [vmem:[%s5 + $0x20] sm:$0xf]
        %v3562 = vld [vmem:[%s5 + $0x24] sm:$0xf]
        %v3563 = vld [vmem:[%s5 + $0x28] sm:$0xf]
        %v3564 = vld [vmem:[%s5 + $0x2c] sm:$0xf]
        %v3565 = vld [vmem:[%s5 + $0x30] sm:$0xf]
        %v3566 = vld [vmem:[%s5 + $0x34] sm:$0xf]
        %v3567 = vld [vmem:[%s5 + $0x38] sm:$0xf]
        %v3568 = vld [vmem:[%s5 + $0x3c] sm:$0xf]
        %v3569 = vld [vmem:[%s5 + $0x40] sm:$0xf]
        %v3570 = vld [vmem:[%s5 + $0x44] sm:$0xf]
        %v3571 = vld [vmem:[%s5 + $0x48] sm:$0xf]
        %v3572 = vld [vmem:[%s5 + $0x4c] sm:$0xf]
        %v3573 = vld [vmem:[%s5 + $0x50] sm:$0xf]
        %v3574 = vld [vmem:[%s5 + $0x54] sm:$0xf]
        %v3575 = vld [vmem:[%s5 + $0x58] sm:$0xf]
        %v3576 = vld [vmem:[%s5 + $0x5c] sm:$0xf]
        %v3577 = vld [vmem:[%s5 + $0x60] sm:$0xf]
        %v3578 = vld [vmem:[%s5 + $0x64] sm:$0xf]
        %v3579 = vld [vmem:[%s5 + $0x68] sm:$0xf]
        %v3580 = vld [vmem:[%s5 + $0x6c] sm:$0xf]
        %v3581 = vld [vmem:[%s5 + $0x70] sm:$0xf]
        %v3582 = vld [vmem:[%s5 + $0x74] sm:$0xf]
        %v3583 = vld [vmem:[%s5 + $0x78] sm:$0xf]
        %v3584 = vld [vmem:[%s5 + $0x7c] sm:$0xf]
        %v3585 = vld [vmem:[%s5 + $0x80] sm:$0xf]
        %v3586 = vld [vmem:[%s5 + $0x84] sm:$0xf]
        %v3587 = vld [vmem:[%s5 + $0x88] sm:$0xf]
        %v3588 = vld [vmem:[%s5 + $0x8c] sm:$0xf]
        %v3589 = vld [vmem:[%s6] sm:$0x1]
        %v3591 = vlaneseq
        %v3592 = vshrl.u32 %v3591, 7
        %v3593 = vsub.s32 0, %v3592
        %v3594 = vrot.slane %v3589, %v3593
        %v3632 = vunpack.c.l.b16 %v3553
        %v3633 = vunpack.c.l.b16 %v3554
        %v3634 = vunpack.c.l.b16 %v3555
        %v3635 = vunpack.c.l.b16 %v3556
        %v3636 = vunpack.c.l.b16 %v3557
        %v3637 = vunpack.c.l.b16 %v3558
        %v3638 = vunpack.c.l.b16 %v3559
        %v3639 = vunpack.c.l.b16 %v3560
        %v3640 = vunpack.c.l.b16 %v3561
        %v3641 = vunpack.c.l.b16 %v3562
        %v3642 = vunpack.c.l.b16 %v3563
        %v3643 = vunpack.c.l.b16 %v3564
        %v3644 = vunpack.c.l.b16 %v3565
        %v3645 = vunpack.c.l.b16 %v3566
        %v3646 = vunpack.c.l.b16 %v3567
        %v3647 = vunpack.c.l.b16 %v3568
        %v3648 = vunpack.c.l.b16 %v3569
        %v3649 = vunpack.c.l.b16 %v3570
        %v3650 = vunpack.c.l.b16 %v3571
        %v3651 = vunpack.c.l.b16 %v3572
        %v3652 = vunpack.c.l.b16 %v3573
        %v3653 = vunpack.c.l.b16 %v3574
        %v3654 = vunpack.c.l.b16 %v3575
        %v3655 = vunpack.c.l.b16 %v3576
        %v3656 = vunpack.c.l.b16 %v3577
        %v3657 = vunpack.c.l.b16 %v3578
        %v3658 = vunpack.c.l.b16 %v3579
        %v3659 = vunpack.c.l.b16 %v3580
        %v3660 = vunpack.c.l.b16 %v3581
        %v3661 = vunpack.c.l.b16 %v3582
        %v3662 = vunpack.c.l.b16 %v3583
        %v3663 = vunpack.c.l.b16 %v3584
        %v3664 = vunpack.c.l.b16 %v3585
        %v3665 = vunpack.c.l.b16 %v3586
        %v3666 = vunpack.c.l.b16 %v3587
        %v3667 = vunpack.c.l.b16 %v3588
        %v3668 = vpack.c.b16 %v3633, %v3632
        %v3669 = vpack.c.b16 %v3635, %v3634
        %v3670 = vpack.c.b16 %v3637, %v3636
        %v3671 = vpack.c.b16 %v3639, %v3638
        %v3672 = vpack.c.b16 %v3641, %v3640
        %v3673 = vpack.c.b16 %v3643, %v3642
        %v3674 = vpack.c.b16 %v3645, %v3644
        %v3675 = vpack.c.b16 %v3647, %v3646
        %v3676 = vpack.c.b16 %v3649, %v3648
        %v3677 = vpack.c.b16 %v3651, %v3650
        %v3678 = vpack.c.b16 %v3653, %v3652
        %v3679 = vpack.c.b16 %v3655, %v3654
        %v3680 = vpack.c.b16 %v3657, %v3656
        %v3681 = vpack.c.b16 %v3659, %v3658
        %v3682 = vpack.c.b16 %v3661, %v3660
        %v3683 = vpack.c.b16 %v3663, %v3662
        %v3684 = vpack.c.b16 %v3665, %v3664
        %v3685 = vpack.c.b16 %v3667, %v3666
        %v3705 = vsel %vm3028, %v3552, 0
        %3707 = vmatprep.subr.bf16.mxu0 0
        %3708 = vmatpush1.bf16.msra.mxu0 %v3675
        %3709 = vmatprep.subr.bf16.mxu0 0
        %3710 = vmatpush1.bf16.msra.mxu0 %v3674
        %3711 = vmatprep.subr.bf16.mxu0 0
        %3712 = vmatpush1.bf16.msra.mxu0 %v3673
        %3713 = vmatprep.subr.bf16.mxu0 0
        %3714 = vmatpush1.bf16.msra.mxu0 %v3672
        %3715 = vmatprep.subr.bf16.mxu0 0
        %3716 = vmatpush1.bf16.msra.mxu0 %v3671
        %3717 = vmatprep.subr.bf16.mxu0 0
        %3718 = vmatpush1.bf16.msra.mxu0 %v3670
        %3719 = vmatprep.subr.bf16.mxu0 0
        %3720 = vmatpush1.bf16.msra.mxu0 %v3669
        %3721 = vmatprep.subr.bf16.mxu0 0
        %3722 = vmatpush1.bf16.msra.mxu0 %v3668
        %3723 = vmatprep.subr.bf16.mxu0 0
        %3724 = vmatpush2.bf16.msra.mxu0 %v3683
        %3725 = vmatprep.subr.bf16.mxu0 0
        %3726 = vmatpush2.bf16.msra.mxu0 %v3682
        %3727 = vmatprep.subr.bf16.mxu0 0
        %3728 = vmatpush2.bf16.msra.mxu0 %v3681
        %3729 = vmatprep.subr.bf16.mxu0 0
        %3730 = vmatpush2.bf16.msra.mxu0 %v3680
        %3731 = vmatprep.subr.bf16.mxu0 0
        %3732 = vmatpush2.bf16.msra.mxu0 %v3679
        %3733 = vmatprep.subr.bf16.mxu0 0
        %3734 = vmatpush2.bf16.msra.mxu0 %v3678
        %3735 = vmatprep.subr.bf16.mxu0 0
        %3736 = vmatpush2.bf16.msra.mxu0 %v3677
        %3737 = vmatprep.subr.bf16.mxu0 0
        %3738 = vmatpush2.bf16.msra.mxu0 %v3676
        %3739 = vmatprep.mubr.bf16.mxu0 %v3551
        %3740 = vmatmul.mubr.bf16.gmra.mxu0 %v3550
        %v3741 = vpop.f32.mrf.mxu0
        %v3742 = vadd.f32 %v3594, %v3741
        %v3743 = vpop.f32.mrf.mxu0
        %v3744 = vpop.f32.mrf.mxu0
        %v3745 = vadd.f32 %v3594, %v3744
        %v3746 = vpop.f32.mrf.mxu0
        %3747 = vdwg.mxu0
        %3748 = vmatprep.subr.bf16.mxu0 0
        %3749 = vmatpush1.bf16.msra.mxu0 0
        %3750 = vmatprep.subr.bf16.mxu0 0
        %3751 = vmatpush1.bf16.msra.mxu0 0
        %3752 = vmatprep.subr.bf16.mxu0 0
        %3753 = vmatpush1.bf16.msra.mxu0 0
        %3754 = vmatprep.subr.bf16.mxu0 0
        %3755 = vmatpush1.bf16.msra.mxu0 0
        %3756 = vmatprep.subr.bf16.mxu0 0
        %3757 = vmatpush1.bf16.msra.mxu0 0
        %3758 = vmatprep.subr.bf16.mxu0 0
        %3759 = vmatpush1.bf16.msra.mxu0 0
        %3760 = vmatprep.subr.bf16.mxu0 0
        %3761 = vmatpush1.bf16.msra.mxu0 %v3685
        %3762 = vmatprep.subr.bf16.mxu0 0
        %3763 = vmatpush1.bf16.msra.mxu0 %v3684
        %3764 = vmatprep.subr.bf16.mxu0 0
        %3765 = vmatpush2.bf16.msra.mxu0 0
        %3766 = vmatprep.subr.bf16.mxu0 0
        %3767 = vmatpush2.bf16.msra.mxu0 0
        %3768 = vmatprep.subr.bf16.mxu0 0
        %3769 = vmatpush2.bf16.msra.mxu0 0
        %3770 = vmatprep.subr.bf16.mxu0 0
        %3771 = vmatpush2.bf16.msra.mxu0 0
        %3772 = vmatprep.subr.bf16.mxu0 0
        %3773 = vmatpush2.bf16.msra.mxu0 0
        %3774 = vmatprep.subr.bf16.mxu0 0
        %3775 = vmatpush2.bf16.msra.mxu0 0
        %3776 = vmatprep.subr.bf16.mxu0 0
        %3777 = vmatpush2.bf16.msra.mxu0 0
        %3778 = vmatprep.subr.bf16.mxu0 0
        %3779 = vmatpush2.bf16.msra.mxu0 0
        %3780 = vmatprep.mubr.bf16.mxu0 0
        %3781 = vmatmul.mubr.bf16.gmra.mxu0 %v3705
        %v3782 = vpop.f32.mrf.mxu0
        %v3783 = vadd.f32 %v3742, %v3782
        %v3784 = vpop.f32.mrf.mxu0
        %v3785 = vpop.f32.mrf.mxu0
        %v3786 = vadd.f32 %v3745, %v3785
        %v3787 = vpop.f32.mrf.mxu0
        %3788 = vdwg.mxu0
        %v3789 = vmax.f32 %v3783, 0.0
        %v3790 = vmax.f32 %v3786, 0.0
        %v3793 = vcombine.high %v3789, %v3789
        %v3794 = vcombine.high %v3790, %v3790
        %v3796 = vunpack.c.l.s4 1966171168
        %v3797 = vunpack.c.0.s8 %v3796
        %v3798 = vlaneseq
        %v3799 = vshrl.u32 %v3798, 7
        %v3800 = vsub.s32 %v3797, %v3799
        %v3801 = vrot.slane %v3789, %v3800
        %v3802 = vcombine.high %v3801, %v3801
        %v3804 = vunpack.c.l.s4 1966171168
        %v3805 = vunpack.c.0.s8 %v3804
        %v3806 = vlaneseq
        %v3807 = vshrl.u32 %v3806, 7
        %v3808 = vsub.s32 %v3805, %v3807
        %v3809 = vrot.slane %v3801, %v3808
        %v3811 = vunpack.c.l.s4 1966171168
        %v3812 = vunpack.c.0.s8 %v3811
        %v3813 = vlaneseq
        %v3814 = vshrl.u32 %v3813, 7
        %v3815 = vsub.s32 %v3812, %v3814
        %v3816 = vrot.slane %v3802, %v3815
        %v3817 = vcombine.high %v3809, %v3809
        %v3818 = vcombine.high %v3816, %v3816
        %v3820 = vunpack.c.l.s4 1966171168
        %v3821 = vunpack.c.0.s8 %v3820
        %v3822 = vlaneseq
        %v3823 = vshrl.u32 %v3822, 7
        %v3824 = vsub.s32 %v3821, %v3823
        %v3825 = vrot.slane %v3793, %v3824
        %v3826 = vcombine.high %v3825, %v3825
        %v3828 = vunpack.c.l.s4 1966171168
        %v3829 = vunpack.c.0.s8 %v3828
        %v3830 = vlaneseq
        %v3831 = vshrl.u32 %v3830, 7
        %v3832 = vsub.s32 %v3829, %v3831
        %v3833 = vrot.slane %v3825, %v3832
        %v3835 = vunpack.c.l.s4 1966171168
        %v3836 = vunpack.c.0.s8 %v3835
        %v3837 = vlaneseq
        %v3838 = vshrl.u32 %v3837, 7
        %v3839 = vsub.s32 %v3836, %v3838
        %v3840 = vrot.slane %v3826, %v3839
        %v3841 = vcombine.high %v3833, %v3833
        %v3842 = vcombine.high %v3840, %v3840
        %v3844 = vunpack.c.l.s4 1966171168
        %v3845 = vunpack.c.0.s8 %v3844
        %v3846 = vlaneseq
        %v3847 = vshrl.u32 %v3846, 7
        %v3848 = vsub.s32 %v3845, %v3847
        %v3849 = vrot.slane %v3790, %v3848
        %v3850 = vcombine.high %v3849, %v3849
        %v3852 = vunpack.c.l.s4 1966171168
        %v3853 = vunpack.c.0.s8 %v3852
        %v3854 = vlaneseq
        %v3855 = vshrl.u32 %v3854, 7
        %v3856 = vsub.s32 %v3853, %v3855
        %v3857 = vrot.slane %v3849, %v3856
        %v3859 = vunpack.c.l.s4 1966171168
        %v3860 = vunpack.c.0.s8 %v3859
        %v3861 = vlaneseq
        %v3862 = vshrl.u32 %v3861, 7
        %v3863 = vsub.s32 %v3860, %v3862
        %v3864 = vrot.slane %v3850, %v3863
        %v3865 = vcombine.high %v3857, %v3857
        %v3866 = vcombine.high %v3864, %v3864
        %v3868 = vunpack.c.l.s4 1966171168
        %v3869 = vunpack.c.0.s8 %v3868
        %v3870 = vlaneseq
        %v3871 = vshrl.u32 %v3870, 7
        %v3872 = vsub.s32 %v3869, %v3871
        %v3873 = vrot.slane %v3794, %v3872
        %v3874 = vcombine.high %v3873, %v3873
        %v3876 = vunpack.c.l.s4 1966171168
        %v3877 = vunpack.c.0.s8 %v3876
        %v3878 = vlaneseq
        %v3879 = vshrl.u32 %v3878, 7
        %v3880 = vsub.s32 %v3877, %v3879
        %v3881 = vrot.slane %v3873, %v3880
        %v3883 = vunpack.c.l.s4 1966171168
        %v3884 = vunpack.c.0.s8 %v3883
        %v3885 = vlaneseq
        %v3886 = vshrl.u32 %v3885, 7
        %v3887 = vsub.s32 %v3884, %v3886
        %v3888 = vrot.slane %v3874, %v3887
        %v3889 = vcombine.high %v3881, %v3881
        %v3890 = vcombine.high %v3888, %v3888
        %v3891 = vlaneseq
        %v3892 = vshrl.u32 %v3891, 7
        %v3893 = vsub.s32 0, %v3892
        %v3894 = vrot.slane %v3809, %v3893
        %v3895 = vlaneseq
        %v3896 = vshrl.u32 %v3895, 7
        %v3897 = vsub.s32 0, %v3896
        %v3898 = vrot.slane %v3816, %v3897
        %v3899 = vlaneseq
        %v3900 = vshrl.u32 %v3899, 7
        %v3901 = vsub.s32 0, %v3900
        %v3902 = vrot.slane %v3817, %v3901
        %v3903 = vlaneseq
        %v3904 = vshrl.u32 %v3903, 7
        %v3905 = vsub.s32 0, %v3904
        %v3906 = vrot.slane %v3818, %v3905
        %v3907 = vlaneseq
        %v3908 = vshrl.u32 %v3907, 7
        %v3909 = vsub.s32 0, %v3908
        %v3910 = vrot.slane %v3833, %v3909
        %v3911 = vlaneseq
        %v3912 = vshrl.u32 %v3911, 7
        %v3913 = vsub.s32 0, %v3912
        %v3914 = vrot.slane %v3840, %v3913
        %v3915 = vlaneseq
        %v3916 = vshrl.u32 %v3915, 7
        %v3917 = vsub.s32 0, %v3916
        %v3918 = vrot.slane %v3841, %v3917
        %v3919 = vlaneseq
        %v3920 = vshrl.u32 %v3919, 7
        %v3921 = vsub.s32 0, %v3920
        %v3922 = vrot.slane %v3842, %v3921
        %v3923 = vlaneseq
        %v3924 = vshrl.u32 %v3923, 7
        %v3925 = vsub.s32 0, %v3924
        %v3926 = vrot.slane %v3857, %v3925
        %v3927 = vlaneseq
        %v3928 = vshrl.u32 %v3927, 7
        %v3929 = vsub.s32 0, %v3928
        %v3930 = vrot.slane %v3864, %v3929
        %v3931 = vlaneseq
        %v3932 = vshrl.u32 %v3931, 7
        %v3933 = vsub.s32 0, %v3932
        %v3934 = vrot.slane %v3865, %v3933
        %v3935 = vlaneseq
        %v3936 = vshrl.u32 %v3935, 7
        %v3937 = vsub.s32 0, %v3936
        %v3938 = vrot.slane %v3866, %v3937
        %v3939 = vlaneseq
        %v3940 = vshrl.u32 %v3939, 7
        %v3941 = vsub.s32 0, %v3940
        %v3942 = vrot.slane %v3881, %v3941
        %v3943 = vlaneseq
        %v3944 = vshrl.u32 %v3943, 7
        %v3945 = vsub.s32 0, %v3944
        %v3946 = vrot.slane %v3888, %v3945
        %v3947 = vlaneseq
        %v3948 = vshrl.u32 %v3947, 7
        %v3949 = vsub.s32 0, %v3948
        %v3950 = vrot.slane %v3889, %v3949
        %v3951 = vlaneseq
        %v3952 = vshrl.u32 %v3951, 7
        %v3953 = vsub.s32 0, %v3952
        %v3954 = vrot.slane %v3890, %v3953
        %v3955 = vcombine.low %v3894, %v3898
        %v3956 = vcombine.low %v3902, %v3906
        %v3958 = vunpack.c.l.s4 1983009808
        %v3959 = vunpack.c.0.s8 %v3958
        %v3960 = vlaneseq
        %v3961 = vshrl.u32 %v3960, 7
        %v3962 = vsub.s32 %v3959, %v3961
        %v3963 = vrot.slane %v3955, %v3962
        %v3965 = vunpack.c.l.s4 1983009808
        %v3966 = vunpack.c.0.s8 %v3965
        %v3967 = vlaneseq
        %v3968 = vshrl.u32 %v3967, 7
        %v3969 = vsub.s32 %v3966, %v3968
        %v3970 = vrot.slane %v3956, %v3969
        %v3971 = vcombine.low %v3963, %v3970
        %v3972 = vcombine.low %v3910, %v3914
        %v3973 = vcombine.low %v3918, %v3922
        %v3975 = vunpack.c.l.s4 1983009808
        %v3976 = vunpack.c.0.s8 %v3975
        %v3977 = vlaneseq
        %v3978 = vshrl.u32 %v3977, 7
        %v3979 = vsub.s32 %v3976, %v3978
        %v3980 = vrot.slane %v3972, %v3979
        %v3982 = vunpack.c.l.s4 1983009808
        %v3983 = vunpack.c.0.s8 %v3982
        %v3984 = vlaneseq
        %v3985 = vshrl.u32 %v3984, 7
        %v3986 = vsub.s32 %v3983, %v3985
        %v3987 = vrot.slane %v3973, %v3986
        %v3988 = vcombine.low %v3980, %v3987
        %v3989 = vcombine.low %v3926, %v3930
        %v3990 = vcombine.low %v3934, %v3938
        %v3992 = vunpack.c.l.s4 1983009808
        %v3993 = vunpack.c.0.s8 %v3992
        %v3994 = vlaneseq
        %v3995 = vshrl.u32 %v3994, 7
        %v3996 = vsub.s32 %v3993, %v3995
        %v3997 = vrot.slane %v3989, %v3996
        %v3999 = vunpack.c.l.s4 1983009808
        %v4000 = vunpack.c.0.s8 %v3999
        %v4001 = vlaneseq
        %v4002 = vshrl.u32 %v4001, 7
        %v4003 = vsub.s32 %v4000, %v4002
        %v4004 = vrot.slane %v3990, %v4003
        %v4005 = vcombine.low %v3997, %v4004
        %v4006 = vcombine.low %v3942, %v3946
        %v4007 = vcombine.low %v3950, %v3954
        %v4009 = vunpack.c.l.s4 1983009808
        %v4010 = vunpack.c.0.s8 %v4009
        %v4011 = vlaneseq
        %v4012 = vshrl.u32 %v4011, 7
        %v4013 = vsub.s32 %v4010, %v4012
        %v4014 = vrot.slane %v4006, %v4013
        %v4016 = vunpack.c.l.s4 1983009808
        %v4017 = vunpack.c.0.s8 %v4016
        %v4018 = vlaneseq
        %v4019 = vshrl.u32 %v4018, 7
        %v4020 = vsub.s32 %v4017, %v4019
        %v4021 = vrot.slane %v4007, %v4020
        %v4022 = vcombine.low %v4014, %v4021
        %v4023 = vrot.slane %v3971, 7
        %v4024 = vrot.slane %v3988, 7
        %v4025 = vrot.slane %v4005, 7
        %v4026 = vrot.slane %v4022, 7
        %v4031 = vsel %vm512, 0.0, %v4023
        %v4032 = vsel %vm512, 0.0, %v4024
        %v4033 = vsel %vm512, 0.0, %v4025
        %v4034 = vsel %vm512, 0.0, %v4026
        %v4035 = vsel %vm512, %v4023, 0.0
        %v4036 = vsel %vm512, %v4024, 0.0
        %v4037 = vsel %vm512, %v4025, 0.0
        %v4038 = vsel %vm512, %v4026, 0.0
        %v4047 = vrot.slane %v4031, 1
        %v4048 = vrot.slane %v4035, 1
        %v4049 = vsel %vm678, %v4047, %v4048
        %v4050 = vrot.slane %v4032, 1
        %v4051 = vrot.slane %v4036, 1
        %v4052 = vsel %vm678, %v4050, %v4051
        %v4053 = vrot.slane %v4033, 1
        %v4054 = vrot.slane %v4037, 1
        %v4055 = vsel %vm678, %v4053, %v4054
        %v4056 = vrot.slane %v4034, 1
        %v4057 = vrot.slane %v4038, 1
        %v4058 = vsel %vm678, %v4056, %v4057
        %4059 = vrot.lane.b32.xlu0 %v4049, 16
        %v4060 = vpop.permute.xlu0 %4059
        %4061 = vrot.lane.b32.xlu0 %v4052, 16
        %v4062 = vpop.permute.xlu0 %4061
        %4063 = vrot.lane.b32.xlu0 %v4055, 16
        %v4064 = vpop.permute.xlu0 %4063
        %4065 = vrot.lane.b32.xlu0 %v4058, 16
        %v4066 = vpop.permute.xlu0 %4065
        %v4071 = vrot.slane %v4031, 2
        %v4072 = vrot.slane %v4035, 2
        %v4073 = vsel %vm855, %v4071, %v4072
        %v4074 = vrot.slane %v4032, 2
        %v4075 = vrot.slane %v4036, 2
        %v4076 = vsel %vm855, %v4074, %v4075
        %v4077 = vrot.slane %v4033, 2
        %v4078 = vrot.slane %v4037, 2
        %v4079 = vsel %vm855, %v4077, %v4078
        %v4080 = vrot.slane %v4034, 2
        %v4081 = vrot.slane %v4038, 2
        %v4082 = vsel %vm855, %v4080, %v4081
        %4083 = vrot.lane.b32.xlu0 %v4073, 32
        %v4084 = vpop.permute.xlu0 %4083
        %4085 = vrot.lane.b32.xlu0 %v4076, 32
        %v4086 = vpop.permute.xlu0 %4085
        %4087 = vrot.lane.b32.xlu0 %v4079, 32
        %v4088 = vpop.permute.xlu0 %4087
        %4089 = vrot.lane.b32.xlu0 %v4082, 32
        %v4090 = vpop.permute.xlu0 %4089
        %4095 = vrot.lane.b32.xlu0 %v4031, 48
        %v4096 = vpop.permute.xlu0 %4095
        %4097 = vrot.lane.b32.xlu0 %v4032, 48
        %v4098 = vpop.permute.xlu0 %4097
        %4099 = vrot.lane.b32.xlu0 %v4033, 48
        %v4100 = vpop.permute.xlu0 %4099
        %4101 = vrot.lane.b32.xlu0 %v4034, 48
        %v4102 = vpop.permute.xlu0 %4101
        %4107 = vrot.lane.b32.xlu0 %v4049, 64
        %v4108 = vpop.permute.xlu0 %4107
        %4109 = vrot.lane.b32.xlu0 %v4052, 64
        %v4110 = vpop.permute.xlu0 %4109
        %4111 = vrot.lane.b32.xlu0 %v4055, 64
        %v4112 = vpop.permute.xlu0 %4111
        %4113 = vrot.lane.b32.xlu0 %v4058, 64
        %v4114 = vpop.permute.xlu0 %4113
        %4119 = vrot.lane.b32.xlu0 %v4073, 80
        %v4120 = vpop.permute.xlu0 %4119
        %4121 = vrot.lane.b32.xlu0 %v4076, 80
        %v4122 = vpop.permute.xlu0 %4121
        %4123 = vrot.lane.b32.xlu0 %v4079, 80
        %v4124 = vpop.permute.xlu0 %4123
        %4125 = vrot.lane.b32.xlu0 %v4082, 80
        %v4126 = vpop.permute.xlu0 %4125
        %4131 = vrot.lane.b32.xlu0 %v4031, 96
        %v4132 = vpop.permute.xlu0 %4131
        %4133 = vrot.lane.b32.xlu0 %v4032, 96
        %v4134 = vpop.permute.xlu0 %4133
        %4135 = vrot.lane.b32.xlu0 %v4033, 96
        %v4136 = vpop.permute.xlu0 %4135
        %4137 = vrot.lane.b32.xlu0 %v4034, 96
        %v4138 = vpop.permute.xlu0 %4137
        %4143 = vrot.lane.b32.xlu0 %v4049, 112
        %v4144 = vpop.permute.xlu0 %4143
        %4145 = vrot.lane.b32.xlu0 %v4052, 112
        %v4146 = vpop.permute.xlu0 %4145
        %4147 = vrot.lane.b32.xlu0 %v4055, 112
        %v4148 = vpop.permute.xlu0 %4147
        %4149 = vrot.lane.b32.xlu0 %v4058, 112
        %v4150 = vpop.permute.xlu0 %4149
        %v4159 = vsel %vm3019, %v4031, %v4060
        %v4160 = vsel %vm3019, %v4032, %v4062
        %v4161 = vsel %vm3019, %v4033, %v4064
        %v4162 = vsel %vm3019, %v4034, %v4066
        %v4163 = vsel %vm3028, %v4159, %v4084
        %v4164 = vsel %vm3028, %v4160, %v4086
        %v4165 = vsel %vm3028, %v4161, %v4088
        %v4166 = vsel %vm3028, %v4162, %v4090
        %v4167 = vsel %vm3037, %v3029, %v4096
        %v4168 = vsel %vm3037, %v4163, %v4096
        %v4169 = vsel %vm3037, %v4163, %v4098
        %v4170 = vsel %vm3037, %v4164, %v4098
        %v4171 = vsel %vm3037, %v4164, %v4100
        %v4172 = vsel %vm3037, %v4165, %v4100
        %v4173 = vsel %vm3037, %v4165, %v4102
        %v4174 = vsel %vm3037, %v4166, %v4102
        %v4175 = vsel %vm3046, %v4167, %v4108
        %v4176 = vsel %vm3046, %v4168, %v4108
        %v4177 = vsel %vm3046, %v4169, %v4110
        %v4178 = vsel %vm3046, %v4170, %v4110
        %v4179 = vsel %vm3046, %v4171, %v4112
        %v4180 = vsel %vm3046, %v4172, %v4112
        %v4181 = vsel %vm3046, %v4173, %v4114
        %v4182 = vsel %vm3046, %v4174, %v4114
        %v4183 = vsel %vm3055, %v4175, %v4120
        %v4184 = vsel %vm3055, %v4176, %v4120
        %v4185 = vsel %vm3055, %v4177, %v4122
        %v4186 = vsel %vm3055, %v4178, %v4122
        %v4187 = vsel %vm3055, %v4179, %v4124
        %v4188 = vsel %vm3055, %v4180, %v4124
        %v4189 = vsel %vm3055, %v4181, %v4126
        %v4190 = vsel %vm3055, %v4182, %v4126
        %v4191 = vsel %vm3064, %v4183, %v4132
        %v4192 = vsel %vm3064, %v4184, %v4134
        %v4193 = vsel %vm3064, %v4185, %v4134
        %v4194 = vsel %vm3064, %v4186, %v4136
        %v4195 = vsel %vm3064, %v4187, %v4136
        %v4196 = vsel %vm3064, %v4188, %v4138
        %v4197 = vsel %vm3064, %v4189, %v4138
        %v4198 = vsel %vm3064, %v4190, %v2978
        %v4199 = vsel %vm3073, %v4191, %v4144
        %v4200 = vsel %vm3073, %v4192, %v4146
        %v4201 = vsel %vm3073, %v4193, %v4146
        %v4202 = vsel %vm3073, %v4194, %v4148
        %v4203 = vsel %vm3073, %v4195, %v4148
        %v4204 = vsel %vm3073, %v4196, %v4150
        %v4205 = vsel %vm3073, %v4197, %v4150
        %v4206 = vsel %vm3073, %v4198, %v3002
        %v4207 = vpack.c.bf16 %v4200, %v4199
        %v4208 = vpack.c.bf16 %v4076, %v4073
        %v4209 = vpack.c.bf16 %v4202, %v4201
        %v4210 = vpack.c.bf16 %v4079, %v4076
        %v4211 = vpack.c.bf16 %v4204, %v4203
        %v4212 = vpack.c.bf16 %v4082, %v4079
        %v4213 = vpack.c.bf16 %v4206, %v4205
        %v4214 = vpack.c.bf16 %v2837, %v4082
        %v4215 = vld [vmem:[%s7] sm:$0xf]
        %v4216 = vld [vmem:[%s7 + $0x4] sm:$0xf]
        %v4217 = vld [vmem:[%s7 + $0x8] sm:$0xf]
        %v4218 = vld [vmem:[%s7 + $0xc] sm:$0xf]
        %v4219 = vld [vmem:[%s7 + $0x10] sm:$0xf]
        %v4220 = vld [vmem:[%s7 + $0x14] sm:$0xf]
        %v4221 = vld [vmem:[%s7 + $0x18] sm:$0xf]
        %v4222 = vld [vmem:[%s7 + $0x1c] sm:$0xf]
        %v4223 = vld [vmem:[%s7 + $0x20] sm:$0xf]
        %v4224 = vld [vmem:[%s7 + $0x24] sm:$0xf]
        %v4225 = vld [vmem:[%s7 + $0x28] sm:$0xf]
        %v4226 = vld [vmem:[%s7 + $0x2c] sm:$0xf]
        %v4227 = vld [vmem:[%s7 + $0x30] sm:$0xf]
        %v4228 = vld [vmem:[%s7 + $0x34] sm:$0xf]
        %v4229 = vld [vmem:[%s7 + $0x38] sm:$0xf]
        %v4230 = vld [vmem:[%s7 + $0x3c] sm:$0xf]
        %v4231 = vld [vmem:[%s7 + $0x40] sm:$0xf]
        %v4232 = vld [vmem:[%s7 + $0x44] sm:$0xf]
        %v4233 = vld [vmem:[%s8] sm:$0xf]
        %v4234 = vld [vmem:[%s8 + $0x4] sm:$0xf]
        %v4235 = vld [vmem:[%s8 + $0x8] sm:$0xf]
        %v4236 = vld [vmem:[%s8 + $0xc] sm:$0xf]
        %v4237 = vld [vmem:[%s8 + $0x10] sm:$0xf]
        %v4238 = vld [vmem:[%s8 + $0x14] sm:$0xf]
        %v4239 = vld [vmem:[%s8 + $0x18] sm:$0xf]
        %v4240 = vld [vmem:[%s8 + $0x1c] sm:$0xf]
        %v4241 = vld [vmem:[%s8 + $0x20] sm:$0xf]
        %v4242 = vld [vmem:[%s8 + $0x24] sm:$0xf]
        %v4243 = vld [vmem:[%s8 + $0x28] sm:$0xf]
        %v4244 = vld [vmem:[%s8 + $0x2c] sm:$0xf]
        %v4245 = vld [vmem:[%s8 + $0x30] sm:$0xf]
        %v4246 = vld [vmem:[%s8 + $0x34] sm:$0xf]
        %v4247 = vld [vmem:[%s8 + $0x38] sm:$0xf]
        %v4248 = vld [vmem:[%s8 + $0x3c] sm:$0xf]
        %v4249 = vld [vmem:[%s8 + $0x40] sm:$0xf]
        %v4250 = vld [vmem:[%s8 + $0x44] sm:$0xf]
        %v4269 = vunpack.c.l.b16 %v4233
        %v4270 = vunpack.c.l.b16 %v4234
        %v4271 = vunpack.c.l.b16 %v4235
        %v4272 = vunpack.c.l.b16 %v4236
        %v4273 = vunpack.c.l.b16 %v4237
        %v4274 = vunpack.c.l.b16 %v4238
        %v4275 = vunpack.c.l.b16 %v4239
        %v4276 = vunpack.c.l.b16 %v4240
        %v4277 = vunpack.c.l.b16 %v4241
        %v4278 = vunpack.c.l.b16 %v4242
        %v4279 = vunpack.c.l.b16 %v4243
        %v4280 = vunpack.c.l.b16 %v4244
        %v4281 = vunpack.c.l.b16 %v4245
        %v4282 = vunpack.c.l.b16 %v4246
        %v4283 = vunpack.c.l.b16 %v4247
        %v4284 = vunpack.c.l.b16 %v4248
        %v4285 = vunpack.c.l.b16 %v4249
        %v4286 = vunpack.c.l.b16 %v4250
        %v4287 = vpack.c.b16 %v4270, %v4269
        %v4288 = vpack.c.b16 %v4272, %v4271
        %v4289 = vpack.c.b16 %v4274, %v4273
        %v4290 = vpack.c.b16 %v4276, %v4275
        %v4291 = vpack.c.b16 %v4278, %v4277
        %v4292 = vpack.c.b16 %v4280, %v4279
        %v4293 = vpack.c.b16 %v4282, %v4281
        %v4294 = vpack.c.b16 %v4284, %v4283
        %v4295 = vpack.c.b16 %v4286, %v4285
        %4305 = vmatprep.subr.bf16.mxu0 0
        %4306 = vmatpush1.bf16.msra.mxu0 %v4294
        %4307 = vmatprep.subr.bf16.mxu0 0
        %4308 = vmatpush1.bf16.msra.mxu0 %v4293
        %4309 = vmatprep.subr.bf16.mxu0 0
        %4310 = vmatpush1.bf16.msra.mxu0 %v4292
        %4311 = vmatprep.subr.bf16.mxu0 0
        %4312 = vmatpush1.bf16.msra.mxu0 %v4291
        %4313 = vmatprep.subr.bf16.mxu0 0
        %4314 = vmatpush1.bf16.msra.mxu0 %v4290
        %4315 = vmatprep.subr.bf16.mxu0 0
        %4316 = vmatpush1.bf16.msra.mxu0 %v4289
        %4317 = vmatprep.subr.bf16.mxu0 0
        %4318 = vmatpush1.bf16.msra.mxu0 %v4288
        %4319 = vmatprep.subr.bf16.mxu0 0
        %4320 = vmatpush1.bf16.msra.mxu0 %v4287
        %4321 = vmatprep.subr.bf16.mxu0 0
        %4322 = vmatpush2.bf16.msra.mxu0 0
        %4323 = vmatprep.subr.bf16.mxu0 0
        %4324 = vmatpush2.bf16.msra.mxu0 0
        %4325 = vmatprep.subr.bf16.mxu0 0
        %4326 = vmatpush2.bf16.msra.mxu0 0
        %4327 = vmatprep.subr.bf16.mxu0 0
        %4328 = vmatpush2.bf16.msra.mxu0 0
        %4329 = vmatprep.subr.bf16.mxu0 0
        %4330 = vmatpush2.bf16.msra.mxu0 0
        %4331 = vmatprep.subr.bf16.mxu0 0
        %4332 = vmatpush2.bf16.msra.mxu0 0
        %4333 = vmatprep.subr.bf16.mxu0 0
        %4334 = vmatpush2.bf16.msra.mxu0 0
        %4335 = vmatprep.subr.bf16.mxu0 0
        %4336 = vmatpush2.bf16.msra.mxu0 %v4295
        %4337 = vmatprep.mubr.bf16.mxu0 %v3170
        %4338 = vmatmul.mubr.bf16.gmra.mxu0 %v3082
        %v4339 = vpop.f32.mrf.mxu0
        %v4340 = vadd.f32 0.0, %v4339
        %v4341 = vpop.f32.mrf.mxu0
        %v4342 = vpop.f32.mrf.mxu0
        %v4343 = vadd.f32 0.0, %v4342
        %v4344 = vpop.f32.mrf.mxu0
        %4345 = vmatprep.mubr.bf16.mxu0 %v3173
        %4346 = vmatmul.mubr.bf16.gmra.mxu0 %v3084
        %v4347 = vpop.f32.mrf.mxu0
        %v4348 = vadd.f32 0.0, %v4347
        %v4349 = vpop.f32.mrf.mxu0
        %v4350 = vpop.f32.mrf.mxu0
        %v4351 = vadd.f32 0.0, %v4350
        %v4352 = vpop.f32.mrf.mxu0
        %4353 = vmatprep.mubr.bf16.mxu0 %v3176
        %4354 = vmatmul.mubr.bf16.gmra.mxu0 %v3086
        %v4355 = vpop.f32.mrf.mxu0
        %v4356 = vadd.f32 0.0, %v4355
        %v4357 = vpop.f32.mrf.mxu0
        %v4358 = vpop.f32.mrf.mxu0
        %v4359 = vadd.f32 0.0, %v4358
        %v4360 = vpop.f32.mrf.mxu0
        %4361 = vmatprep.mubr.bf16.mxu0 %v3179
        %4362 = vmatmul.mubr.bf16.gmra.mxu0 %v3088
        %v4363 = vpop.f32.mrf.mxu0
        %v4364 = vadd.f32 0.0, %v4363
        %v4365 = vpop.f32.mrf.mxu0
        %v4366 = vpop.f32.mrf.mxu0
        %v4367 = vadd.f32 0.0, %v4366
        %v4368 = vpop.f32.mrf.mxu0
        %4369 = vdwg.mxu0
        %v4388 = vunpack.c.l.b16 %v4215
        %v4389 = vunpack.c.l.b16 %v4216
        %v4390 = vunpack.c.l.b16 %v4217
        %v4391 = vunpack.c.l.b16 %v4218
        %v4392 = vunpack.c.l.b16 %v4219
        %v4393 = vunpack.c.l.b16 %v4220
        %v4394 = vunpack.c.l.b16 %v4221
        %v4395 = vunpack.c.l.b16 %v4222
        %v4396 = vunpack.c.l.b16 %v4223
        %v4397 = vunpack.c.l.b16 %v4224
        %v4398 = vunpack.c.l.b16 %v4225
        %v4399 = vunpack.c.l.b16 %v4226
        %v4400 = vunpack.c.l.b16 %v4227
        %v4401 = vunpack.c.l.b16 %v4228
        %v4402 = vunpack.c.l.b16 %v4229
        %v4403 = vunpack.c.l.b16 %v4230
        %v4404 = vunpack.c.l.b16 %v4231
        %v4405 = vunpack.c.l.b16 %v4232
        %v4406 = vpack.c.b16 %v4389, %v4388
        %v4407 = vpack.c.b16 %v4391, %v4390
        %v4408 = vpack.c.b16 %v4393, %v4392
        %v4409 = vpack.c.b16 %v4395, %v4394
        %v4410 = vpack.c.b16 %v4397, %v4396
        %v4411 = vpack.c.b16 %v4399, %v4398
        %v4412 = vpack.c.b16 %v4401, %v4400
        %v4413 = vpack.c.b16 %v4403, %v4402
        %v4414 = vpack.c.b16 %v4405, %v4404
        %v4425 = vsel %vm3019, %v4208, 0
        %v4428 = vsel %vm3019, %v4210, 0
        %v4431 = vsel %vm3019, %v4212, 0
        %v4434 = vsel %vm3019, %v4214, 0
        %4436 = vmatprep.subr.bf16.mxu0 0
        %4437 = vmatpush1.bf16.msra.mxu0 %v4413
        %4438 = vmatprep.subr.bf16.mxu0 0
        %4439 = vmatpush1.bf16.msra.mxu0 %v4412
        %4440 = vmatprep.subr.bf16.mxu0 0
        %4441 = vmatpush1.bf16.msra.mxu0 %v4411
        %4442 = vmatprep.subr.bf16.mxu0 0
        %4443 = vmatpush1.bf16.msra.mxu0 %v4410
        %4444 = vmatprep.subr.bf16.mxu0 0
        %4445 = vmatpush1.bf16.msra.mxu0 %v4409
        %4446 = vmatprep.subr.bf16.mxu0 0
        %4447 = vmatpush1.bf16.msra.mxu0 %v4408
        %4448 = vmatprep.subr.bf16.mxu0 0
        %4449 = vmatpush1.bf16.msra.mxu0 %v4407
        %4450 = vmatprep.subr.bf16.mxu0 0
        %4451 = vmatpush1.bf16.msra.mxu0 %v4406
        %4452 = vmatprep.subr.bf16.mxu0 0
        %4453 = vmatpush2.bf16.msra.mxu0 0
        %4454 = vmatprep.subr.bf16.mxu0 0
        %4455 = vmatpush2.bf16.msra.mxu0 0
        %4456 = vmatprep.subr.bf16.mxu0 0
        %4457 = vmatpush2.bf16.msra.mxu0 0
        %4458 = vmatprep.subr.bf16.mxu0 0
        %4459 = vmatpush2.bf16.msra.mxu0 0
        %4460 = vmatprep.subr.bf16.mxu0 0
        %4461 = vmatpush2.bf16.msra.mxu0 0
        %4462 = vmatprep.subr.bf16.mxu0 0
        %4463 = vmatpush2.bf16.msra.mxu0 0
        %4464 = vmatprep.subr.bf16.mxu0 0
        %4465 = vmatpush2.bf16.msra.mxu0 0
        %4466 = vmatprep.subr.bf16.mxu0 0
        %4467 = vmatpush2.bf16.msra.mxu0 %v4414
        %4468 = vmatprep.mubr.bf16.mxu0 %v4425
        %4469 = vmatmul.mubr.bf16.gmra.mxu0 %v4207
        %v4470 = vpop.f32.mrf.mxu0
        %v4471 = vadd.f32 %v4340, %v4470
        %v4472 = vpop.f32.mrf.mxu0
        %v4473 = vpop.f32.mrf.mxu0
        %v4474 = vadd.f32 %v4343, %v4473
        %v4475 = vpop.f32.mrf.mxu0
        %4476 = vmatprep.mubr.bf16.mxu0 %v4428
        %4477 = vmatmul.mubr.bf16.gmra.mxu0 %v4209
        %v4478 = vpop.f32.mrf.mxu0
        %v4479 = vadd.f32 %v4348, %v4478
        %v4480 = vpop.f32.mrf.mxu0
        %v4481 = vpop.f32.mrf.mxu0
        %v4482 = vadd.f32 %v4351, %v4481
        %v4483 = vpop.f32.mrf.mxu0
        %4484 = vmatprep.mubr.bf16.mxu0 %v4431
        %4485 = vmatmul.mubr.bf16.gmra.mxu0 %v4211
        %v4486 = vpop.f32.mrf.mxu0
        %v4487 = vadd.f32 %v4356, %v4486
        %v4488 = vpop.f32.mrf.mxu0
        %v4489 = vpop.f32.mrf.mxu0
        %v4490 = vadd.f32 %v4359, %v4489
        %v4491 = vpop.f32.mrf.mxu0
        %4492 = vmatprep.mubr.bf16.mxu0 %v4434
        %4493 = vmatmul.mubr.bf16.gmra.mxu0 %v4213
        %v4494 = vpop.f32.mrf.mxu0
        %v4495 = vadd.f32 %v4364, %v4494
        %v4496 = vpop.f32.mrf.mxu0
        %v4497 = vpop.f32.mrf.mxu0
        %v4498 = vadd.f32 %v4367, %v4497
        %v4499 = vpop.f32.mrf.mxu0
        %4500 = vdwg.mxu0
        %v4501 = vld [vmem:[%s9] sm:$0x1]
        %v4503 = vlaneseq
        %v4504 = vshrl.u32 %v4503, 7
        %v4505 = vsub.s32 0, %v4504
        %v4506 = vrot.slane %v4501, %v4505
        %v4508 = vadd.f32 %v4471, %v4506
        %v4509 = vadd.f32 %v4474, %v4506
        %v4510 = vadd.f32 %v4479, %v4506
        %v4511 = vadd.f32 %v4482, %v4506
        %v4512 = vadd.f32 %v4487, %v4506
        %v4513 = vadd.f32 %v4490, %v4506
        %v4514 = vadd.f32 %v4495, %v4506
        %v4515 = vadd.f32 %v4498, %v4506
        %v4516 = vmax.f32 %v4508, 0.0
        %v4517 = vmax.f32 %v4509, 0.0
        %v4518 = vmax.f32 %v4510, 0.0
        %v4519 = vmax.f32 %v4511, 0.0
        %v4520 = vmax.f32 %v4512, 0.0
        %v4521 = vmax.f32 %v4513, 0.0
        %v4522 = vmax.f32 %v4514, 0.0
        %v4523 = vmax.f32 %v4515, 0.0
        %v4532 = vcombine.high %v4516, %v4516
        %v4534 = vunpack.c.l.s4 1966171168
        %v4535 = vunpack.c.0.s8 %v4534
        %v4536 = vlaneseq
        %v4537 = vshrl.u32 %v4536, 7
        %v4538 = vsub.s32 %v4535, %v4537
        %v4539 = vrot.slane %v4516, %v4538
        %v4541 = vunpack.c.l.s4 1966171168
        %v4542 = vunpack.c.0.s8 %v4541
        %v4543 = vlaneseq
        %v4544 = vshrl.u32 %v4543, 7
        %v4545 = vsub.s32 %v4542, %v4544
        %v4546 = vrot.slane %v4532, %v4545
        %v4547 = vcombine.high %v4539, %v4539
        %v4548 = vcombine.high %v4546, %v4546
        %v4550 = vunpack.c.l.s4 1966171168
        %v4551 = vunpack.c.0.s8 %v4550
        %v4552 = vlaneseq
        %v4553 = vshrl.u32 %v4552, 7
        %v4554 = vsub.s32 %v4551, %v4553
        %v4555 = vrot.slane %v4539, %v4554
        %v4557 = vunpack.c.l.s4 1966171168
        %v4558 = vunpack.c.0.s8 %v4557
        %v4559 = vlaneseq
        %v4560 = vshrl.u32 %v4559, 7
        %v4561 = vsub.s32 %v4558, %v4560
        %v4562 = vrot.slane %v4546, %v4561
        %v4564 = vunpack.c.l.s4 1966171168
        %v4565 = vunpack.c.0.s8 %v4564
        %v4566 = vlaneseq
        %v4567 = vshrl.u32 %v4566, 7
        %v4568 = vsub.s32 %v4565, %v4567
        %v4569 = vrot.slane %v4547, %v4568
        %v4571 = vunpack.c.l.s4 1966171168
        %v4572 = vunpack.c.0.s8 %v4571
        %v4573 = vlaneseq
        %v4574 = vshrl.u32 %v4573, 7
        %v4575 = vsub.s32 %v4572, %v4574
        %v4576 = vrot.slane %v4548, %v4575
        %v4577 = vcombine.high %v4555, %v4555
        %v4578 = vcombine.high %v4562, %v4562
        %v4579 = vcombine.high %v4569, %v4569
        %v4580 = vcombine.high %v4576, %v4576
        %v4581 = vcombine.high %v4517, %v4517
        %v4583 = vunpack.c.l.s4 1966171168
        %v4584 = vunpack.c.0.s8 %v4583
        %v4585 = vlaneseq
        %v4586 = vshrl.u32 %v4585, 7
        %v4587 = vsub.s32 %v4584, %v4586
        %v4588 = vrot.slane %v4517, %v4587
        %v4590 = vunpack.c.l.s4 1966171168
        %v4591 = vunpack.c.0.s8 %v4590
        %v4592 = vlaneseq
        %v4593 = vshrl.u32 %v4592, 7
        %v4594 = vsub.s32 %v4591, %v4593
        %v4595 = vrot.slane %v4581, %v4594
        %v4596 = vcombine.high %v4588, %v4588
        %v4597 = vcombine.high %v4595, %v4595
        %v4599 = vunpack.c.l.s4 1966171168
        %v4600 = vunpack.c.0.s8 %v4599
        %v4601 = vlaneseq
        %v4602 = vshrl.u32 %v4601, 7
        %v4603 = vsub.s32 %v4600, %v4602
        %v4604 = vrot.slane %v4588, %v4603
        %v4606 = vunpack.c.l.s4 1966171168
        %v4607 = vunpack.c.0.s8 %v4606
        %v4608 = vlaneseq
        %v4609 = vshrl.u32 %v4608, 7
        %v4610 = vsub.s32 %v4607, %v4609
        %v4611 = vrot.slane %v4595, %v4610
        %v4613 = vunpack.c.l.s4 1966171168
        %v4614 = vunpack.c.0.s8 %v4613
        %v4615 = vlaneseq
        %v4616 = vshrl.u32 %v4615, 7
        %v4617 = vsub.s32 %v4614, %v4616
        %v4618 = vrot.slane %v4596, %v4617
        %v4620 = vunpack.c.l.s4 1966171168
        %v4621 = vunpack.c.0.s8 %v4620
        %v4622 = vlaneseq
        %v4623 = vshrl.u32 %v4622, 7
        %v4624 = vsub.s32 %v4621, %v4623
        %v4625 = vrot.slane %v4597, %v4624
        %v4626 = vcombine.high %v4604, %v4604
        %v4627 = vcombine.high %v4611, %v4611
        %v4628 = vcombine.high %v4618, %v4618
        %v4629 = vcombine.high %v4625, %v4625
        %v4630 = vcombine.high %v4518, %v4518
        %v4632 = vunpack.c.l.s4 1966171168
        %v4633 = vunpack.c.0.s8 %v4632
        %v4634 = vlaneseq
        %v4635 = vshrl.u32 %v4634, 7
        %v4636 = vsub.s32 %v4633, %v4635
        %v4637 = vrot.slane %v4518, %v4636
        %v4639 = vunpack.c.l.s4 1966171168
        %v4640 = vunpack.c.0.s8 %v4639
        %v4641 = vlaneseq
        %v4642 = vshrl.u32 %v4641, 7
        %v4643 = vsub.s32 %v4640, %v4642
        %v4644 = vrot.slane %v4630, %v4643
        %v4645 = vcombine.high %v4637, %v4637
        %v4646 = vcombine.high %v4644, %v4644
        %v4648 = vunpack.c.l.s4 1966171168
        %v4649 = vunpack.c.0.s8 %v4648
        %v4650 = vlaneseq
        %v4651 = vshrl.u32 %v4650, 7
        %v4652 = vsub.s32 %v4649, %v4651
        %v4653 = vrot.slane %v4637, %v4652
        %v4655 = vunpack.c.l.s4 1966171168
        %v4656 = vunpack.c.0.s8 %v4655
        %v4657 = vlaneseq
        %v4658 = vshrl.u32 %v4657, 7
        %v4659 = vsub.s32 %v4656, %v4658
        %v4660 = vrot.slane %v4644, %v4659
        %v4662 = vunpack.c.l.s4 1966171168
        %v4663 = vunpack.c.0.s8 %v4662
        %v4664 = vlaneseq
        %v4665 = vshrl.u32 %v4664, 7
        %v4666 = vsub.s32 %v4663, %v4665
        %v4667 = vrot.slane %v4645, %v4666
        %v4669 = vunpack.c.l.s4 1966171168
        %v4670 = vunpack.c.0.s8 %v4669
        %v4671 = vlaneseq
        %v4672 = vshrl.u32 %v4671, 7
        %v4673 = vsub.s32 %v4670, %v4672
        %v4674 = vrot.slane %v4646, %v4673
        %v4675 = vcombine.high %v4653, %v4653
        %v4676 = vcombine.high %v4660, %v4660
        %v4677 = vcombine.high %v4667, %v4667
        %v4678 = vcombine.high %v4674, %v4674
        %v4679 = vcombine.high %v4519, %v4519
        %v4681 = vunpack.c.l.s4 1966171168
        %v4682 = vunpack.c.0.s8 %v4681
        %v4683 = vlaneseq
        %v4684 = vshrl.u32 %v4683, 7
        %v4685 = vsub.s32 %v4682, %v4684
        %v4686 = vrot.slane %v4519, %v4685
        %v4688 = vunpack.c.l.s4 1966171168
        %v4689 = vunpack.c.0.s8 %v4688
        %v4690 = vlaneseq
        %v4691 = vshrl.u32 %v4690, 7
        %v4692 = vsub.s32 %v4689, %v4691
        %v4693 = vrot.slane %v4679, %v4692
        %v4694 = vcombine.high %v4686, %v4686
        %v4695 = vcombine.high %v4693, %v4693
        %v4697 = vunpack.c.l.s4 1966171168
        %v4698 = vunpack.c.0.s8 %v4697
        %v4699 = vlaneseq
        %v4700 = vshrl.u32 %v4699, 7
        %v4701 = vsub.s32 %v4698, %v4700
        %v4702 = vrot.slane %v4686, %v4701
        %v4704 = vunpack.c.l.s4 1966171168
        %v4705 = vunpack.c.0.s8 %v4704
        %v4706 = vlaneseq
        %v4707 = vshrl.u32 %v4706, 7
        %v4708 = vsub.s32 %v4705, %v4707
        %v4709 = vrot.slane %v4693, %v4708
        %v4711 = vunpack.c.l.s4 1966171168
        %v4712 = vunpack.c.0.s8 %v4711
        %v4713 = vlaneseq
        %v4714 = vshrl.u32 %v4713, 7
        %v4715 = vsub.s32 %v4712, %v4714
        %v4716 = vrot.slane %v4694, %v4715
        %v4718 = vunpack.c.l.s4 1966171168
        %v4719 = vunpack.c.0.s8 %v4718
        %v4720 = vlaneseq
        %v4721 = vshrl.u32 %v4720, 7
        %v4722 = vsub.s32 %v4719, %v4721
        %v4723 = vrot.slane %v4695, %v4722
        %v4724 = vcombine.high %v4702, %v4702
        %v4725 = vcombine.high %v4709, %v4709
        %v4726 = vcombine.high %v4716, %v4716
        %v4727 = vcombine.high %v4723, %v4723
        %v4728 = vcombine.high %v4520, %v4520
        %v4730 = vunpack.c.l.s4 1966171168
        %v4731 = vunpack.c.0.s8 %v4730
        %v4732 = vlaneseq
        %v4733 = vshrl.u32 %v4732, 7
        %v4734 = vsub.s32 %v4731, %v4733
        %v4735 = vrot.slane %v4520, %v4734
        %v4737 = vunpack.c.l.s4 1966171168
        %v4738 = vunpack.c.0.s8 %v4737
        %v4739 = vlaneseq
        %v4740 = vshrl.u32 %v4739, 7
        %v4741 = vsub.s32 %v4738, %v4740
        %v4742 = vrot.slane %v4728, %v4741
        %v4743 = vcombine.high %v4735, %v4735
        %v4744 = vcombine.high %v4742, %v4742
        %v4746 = vunpack.c.l.s4 1966171168
        %v4747 = vunpack.c.0.s8 %v4746
        %v4748 = vlaneseq
        %v4749 = vshrl.u32 %v4748, 7
        %v4750 = vsub.s32 %v4747, %v4749
        %v4751 = vrot.slane %v4735, %v4750
        %v4753 = vunpack.c.l.s4 1966171168
        %v4754 = vunpack.c.0.s8 %v4753
        %v4755 = vlaneseq
        %v4756 = vshrl.u32 %v4755, 7
        %v4757 = vsub.s32 %v4754, %v4756
        %v4758 = vrot.slane %v4742, %v4757
        %v4760 = vunpack.c.l.s4 1966171168
        %v4761 = vunpack.c.0.s8 %v4760
        %v4762 = vlaneseq
        %v4763 = vshrl.u32 %v4762, 7
        %v4764 = vsub.s32 %v4761, %v4763
        %v4765 = vrot.slane %v4743, %v4764
        %v4767 = vunpack.c.l.s4 1966171168
        %v4768 = vunpack.c.0.s8 %v4767
        %v4769 = vlaneseq
        %v4770 = vshrl.u32 %v4769, 7
        %v4771 = vsub.s32 %v4768, %v4770
        %v4772 = vrot.slane %v4744, %v4771
        %v4773 = vcombine.high %v4751, %v4751
        %v4774 = vcombine.high %v4758, %v4758
        %v4775 = vcombine.high %v4765, %v4765
        %v4776 = vcombine.high %v4772, %v4772
        %v4777 = vcombine.high %v4521, %v4521
        %v4779 = vunpack.c.l.s4 1966171168
        %v4780 = vunpack.c.0.s8 %v4779
        %v4781 = vlaneseq
        %v4782 = vshrl.u32 %v4781, 7
        %v4783 = vsub.s32 %v4780, %v4782
        %v4784 = vrot.slane %v4521, %v4783
        %v4786 = vunpack.c.l.s4 1966171168
        %v4787 = vunpack.c.0.s8 %v4786
        %v4788 = vlaneseq
        %v4789 = vshrl.u32 %v4788, 7
        %v4790 = vsub.s32 %v4787, %v4789
        %v4791 = vrot.slane %v4777, %v4790
        %v4792 = vcombine.high %v4784, %v4784
        %v4793 = vcombine.high %v4791, %v4791
        %v4795 = vunpack.c.l.s4 1966171168
        %v4796 = vunpack.c.0.s8 %v4795
        %v4797 = vlaneseq
        %v4798 = vshrl.u32 %v4797, 7
        %v4799 = vsub.s32 %v4796, %v4798
        %v4800 = vrot.slane %v4784, %v4799
        %v4802 = vunpack.c.l.s4 1966171168
        %v4803 = vunpack.c.0.s8 %v4802
        %v4804 = vlaneseq
        %v4805 = vshrl.u32 %v4804, 7
        %v4806 = vsub.s32 %v4803, %v4805
        %v4807 = vrot.slane %v4791, %v4806
        %v4809 = vunpack.c.l.s4 1966171168
        %v4810 = vunpack.c.0.s8 %v4809
        %v4811 = vlaneseq
        %v4812 = vshrl.u32 %v4811, 7
        %v4813 = vsub.s32 %v4810, %v4812
        %v4814 = vrot.slane %v4792, %v4813
        %v4816 = vunpack.c.l.s4 1966171168
        %v4817 = vunpack.c.0.s8 %v4816
        %v4818 = vlaneseq
        %v4819 = vshrl.u32 %v4818, 7
        %v4820 = vsub.s32 %v4817, %v4819
        %v4821 = vrot.slane %v4793, %v4820
        %v4822 = vcombine.high %v4800, %v4800
        %v4823 = vcombine.high %v4807, %v4807
        %v4824 = vcombine.high %v4814, %v4814
        %v4825 = vcombine.high %v4821, %v4821
        %v4826 = vcombine.high %v4522, %v4522
        %v4828 = vunpack.c.l.s4 1966171168
        %v4829 = vunpack.c.0.s8 %v4828
        %v4830 = vlaneseq
        %v4831 = vshrl.u32 %v4830, 7
        %v4832 = vsub.s32 %v4829, %v4831
        %v4833 = vrot.slane %v4522, %v4832
        %v4835 = vunpack.c.l.s4 1966171168
        %v4836 = vunpack.c.0.s8 %v4835
        %v4837 = vlaneseq
        %v4838 = vshrl.u32 %v4837, 7
        %v4839 = vsub.s32 %v4836, %v4838
        %v4840 = vrot.slane %v4826, %v4839
        %v4841 = vcombine.high %v4833, %v4833
        %v4842 = vcombine.high %v4840, %v4840
        %v4844 = vunpack.c.l.s4 1966171168
        %v4845 = vunpack.c.0.s8 %v4844
        %v4846 = vlaneseq
        %v4847 = vshrl.u32 %v4846, 7
        %v4848 = vsub.s32 %v4845, %v4847
        %v4849 = vrot.slane %v4833, %v4848
        %v4851 = vunpack.c.l.s4 1966171168
        %v4852 = vunpack.c.0.s8 %v4851
        %v4853 = vlaneseq
        %v4854 = vshrl.u32 %v4853, 7
        %v4855 = vsub.s32 %v4852, %v4854
        %v4856 = vrot.slane %v4840, %v4855
        %v4858 = vunpack.c.l.s4 1966171168
        %v4859 = vunpack.c.0.s8 %v4858
        %v4860 = vlaneseq
        %v4861 = vshrl.u32 %v4860, 7
        %v4862 = vsub.s32 %v4859, %v4861
        %v4863 = vrot.slane %v4841, %v4862
        %v4865 = vunpack.c.l.s4 1966171168
        %v4866 = vunpack.c.0.s8 %v4865
        %v4867 = vlaneseq
        %v4868 = vshrl.u32 %v4867, 7
        %v4869 = vsub.s32 %v4866, %v4868
        %v4870 = vrot.slane %v4842, %v4869
        %v4871 = vcombine.high %v4849, %v4849
        %v4872 = vcombine.high %v4856, %v4856
        %v4873 = vcombine.high %v4863, %v4863
        %v4874 = vcombine.high %v4870, %v4870
        %v4875 = vcombine.high %v4523, %v4523
        %v4877 = vunpack.c.l.s4 1966171168
        %v4878 = vunpack.c.0.s8 %v4877
        %v4879 = vlaneseq
        %v4880 = vshrl.u32 %v4879, 7
        %v4881 = vsub.s32 %v4878, %v4880
        %v4882 = vrot.slane %v4523, %v4881
        %v4884 = vunpack.c.l.s4 1966171168
        %v4885 = vunpack.c.0.s8 %v4884
        %v4886 = vlaneseq
        %v4887 = vshrl.u32 %v4886, 7
        %v4888 = vsub.s32 %v4885, %v4887
        %v4889 = vrot.slane %v4875, %v4888
        %v4890 = vcombine.high %v4882, %v4882
        %v4891 = vcombine.high %v4889, %v4889
        %v4893 = vunpack.c.l.s4 1966171168
        %v4894 = vunpack.c.0.s8 %v4893
        %v4895 = vlaneseq
        %v4896 = vshrl.u32 %v4895, 7
        %v4897 = vsub.s32 %v4894, %v4896
        %v4898 = vrot.slane %v4882, %v4897
        %v4900 = vunpack.c.l.s4 1966171168
        %v4901 = vunpack.c.0.s8 %v4900
        %v4902 = vlaneseq
        %v4903 = vshrl.u32 %v4902, 7
        %v4904 = vsub.s32 %v4901, %v4903
        %v4905 = vrot.slane %v4889, %v4904
        %v4907 = vunpack.c.l.s4 1966171168
        %v4908 = vunpack.c.0.s8 %v4907
        %v4909 = vlaneseq
        %v4910 = vshrl.u32 %v4909, 7
        %v4911 = vsub.s32 %v4908, %v4910
        %v4912 = vrot.slane %v4890, %v4911
        %v4914 = vunpack.c.l.s4 1966171168
        %v4915 = vunpack.c.0.s8 %v4914
        %v4916 = vlaneseq
        %v4917 = vshrl.u32 %v4916, 7
        %v4918 = vsub.s32 %v4915, %v4917
        %v4919 = vrot.slane %v4891, %v4918
        %v4920 = vcombine.high %v4898, %v4898
        %v4921 = vcombine.high %v4905, %v4905
        %v4922 = vcombine.high %v4912, %v4912
        %v4923 = vcombine.high %v4919, %v4919
        %v4924 = vlaneseq
        %v4925 = vshrl.u32 %v4924, 7
        %v4926 = vsub.s32 0, %v4925
        %v4927 = vrot.slane %v4555, %v4926
        %v4928 = vlaneseq
        %v4929 = vshrl.u32 %v4928, 7
        %v4930 = vsub.s32 0, %v4929
        %v4931 = vrot.slane %v4569, %v4930
        %v4932 = vlaneseq
        %v4933 = vshrl.u32 %v4932, 7
        %v4934 = vsub.s32 0, %v4933
        %v4935 = vrot.slane %v4577, %v4934
        %v4936 = vlaneseq
        %v4937 = vshrl.u32 %v4936, 7
        %v4938 = vsub.s32 0, %v4937
        %v4939 = vrot.slane %v4579, %v4938
        %v4940 = vlaneseq
        %v4941 = vshrl.u32 %v4940, 7
        %v4942 = vsub.s32 0, %v4941
        %v4943 = vrot.slane %v4562, %v4942
        %v4944 = vlaneseq
        %v4945 = vshrl.u32 %v4944, 7
        %v4946 = vsub.s32 0, %v4945
        %v4947 = vrot.slane %v4576, %v4946
        %v4948 = vlaneseq
        %v4949 = vshrl.u32 %v4948, 7
        %v4950 = vsub.s32 0, %v4949
        %v4951 = vrot.slane %v4578, %v4950
        %v4952 = vlaneseq
        %v4953 = vshrl.u32 %v4952, 7
        %v4954 = vsub.s32 0, %v4953
        %v4955 = vrot.slane %v4580, %v4954
        %v4956 = vlaneseq
        %v4957 = vshrl.u32 %v4956, 7
        %v4958 = vsub.s32 0, %v4957
        %v4959 = vrot.slane %v4604, %v4958
        %v4960 = vlaneseq
        %v4961 = vshrl.u32 %v4960, 7
        %v4962 = vsub.s32 0, %v4961
        %v4963 = vrot.slane %v4618, %v4962
        %v4964 = vlaneseq
        %v4965 = vshrl.u32 %v4964, 7
        %v4966 = vsub.s32 0, %v4965
        %v4967 = vrot.slane %v4626, %v4966
        %v4968 = vlaneseq
        %v4969 = vshrl.u32 %v4968, 7
        %v4970 = vsub.s32 0, %v4969
        %v4971 = vrot.slane %v4628, %v4970
        %v4972 = vlaneseq
        %v4973 = vshrl.u32 %v4972, 7
        %v4974 = vsub.s32 0, %v4973
        %v4975 = vrot.slane %v4611, %v4974
        %v4976 = vlaneseq
        %v4977 = vshrl.u32 %v4976, 7
        %v4978 = vsub.s32 0, %v4977
        %v4979 = vrot.slane %v4625, %v4978
        %v4980 = vlaneseq
        %v4981 = vshrl.u32 %v4980, 7
        %v4982 = vsub.s32 0, %v4981
        %v4983 = vrot.slane %v4627, %v4982
        %v4984 = vlaneseq
        %v4985 = vshrl.u32 %v4984, 7
        %v4986 = vsub.s32 0, %v4985
        %v4987 = vrot.slane %v4629, %v4986
        %v4988 = vlaneseq
        %v4989 = vshrl.u32 %v4988, 7
        %v4990 = vsub.s32 0, %v4989
        %v4991 = vrot.slane %v4653, %v4990
        %v4992 = vlaneseq
        %v4993 = vshrl.u32 %v4992, 7
        %v4994 = vsub.s32 0, %v4993
        %v4995 = vrot.slane %v4667, %v4994
        %v4996 = vlaneseq
        %v4997 = vshrl.u32 %v4996, 7
        %v4998 = vsub.s32 0, %v4997
        %v4999 = vrot.slane %v4675, %v4998
        %v5000 = vlaneseq
        %v5001 = vshrl.u32 %v5000, 7
        %v5002 = vsub.s32 0, %v5001
        %v5003 = vrot.slane %v4677, %v5002
        %v5004 = vlaneseq
        %v5005 = vshrl.u32 %v5004, 7
        %v5006 = vsub.s32 0, %v5005
        %v5007 = vrot.slane %v4660, %v5006
        %v5008 = vlaneseq
        %v5009 = vshrl.u32 %v5008, 7
        %v5010 = vsub.s32 0, %v5009
        %v5011 = vrot.slane %v4674, %v5010
        %v5012 = vlaneseq
        %v5013 = vshrl.u32 %v5012, 7
        %v5014 = vsub.s32 0, %v5013
        %v5015 = vrot.slane %v4676, %v5014
        %v5016 = vlaneseq
        %v5017 = vshrl.u32 %v5016, 7
        %v5018 = vsub.s32 0, %v5017
        %v5019 = vrot.slane %v4678, %v5018
        %v5020 = vlaneseq
        %v5021 = vshrl.u32 %v5020, 7
        %v5022 = vsub.s32 0, %v5021
        %v5023 = vrot.slane %v4702, %v5022
        %v5024 = vlaneseq
        %v5025 = vshrl.u32 %v5024, 7
        %v5026 = vsub.s32 0, %v5025
        %v5027 = vrot.slane %v4716, %v5026
        %v5028 = vlaneseq
        %v5029 = vshrl.u32 %v5028, 7
        %v5030 = vsub.s32 0, %v5029
        %v5031 = vrot.slane %v4724, %v5030
        %v5032 = vlaneseq
        %v5033 = vshrl.u32 %v5032, 7
        %v5034 = vsub.s32 0, %v5033
        %v5035 = vrot.slane %v4726, %v5034
        %v5036 = vlaneseq
        %v5037 = vshrl.u32 %v5036, 7
        %v5038 = vsub.s32 0, %v5037
        %v5039 = vrot.slane %v4709, %v5038
        %v5040 = vlaneseq
        %v5041 = vshrl.u32 %v5040, 7
        %v5042 = vsub.s32 0, %v5041
        %v5043 = vrot.slane %v4723, %v5042
        %v5044 = vlaneseq
        %v5045 = vshrl.u32 %v5044, 7
        %v5046 = vsub.s32 0, %v5045
        %v5047 = vrot.slane %v4725, %v5046
        %v5048 = vlaneseq
        %v5049 = vshrl.u32 %v5048, 7
        %v5050 = vsub.s32 0, %v5049
        %v5051 = vrot.slane %v4727, %v5050
        %v5052 = vlaneseq
        %v5053 = vshrl.u32 %v5052, 7
        %v5054 = vsub.s32 0, %v5053
        %v5055 = vrot.slane %v4751, %v5054
        %v5056 = vlaneseq
        %v5057 = vshrl.u32 %v5056, 7
        %v5058 = vsub.s32 0, %v5057
        %v5059 = vrot.slane %v4765, %v5058
        %v5060 = vlaneseq
        %v5061 = vshrl.u32 %v5060, 7
        %v5062 = vsub.s32 0, %v5061
        %v5063 = vrot.slane %v4773, %v5062
        %v5064 = vlaneseq
        %v5065 = vshrl.u32 %v5064, 7
        %v5066 = vsub.s32 0, %v5065
        %v5067 = vrot.slane %v4775, %v5066
        %v5068 = vlaneseq
        %v5069 = vshrl.u32 %v5068, 7
        %v5070 = vsub.s32 0, %v5069
        %v5071 = vrot.slane %v4758, %v5070
        %v5072 = vlaneseq
        %v5073 = vshrl.u32 %v5072, 7
        %v5074 = vsub.s32 0, %v5073
        %v5075 = vrot.slane %v4772, %v5074
        %v5076 = vlaneseq
        %v5077 = vshrl.u32 %v5076, 7
        %v5078 = vsub.s32 0, %v5077
        %v5079 = vrot.slane %v4774, %v5078
        %v5080 = vlaneseq
        %v5081 = vshrl.u32 %v5080, 7
        %v5082 = vsub.s32 0, %v5081
        %v5083 = vrot.slane %v4776, %v5082
        %v5084 = vlaneseq
        %v5085 = vshrl.u32 %v5084, 7
        %v5086 = vsub.s32 0, %v5085
        %v5087 = vrot.slane %v4800, %v5086
        %v5088 = vlaneseq
        %v5089 = vshrl.u32 %v5088, 7
        %v5090 = vsub.s32 0, %v5089
        %v5091 = vrot.slane %v4814, %v5090
        %v5092 = vlaneseq
        %v5093 = vshrl.u32 %v5092, 7
        %v5094 = vsub.s32 0, %v5093
        %v5095 = vrot.slane %v4822, %v5094
        %v5096 = vlaneseq
        %v5097 = vshrl.u32 %v5096, 7
        %v5098 = vsub.s32 0, %v5097
        %v5099 = vrot.slane %v4824, %v5098
        %v5100 = vlaneseq
        %v5101 = vshrl.u32 %v5100, 7
        %v5102 = vsub.s32 0, %v5101
        %v5103 = vrot.slane %v4807, %v5102
        %v5104 = vlaneseq
        %v5105 = vshrl.u32 %v5104, 7
        %v5106 = vsub.s32 0, %v5105
        %v5107 = vrot.slane %v4821, %v5106
        %v5108 = vlaneseq
        %v5109 = vshrl.u32 %v5108, 7
        %v5110 = vsub.s32 0, %v5109
        %v5111 = vrot.slane %v4823, %v5110
        %v5112 = vlaneseq
        %v5113 = vshrl.u32 %v5112, 7
        %v5114 = vsub.s32 0, %v5113
        %v5115 = vrot.slane %v4825, %v5114
        %v5116 = vlaneseq
        %v5117 = vshrl.u32 %v5116, 7
        %v5118 = vsub.s32 0, %v5117
        %v5119 = vrot.slane %v4849, %v5118
        %v5120 = vlaneseq
        %v5121 = vshrl.u32 %v5120, 7
        %v5122 = vsub.s32 0, %v5121
        %v5123 = vrot.slane %v4863, %v5122
        %v5124 = vlaneseq
        %v5125 = vshrl.u32 %v5124, 7
        %v5126 = vsub.s32 0, %v5125
        %v5127 = vrot.slane %v4871, %v5126
        %v5128 = vlaneseq
        %v5129 = vshrl.u32 %v5128, 7
        %v5130 = vsub.s32 0, %v5129
        %v5131 = vrot.slane %v4873, %v5130
        %v5132 = vlaneseq
        %v5133 = vshrl.u32 %v5132, 7
        %v5134 = vsub.s32 0, %v5133
        %v5135 = vrot.slane %v4856, %v5134
        %v5136 = vlaneseq
        %v5137 = vshrl.u32 %v5136, 7
        %v5138 = vsub.s32 0, %v5137
        %v5139 = vrot.slane %v4870, %v5138
        %v5140 = vlaneseq
        %v5141 = vshrl.u32 %v5140, 7
        %v5142 = vsub.s32 0, %v5141
        %v5143 = vrot.slane %v4872, %v5142
        %v5144 = vlaneseq
        %v5145 = vshrl.u32 %v5144, 7
        %v5146 = vsub.s32 0, %v5145
        %v5147 = vrot.slane %v4874, %v5146
        %v5148 = vlaneseq
        %v5149 = vshrl.u32 %v5148, 7
        %v5150 = vsub.s32 0, %v5149
        %v5151 = vrot.slane %v4898, %v5150
        %v5152 = vlaneseq
        %v5153 = vshrl.u32 %v5152, 7
        %v5154 = vsub.s32 0, %v5153
        %v5155 = vrot.slane %v4912, %v5154
        %v5156 = vlaneseq
        %v5157 = vshrl.u32 %v5156, 7
        %v5158 = vsub.s32 0, %v5157
        %v5159 = vrot.slane %v4920, %v5158
        %v5160 = vlaneseq
        %v5161 = vshrl.u32 %v5160, 7
        %v5162 = vsub.s32 0, %v5161
        %v5163 = vrot.slane %v4922, %v5162
        %v5164 = vlaneseq
        %v5165 = vshrl.u32 %v5164, 7
        %v5166 = vsub.s32 0, %v5165
        %v5167 = vrot.slane %v4905, %v5166
        %v5168 = vlaneseq
        %v5169 = vshrl.u32 %v5168, 7
        %v5170 = vsub.s32 0, %v5169
        %v5171 = vrot.slane %v4919, %v5170
        %v5172 = vlaneseq
        %v5173 = vshrl.u32 %v5172, 7
        %v5174 = vsub.s32 0, %v5173
        %v5175 = vrot.slane %v4921, %v5174
        %v5176 = vlaneseq
        %v5177 = vshrl.u32 %v5176, 7
        %v5178 = vsub.s32 0, %v5177
        %v5179 = vrot.slane %v4923, %v5178
        %v5180 = vcombine.low %v4927, %v4931
        %v5181 = vcombine.low %v4935, %v4939
        %v5183 = vunpack.c.l.s4 1983009808
        %v5184 = vunpack.c.0.s8 %v5183
        %v5185 = vlaneseq
        %v5186 = vshrl.u32 %v5185, 7
        %v5187 = vsub.s32 %v5184, %v5186
        %v5188 = vrot.slane %v5180, %v5187
        %v5190 = vunpack.c.l.s4 1983009808
        %v5191 = vunpack.c.0.s8 %v5190
        %v5192 = vlaneseq
        %v5193 = vshrl.u32 %v5192, 7
        %v5194 = vsub.s32 %v5191, %v5193
        %v5195 = vrot.slane %v5181, %v5194
        %v5196 = vcombine.low %v5188, %v5195
        %v5197 = vcombine.low %v4943, %v4947
        %v5198 = vcombine.low %v4951, %v4955
        %v5200 = vunpack.c.l.s4 1983009808
        %v5201 = vunpack.c.0.s8 %v5200
        %v5202 = vlaneseq
        %v5203 = vshrl.u32 %v5202, 7
        %v5204 = vsub.s32 %v5201, %v5203
        %v5205 = vrot.slane %v5197, %v5204
        %v5207 = vunpack.c.l.s4 1983009808
        %v5208 = vunpack.c.0.s8 %v5207
        %v5209 = vlaneseq
        %v5210 = vshrl.u32 %v5209, 7
        %v5211 = vsub.s32 %v5208, %v5210
        %v5212 = vrot.slane %v5198, %v5211
        %v5213 = vcombine.low %v5205, %v5212
        %v5214 = vcombine.low %v4959, %v4963
        %v5215 = vcombine.low %v4967, %v4971
        %v5217 = vunpack.c.l.s4 1983009808
        %v5218 = vunpack.c.0.s8 %v5217
        %v5219 = vlaneseq
        %v5220 = vshrl.u32 %v5219, 7
        %v5221 = vsub.s32 %v5218, %v5220
        %v5222 = vrot.slane %v5214, %v5221
        %v5224 = vunpack.c.l.s4 1983009808
        %v5225 = vunpack.c.0.s8 %v5224
        %v5226 = vlaneseq
        %v5227 = vshrl.u32 %v5226, 7
        %v5228 = vsub.s32 %v5225, %v5227
        %v5229 = vrot.slane %v5215, %v5228
        %v5230 = vcombine.low %v5222, %v5229
        %v5231 = vcombine.low %v4975, %v4979
        %v5232 = vcombine.low %v4983, %v4987
        %v5234 = vunpack.c.l.s4 1983009808
        %v5235 = vunpack.c.0.s8 %v5234
        %v5236 = vlaneseq
        %v5237 = vshrl.u32 %v5236, 7
        %v5238 = vsub.s32 %v5235, %v5237
        %v5239 = vrot.slane %v5231, %v5238
        %v5241 = vunpack.c.l.s4 1983009808
        %v5242 = vunpack.c.0.s8 %v5241
        %v5243 = vlaneseq
        %v5244 = vshrl.u32 %v5243, 7
        %v5245 = vsub.s32 %v5242, %v5244
        %v5246 = vrot.slane %v5232, %v5245
        %v5247 = vcombine.low %v5239, %v5246
        %v5248 = vcombine.low %v4991, %v4995
        %v5249 = vcombine.low %v4999, %v5003
        %v5251 = vunpack.c.l.s4 1983009808
        %v5252 = vunpack.c.0.s8 %v5251
        %v5253 = vlaneseq
        %v5254 = vshrl.u32 %v5253, 7
        %v5255 = vsub.s32 %v5252, %v5254
        %v5256 = vrot.slane %v5248, %v5255
        %v5258 = vunpack.c.l.s4 1983009808
        %v5259 = vunpack.c.0.s8 %v5258
        %v5260 = vlaneseq
        %v5261 = vshrl.u32 %v5260, 7
        %v5262 = vsub.s32 %v5259, %v5261
        %v5263 = vrot.slane %v5249, %v5262
        %v5264 = vcombine.low %v5256, %v5263
        %v5265 = vcombine.low %v5007, %v5011
        %v5266 = vcombine.low %v5015, %v5019
        %v5268 = vunpack.c.l.s4 1983009808
        %v5269 = vunpack.c.0.s8 %v5268
        %v5270 = vlaneseq
        %v5271 = vshrl.u32 %v5270, 7
        %v5272 = vsub.s32 %v5269, %v5271
        %v5273 = vrot.slane %v5265, %v5272
        %v5275 = vunpack.c.l.s4 1983009808
        %v5276 = vunpack.c.0.s8 %v5275
        %v5277 = vlaneseq
        %v5278 = vshrl.u32 %v5277, 7
        %v5279 = vsub.s32 %v5276, %v5278
        %v5280 = vrot.slane %v5266, %v5279
        %v5281 = vcombine.low %v5273, %v5280
        %v5282 = vcombine.low %v5023, %v5027
        %v5283 = vcombine.low %v5031, %v5035
        %v5285 = vunpack.c.l.s4 1983009808
        %v5286 = vunpack.c.0.s8 %v5285
        %v5287 = vlaneseq
        %v5288 = vshrl.u32 %v5287, 7
        %v5289 = vsub.s32 %v5286, %v5288
        %v5290 = vrot.slane %v5282, %v5289
        %v5292 = vunpack.c.l.s4 1983009808
        %v5293 = vunpack.c.0.s8 %v5292
        %v5294 = vlaneseq
        %v5295 = vshrl.u32 %v5294, 7
        %v5296 = vsub.s32 %v5293, %v5295
        %v5297 = vrot.slane %v5283, %v5296
        %v5298 = vcombine.low %v5290, %v5297
        %v5299 = vcombine.low %v5039, %v5043
        %v5300 = vcombine.low %v5047, %v5051
        %v5302 = vunpack.c.l.s4 1983009808
        %v5303 = vunpack.c.0.s8 %v5302
        %v5304 = vlaneseq
        %v5305 = vshrl.u32 %v5304, 7
        %v5306 = vsub.s32 %v5303, %v5305
        %v5307 = vrot.slane %v5299, %v5306
        %v5309 = vunpack.c.l.s4 1983009808
        %v5310 = vunpack.c.0.s8 %v5309
        %v5311 = vlaneseq
        %v5312 = vshrl.u32 %v5311, 7
        %v5313 = vsub.s32 %v5310, %v5312
        %v5314 = vrot.slane %v5300, %v5313
        %v5315 = vcombine.low %v5307, %v5314
        %v5316 = vcombine.low %v5055, %v5059
        %v5317 = vcombine.low %v5063, %v5067
        %v5319 = vunpack.c.l.s4 1983009808
        %v5320 = vunpack.c.0.s8 %v5319
        %v5321 = vlaneseq
        %v5322 = vshrl.u32 %v5321, 7
        %v5323 = vsub.s32 %v5320, %v5322
        %v5324 = vrot.slane %v5316, %v5323
        %v5326 = vunpack.c.l.s4 1983009808
        %v5327 = vunpack.c.0.s8 %v5326
        %v5328 = vlaneseq
        %v5329 = vshrl.u32 %v5328, 7
        %v5330 = vsub.s32 %v5327, %v5329
        %v5331 = vrot.slane %v5317, %v5330
        %v5332 = vcombine.low %v5324, %v5331
        %v5333 = vcombine.low %v5071, %v5075
        %v5334 = vcombine.low %v5079, %v5083
        %v5336 = vunpack.c.l.s4 1983009808
        %v5337 = vunpack.c.0.s8 %v5336
        %v5338 = vlaneseq
        %v5339 = vshrl.u32 %v5338, 7
        %v5340 = vsub.s32 %v5337, %v5339
        %v5341 = vrot.slane %v5333, %v5340
        %v5343 = vunpack.c.l.s4 1983009808
        %v5344 = vunpack.c.0.s8 %v5343
        %v5345 = vlaneseq
        %v5346 = vshrl.u32 %v5345, 7
        %v5347 = vsub.s32 %v5344, %v5346
        %v5348 = vrot.slane %v5334, %v5347
        %v5349 = vcombine.low %v5341, %v5348
        %v5350 = vcombine.low %v5087, %v5091
        %v5351 = vcombine.low %v5095, %v5099
        %v5353 = vunpack.c.l.s4 1983009808
        %v5354 = vunpack.c.0.s8 %v5353
        %v5355 = vlaneseq
        %v5356 = vshrl.u32 %v5355, 7
        %v5357 = vsub.s32 %v5354, %v5356
        %v5358 = vrot.slane %v5350, %v5357
        %v5360 = vunpack.c.l.s4 1983009808
        %v5361 = vunpack.c.0.s8 %v5360
        %v5362 = vlaneseq
        %v5363 = vshrl.u32 %v5362, 7
        %v5364 = vsub.s32 %v5361, %v5363
        %v5365 = vrot.slane %v5351, %v5364
        %v5366 = vcombine.low %v5358, %v5365
        %v5367 = vcombine.low %v5103, %v5107
        %v5368 = vcombine.low %v5111, %v5115
        %v5370 = vunpack.c.l.s4 1983009808
        %v5371 = vunpack.c.0.s8 %v5370
        %v5372 = vlaneseq
        %v5373 = vshrl.u32 %v5372, 7
        %v5374 = vsub.s32 %v5371, %v5373
        %v5375 = vrot.slane %v5367, %v5374
        %v5377 = vunpack.c.l.s4 1983009808
        %v5378 = vunpack.c.0.s8 %v5377
        %v5379 = vlaneseq
        %v5380 = vshrl.u32 %v5379, 7
        %v5381 = vsub.s32 %v5378, %v5380
        %v5382 = vrot.slane %v5368, %v5381
        %v5383 = vcombine.low %v5375, %v5382
        %v5384 = vcombine.low %v5119, %v5123
        %v5385 = vcombine.low %v5127, %v5131
        %v5387 = vunpack.c.l.s4 1983009808
        %v5388 = vunpack.c.0.s8 %v5387
        %v5389 = vlaneseq
        %v5390 = vshrl.u32 %v5389, 7
        %v5391 = vsub.s32 %v5388, %v5390
        %v5392 = vrot.slane %v5384, %v5391
        %v5394 = vunpack.c.l.s4 1983009808
        %v5395 = vunpack.c.0.s8 %v5394
        %v5396 = vlaneseq
        %v5397 = vshrl.u32 %v5396, 7
        %v5398 = vsub.s32 %v5395, %v5397
        %v5399 = vrot.slane %v5385, %v5398
        %v5400 = vcombine.low %v5392, %v5399
        %v5401 = vcombine.low %v5135, %v5139
        %v5402 = vcombine.low %v5143, %v5147
        %v5404 = vunpack.c.l.s4 1983009808
        %v5405 = vunpack.c.0.s8 %v5404
        %v5406 = vlaneseq
        %v5407 = vshrl.u32 %v5406, 7
        %v5408 = vsub.s32 %v5405, %v5407
        %v5409 = vrot.slane %v5401, %v5408
        %v5411 = vunpack.c.l.s4 1983009808
        %v5412 = vunpack.c.0.s8 %v5411
        %v5413 = vlaneseq
        %v5414 = vshrl.u32 %v5413, 7
        %v5415 = vsub.s32 %v5412, %v5414
        %v5416 = vrot.slane %v5402, %v5415
        %v5417 = vcombine.low %v5409, %v5416
        %v5418 = vcombine.low %v5151, %v5155
        %v5419 = vcombine.low %v5159, %v5163
        %v5421 = vunpack.c.l.s4 1983009808
        %v5422 = vunpack.c.0.s8 %v5421
        %v5423 = vlaneseq
        %v5424 = vshrl.u32 %v5423, 7
        %v5425 = vsub.s32 %v5422, %v5424
        %v5426 = vrot.slane %v5418, %v5425
        %v5428 = vunpack.c.l.s4 1983009808
        %v5429 = vunpack.c.0.s8 %v5428
        %v5430 = vlaneseq
        %v5431 = vshrl.u32 %v5430, 7
        %v5432 = vsub.s32 %v5429, %v5431
        %v5433 = vrot.slane %v5419, %v5432
        %v5434 = vcombine.low %v5426, %v5433
        %v5435 = vcombine.low %v5167, %v5171
        %v5436 = vcombine.low %v5175, %v5179
        %v5438 = vunpack.c.l.s4 1983009808
        %v5439 = vunpack.c.0.s8 %v5438
        %v5440 = vlaneseq
        %v5441 = vshrl.u32 %v5440, 7
        %v5442 = vsub.s32 %v5439, %v5441
        %v5443 = vrot.slane %v5435, %v5442
        %v5445 = vunpack.c.l.s4 1983009808
        %v5446 = vunpack.c.0.s8 %v5445
        %v5447 = vlaneseq
        %v5448 = vshrl.u32 %v5447, 7
        %v5449 = vsub.s32 %v5446, %v5448
        %v5450 = vrot.slane %v5436, %v5449
        %v5451 = vcombine.low %v5443, %v5450
        %v5452 = vrot.slane %v5196, 7
        %v5453 = vrot.slane %v5213, 7
        %v5454 = vsel %vm512, %v5452, %v5453
        %v5455 = vrot.slane %v5230, 7
        %v5456 = vrot.slane %v5247, 7
        %v5457 = vsel %vm512, %v5455, %v5456
        %v5458 = vrot.slane %v5264, 7
        %v5459 = vrot.slane %v5281, 7
        %v5460 = vsel %vm512, %v5458, %v5459
        %v5461 = vrot.slane %v5298, 7
        %v5462 = vrot.slane %v5315, 7
        %v5463 = vsel %vm512, %v5461, %v5462
        %v5464 = vrot.slane %v5332, 7
        %v5465 = vrot.slane %v5349, 7
        %v5466 = vsel %vm512, %v5464, %v5465
        %v5467 = vrot.slane %v5366, 7
        %v5468 = vrot.slane %v5383, 7
        %v5469 = vsel %vm512, %v5467, %v5468
        %v5470 = vrot.slane %v5400, 7
        %v5471 = vrot.slane %v5417, 7
        %v5472 = vsel %vm512, %v5470, %v5471
        %v5473 = vrot.slane %v5434, 7
        %v5474 = vrot.slane %v5451, 7
        %v5475 = vsel %vm512, %v5473, %v5474
        %v5500 = vsel %vm512, 0.0, %v5452
        %v5501 = vsel %vm512, 0.0, %v5455
        %v5502 = vsel %vm512, 0.0, %v5458
        %v5503 = vsel %vm512, 0.0, %v5461
        %v5504 = vsel %vm512, 0.0, %v5464
        %v5505 = vsel %vm512, 0.0, %v5467
        %v5506 = vsel %vm512, 0.0, %v5470
        %v5507 = vsel %vm512, 0.0, %v5473
        %v5508 = vsel %vm512, %v5453, 0.0
        %v5509 = vsel %vm512, %v5456, 0.0
        %v5510 = vsel %vm512, %v5459, 0.0
        %v5511 = vsel %vm512, %v5462, 0.0
        %v5512 = vsel %vm512, %v5465, 0.0
        %v5513 = vsel %vm512, %v5468, 0.0
        %v5514 = vsel %vm512, %v5471, 0.0
        %v5515 = vsel %vm512, %v5474, 0.0
        %v5532 = vrot.slane %v5500, 1
        %v5533 = vrot.slane %v5454, 1
        %v5534 = vsel %vm678, %v5532, %v5533
        %v5535 = vrot.slane %v5508, 1
        %v5536 = vsel %vm678, %v5533, %v5535
        %v5537 = vrot.slane %v5501, 1
        %v5538 = vrot.slane %v5457, 1
        %v5539 = vsel %vm678, %v5537, %v5538
        %v5540 = vrot.slane %v5509, 1
        %v5541 = vsel %vm678, %v5538, %v5540
        %v5542 = vrot.slane %v5502, 1
        %v5543 = vrot.slane %v5460, 1
        %v5544 = vsel %vm678, %v5542, %v5543
        %v5545 = vrot.slane %v5510, 1
        %v5546 = vsel %vm678, %v5543, %v5545
        %v5547 = vrot.slane %v5503, 1
        %v5548 = vrot.slane %v5463, 1
        %v5549 = vsel %vm678, %v5547, %v5548
        %v5550 = vrot.slane %v5511, 1
        %v5551 = vsel %vm678, %v5548, %v5550
        %v5552 = vrot.slane %v5504, 1
        %v5553 = vrot.slane %v5466, 1
        %v5554 = vsel %vm678, %v5552, %v5553
        %v5555 = vrot.slane %v5512, 1
        %v5556 = vsel %vm678, %v5553, %v5555
        %v5557 = vrot.slane %v5505, 1
        %v5558 = vrot.slane %v5469, 1
        %v5559 = vsel %vm678, %v5557, %v5558
        %v5560 = vrot.slane %v5513, 1
        %v5561 = vsel %vm678, %v5558, %v5560
        %v5562 = vrot.slane %v5506, 1
        %v5563 = vrot.slane %v5472, 1
        %v5564 = vsel %vm678, %v5562, %v5563
        %v5565 = vrot.slane %v5514, 1
        %v5566 = vsel %vm678, %v5563, %v5565
        %v5567 = vrot.slane %v5507, 1
        %v5568 = vrot.slane %v5475, 1
        %v5569 = vsel %vm678, %v5567, %v5568
        %v5570 = vrot.slane %v5515, 1
        %v5571 = vsel %vm678, %v5568, %v5570
        %5572 = vrot.lane.b32.xlu0 %v681, 16
        %v5573 = vpop.permute.xlu0 %5572
        %5574 = vrot.lane.b32.xlu0 %v683, 16
        %v5575 = vpop.permute.xlu0 %5574
        %5576 = vrot.lane.b32.xlu0 %v5534, 16
        %v5577 = vpop.permute.xlu0 %5576
        %5578 = vrot.lane.b32.xlu0 %v5536, 16
        %v5579 = vpop.permute.xlu0 %5578
        %5580 = vrot.lane.b32.xlu0 %v5539, 16
        %v5581 = vpop.permute.xlu0 %5580
        %5582 = vrot.lane.b32.xlu0 %v5541, 16
        %v5583 = vpop.permute.xlu0 %5582
        %5584 = vrot.lane.b32.xlu0 %v5544, 16
        %v5585 = vpop.permute.xlu0 %5584
        %5586 = vrot.lane.b32.xlu0 %v5546, 16
        %v5587 = vpop.permute.xlu0 %5586
        %5588 = vrot.lane.b32.xlu0 %v5549, 16
        %v5589 = vpop.permute.xlu0 %5588
        %5590 = vrot.lane.b32.xlu0 %v5551, 16
        %v5591 = vpop.permute.xlu0 %5590
        %5592 = vrot.lane.b32.xlu0 %v5554, 16
        %v5593 = vpop.permute.xlu0 %5592
        %5594 = vrot.lane.b32.xlu0 %v5556, 16
        %v5595 = vpop.permute.xlu0 %5594
        %5596 = vrot.lane.b32.xlu0 %v5559, 16
        %v5597 = vpop.permute.xlu0 %5596
        %5598 = vrot.lane.b32.xlu0 %v5561, 16
        %v5599 = vpop.permute.xlu0 %5598
        %5600 = vrot.lane.b32.xlu0 %v5564, 16
        %v5601 = vpop.permute.xlu0 %5600
        %5602 = vrot.lane.b32.xlu0 %v5566, 16
        %v5603 = vpop.permute.xlu0 %5602
        %5604 = vrot.lane.b32.xlu0 %v5569, 16
        %v5605 = vpop.permute.xlu0 %5604
        %5606 = vrot.lane.b32.xlu0 %v5571, 16
        %v5607 = vpop.permute.xlu0 %5606
        %v5626 = vrot.slane %v5500, 2
        %v5627 = vrot.slane %v5454, 2
        %v5628 = vsel %vm855, %v5626, %v5627
        %v5629 = vrot.slane %v5508, 2
        %v5630 = vsel %vm855, %v5627, %v5629
        %v5631 = vrot.slane %v5501, 2
        %v5632 = vrot.slane %v5457, 2
        %v5633 = vsel %vm855, %v5631, %v5632
        %v5634 = vrot.slane %v5509, 2
        %v5635 = vsel %vm855, %v5632, %v5634
        %v5636 = vrot.slane %v5502, 2
        %v5637 = vrot.slane %v5460, 2
        %v5638 = vsel %vm855, %v5636, %v5637
        %v5639 = vrot.slane %v5510, 2
        %v5640 = vsel %vm855, %v5637, %v5639
        %v5641 = vrot.slane %v5503, 2
        %v5642 = vrot.slane %v5463, 2
        %v5643 = vsel %vm855, %v5641, %v5642
        %v5644 = vrot.slane %v5511, 2
        %v5645 = vsel %vm855, %v5642, %v5644
        %v5646 = vrot.slane %v5504, 2
        %v5647 = vrot.slane %v5466, 2
        %v5648 = vsel %vm855, %v5646, %v5647
        %v5649 = vrot.slane %v5512, 2
        %v5650 = vsel %vm855, %v5647, %v5649
        %v5651 = vrot.slane %v5505, 2
        %v5652 = vrot.slane %v5469, 2
        %v5653 = vsel %vm855, %v5651, %v5652
        %v5654 = vrot.slane %v5513, 2
        %v5655 = vsel %vm855, %v5652, %v5654
        %v5656 = vrot.slane %v5506, 2
        %v5657 = vrot.slane %v5472, 2
        %v5658 = vsel %vm855, %v5656, %v5657
        %v5659 = vrot.slane %v5514, 2
        %v5660 = vsel %vm855, %v5657, %v5659
        %v5661 = vrot.slane %v5507, 2
        %v5662 = vrot.slane %v5475, 2
        %v5663 = vsel %vm855, %v5661, %v5662
        %v5664 = vrot.slane %v5515, 2
        %v5665 = vsel %vm855, %v5662, %v5664
        %5666 = vrot.lane.b32.xlu0 %v858, 32
        %v5667 = vpop.permute.xlu0 %5666
        %5668 = vrot.lane.b32.xlu0 %v860, 32
        %v5669 = vpop.permute.xlu0 %5668
        %5670 = vrot.lane.b32.xlu0 %v5628, 32
        %v5671 = vpop.permute.xlu0 %5670
        %5672 = vrot.lane.b32.xlu0 %v5630, 32
        %v5673 = vpop.permute.xlu0 %5672
        %5674 = vrot.lane.b32.xlu0 %v5633, 32
        %v5675 = vpop.permute.xlu0 %5674
        %5676 = vrot.lane.b32.xlu0 %v5635, 32
        %v5677 = vpop.permute.xlu0 %5676
        %5678 = vrot.lane.b32.xlu0 %v5638, 32
        %v5679 = vpop.permute.xlu0 %5678
        %5680 = vrot.lane.b32.xlu0 %v5640, 32
        %v5681 = vpop.permute.xlu0 %5680
        %5682 = vrot.lane.b32.xlu0 %v5643, 32
        %v5683 = vpop.permute.xlu0 %5682
        %5684 = vrot.lane.b32.xlu0 %v5645, 32
        %v5685 = vpop.permute.xlu0 %5684
        %5686 = vrot.lane.b32.xlu0 %v5648, 32
        %v5687 = vpop.permute.xlu0 %5686
        %5688 = vrot.lane.b32.xlu0 %v5650, 32
        %v5689 = vpop.permute.xlu0 %5688
        %5690 = vrot.lane.b32.xlu0 %v5653, 32
        %v5691 = vpop.permute.xlu0 %5690
        %5692 = vrot.lane.b32.xlu0 %v5655, 32
        %v5693 = vpop.permute.xlu0 %5692
        %5694 = vrot.lane.b32.xlu0 %v5658, 32
        %v5695 = vpop.permute.xlu0 %5694
        %5696 = vrot.lane.b32.xlu0 %v5660, 32
        %v5697 = vpop.permute.xlu0 %5696
        %5698 = vrot.lane.b32.xlu0 %v5663, 32
        %v5699 = vpop.permute.xlu0 %5698
        %5700 = vrot.lane.b32.xlu0 %v5665, 32
        %v5701 = vpop.permute.xlu0 %5700
        %5720 = vrot.lane.b32.xlu0 %v5500, 48
        %v5721 = vpop.permute.xlu0 %5720
        %5722 = vrot.lane.b32.xlu0 %v5454, 48
        %v5723 = vpop.permute.xlu0 %5722
        %5724 = vrot.lane.b32.xlu0 %v5501, 48
        %v5725 = vpop.permute.xlu0 %5724
        %5726 = vrot.lane.b32.xlu0 %v5457, 48
        %v5727 = vpop.permute.xlu0 %5726
        %5728 = vrot.lane.b32.xlu0 %v5502, 48
        %v5729 = vpop.permute.xlu0 %5728
        %5730 = vrot.lane.b32.xlu0 %v5460, 48
        %v5731 = vpop.permute.xlu0 %5730
        %5732 = vrot.lane.b32.xlu0 %v5503, 48
        %v5733 = vpop.permute.xlu0 %5732
        %5734 = vrot.lane.b32.xlu0 %v5463, 48
        %v5735 = vpop.permute.xlu0 %5734
        %5736 = vrot.lane.b32.xlu0 %v5504, 48
        %v5737 = vpop.permute.xlu0 %5736
        %5738 = vrot.lane.b32.xlu0 %v5466, 48
        %v5739 = vpop.permute.xlu0 %5738
        %5740 = vrot.lane.b32.xlu0 %v5505, 48
        %v5741 = vpop.permute.xlu0 %5740
        %5742 = vrot.lane.b32.xlu0 %v5469, 48
        %v5743 = vpop.permute.xlu0 %5742
        %5744 = vrot.lane.b32.xlu0 %v5506, 48
        %v5745 = vpop.permute.xlu0 %5744
        %5746 = vrot.lane.b32.xlu0 %v5472, 48
        %v5747 = vpop.permute.xlu0 %5746
        %5748 = vrot.lane.b32.xlu0 %v5507, 48
        %v5749 = vpop.permute.xlu0 %5748
        %5750 = vrot.lane.b32.xlu0 %v5475, 48
        %v5751 = vpop.permute.xlu0 %5750
        %5768 = vrot.lane.b32.xlu0 %v5534, 64
        %v5769 = vpop.permute.xlu0 %5768
        %5770 = vrot.lane.b32.xlu0 %v5536, 64
        %v5771 = vpop.permute.xlu0 %5770
        %5772 = vrot.lane.b32.xlu0 %v5539, 64
        %v5773 = vpop.permute.xlu0 %5772
        %5774 = vrot.lane.b32.xlu0 %v5541, 64
        %v5775 = vpop.permute.xlu0 %5774
        %5776 = vrot.lane.b32.xlu0 %v5544, 64
        %v5777 = vpop.permute.xlu0 %5776
        %5778 = vrot.lane.b32.xlu0 %v5546, 64
        %v5779 = vpop.permute.xlu0 %5778
        %5780 = vrot.lane.b32.xlu0 %v5549, 64
        %v5781 = vpop.permute.xlu0 %5780
        %5782 = vrot.lane.b32.xlu0 %v5551, 64
        %v5783 = vpop.permute.xlu0 %5782
        %5784 = vrot.lane.b32.xlu0 %v5554, 64
        %v5785 = vpop.permute.xlu0 %5784
        %5786 = vrot.lane.b32.xlu0 %v5556, 64
        %v5787 = vpop.permute.xlu0 %5786
        %5788 = vrot.lane.b32.xlu0 %v5559, 64
        %v5789 = vpop.permute.xlu0 %5788
        %5790 = vrot.lane.b32.xlu0 %v5561, 64
        %v5791 = vpop.permute.xlu0 %5790
        %5792 = vrot.lane.b32.xlu0 %v5564, 64
        %v5793 = vpop.permute.xlu0 %5792
        %5794 = vrot.lane.b32.xlu0 %v5566, 64
        %v5795 = vpop.permute.xlu0 %5794
        %5796 = vrot.lane.b32.xlu0 %v5569, 64
        %v5797 = vpop.permute.xlu0 %5796
        %5798 = vrot.lane.b32.xlu0 %v5571, 64
        %v5799 = vpop.permute.xlu0 %5798
        %5816 = vrot.lane.b32.xlu0 %v5628, 80
        %v5817 = vpop.permute.xlu0 %5816
        %5818 = vrot.lane.b32.xlu0 %v5630, 80
        %v5819 = vpop.permute.xlu0 %5818
        %5820 = vrot.lane.b32.xlu0 %v5633, 80
        %v5821 = vpop.permute.xlu0 %5820
        %5822 = vrot.lane.b32.xlu0 %v5635, 80
        %v5823 = vpop.permute.xlu0 %5822
        %5824 = vrot.lane.b32.xlu0 %v5638, 80
        %v5825 = vpop.permute.xlu0 %5824
        %5826 = vrot.lane.b32.xlu0 %v5640, 80
        %v5827 = vpop.permute.xlu0 %5826
        %5828 = vrot.lane.b32.xlu0 %v5643, 80
        %v5829 = vpop.permute.xlu0 %5828
        %5830 = vrot.lane.b32.xlu0 %v5645, 80
        %v5831 = vpop.permute.xlu0 %5830
        %5832 = vrot.lane.b32.xlu0 %v5648, 80
        %v5833 = vpop.permute.xlu0 %5832
        %5834 = vrot.lane.b32.xlu0 %v5650, 80
        %v5835 = vpop.permute.xlu0 %5834
        %5836 = vrot.lane.b32.xlu0 %v5653, 80
        %v5837 = vpop.permute.xlu0 %5836
        %5838 = vrot.lane.b32.xlu0 %v5655, 80
        %v5839 = vpop.permute.xlu0 %5838
        %5840 = vrot.lane.b32.xlu0 %v5658, 80
        %v5841 = vpop.permute.xlu0 %5840
        %5842 = vrot.lane.b32.xlu0 %v5660, 80
        %v5843 = vpop.permute.xlu0 %5842
        %5844 = vrot.lane.b32.xlu0 %v5663, 80
        %v5845 = vpop.permute.xlu0 %5844
        %5846 = vrot.lane.b32.xlu0 %v5665, 80
        %v5847 = vpop.permute.xlu0 %5846
        %5864 = vrot.lane.b32.xlu0 %v5500, 96
        %v5865 = vpop.permute.xlu0 %5864
        %5866 = vrot.lane.b32.xlu0 %v5454, 96
        %v5867 = vpop.permute.xlu0 %5866
        %5868 = vrot.lane.b32.xlu0 %v5501, 96
        %v5869 = vpop.permute.xlu0 %5868
        %5870 = vrot.lane.b32.xlu0 %v5457, 96
        %v5871 = vpop.permute.xlu0 %5870
        %5872 = vrot.lane.b32.xlu0 %v5502, 96
        %v5873 = vpop.permute.xlu0 %5872
        %5874 = vrot.lane.b32.xlu0 %v5460, 96
        %v5875 = vpop.permute.xlu0 %5874
        %5876 = vrot.lane.b32.xlu0 %v5503, 96
        %v5877 = vpop.permute.xlu0 %5876
        %5878 = vrot.lane.b32.xlu0 %v5463, 96
        %v5879 = vpop.permute.xlu0 %5878
        %5880 = vrot.lane.b32.xlu0 %v5504, 96
        %v5881 = vpop.permute.xlu0 %5880
        %5882 = vrot.lane.b32.xlu0 %v5466, 96
        %v5883 = vpop.permute.xlu0 %5882
        %5884 = vrot.lane.b32.xlu0 %v5505, 96
        %v5885 = vpop.permute.xlu0 %5884
        %5886 = vrot.lane.b32.xlu0 %v5469, 96
        %v5887 = vpop.permute.xlu0 %5886
        %5888 = vrot.lane.b32.xlu0 %v5506, 96
        %v5889 = vpop.permute.xlu0 %5888
        %5890 = vrot.lane.b32.xlu0 %v5472, 96
        %v5891 = vpop.permute.xlu0 %5890
        %5892 = vrot.lane.b32.xlu0 %v5507, 96
        %v5893 = vpop.permute.xlu0 %5892
        %5894 = vrot.lane.b32.xlu0 %v5475, 96
        %v5895 = vpop.permute.xlu0 %5894
        %5896 = vrot.lane.b32.xlu0 %v514, 96
        %v5897 = vpop.permute.xlu0 %5896
        %5915 = vrot.lane.b32.xlu0 %v5534, 112
        %v5916 = vpop.permute.xlu0 %5915
        %5917 = vrot.lane.b32.xlu0 %v5536, 112
        %v5918 = vpop.permute.xlu0 %5917
        %5919 = vrot.lane.b32.xlu0 %v5539, 112
        %v5920 = vpop.permute.xlu0 %5919
        %5921 = vrot.lane.b32.xlu0 %v5541, 112
        %v5922 = vpop.permute.xlu0 %5921
        %5923 = vrot.lane.b32.xlu0 %v5544, 112
        %v5924 = vpop.permute.xlu0 %5923
        %5925 = vrot.lane.b32.xlu0 %v5546, 112
        %v5926 = vpop.permute.xlu0 %5925
        %5927 = vrot.lane.b32.xlu0 %v5549, 112
        %v5928 = vpop.permute.xlu0 %5927
        %5929 = vrot.lane.b32.xlu0 %v5551, 112
        %v5930 = vpop.permute.xlu0 %5929
        %5931 = vrot.lane.b32.xlu0 %v5554, 112
        %v5932 = vpop.permute.xlu0 %5931
        %5933 = vrot.lane.b32.xlu0 %v5556, 112
        %v5934 = vpop.permute.xlu0 %5933
        %5935 = vrot.lane.b32.xlu0 %v5559, 112
        %v5936 = vpop.permute.xlu0 %5935
        %5937 = vrot.lane.b32.xlu0 %v5561, 112
        %v5938 = vpop.permute.xlu0 %5937
        %5939 = vrot.lane.b32.xlu0 %v5564, 112
        %v5940 = vpop.permute.xlu0 %5939
        %5941 = vrot.lane.b32.xlu0 %v5566, 112
        %v5942 = vpop.permute.xlu0 %5941
        %5943 = vrot.lane.b32.xlu0 %v5569, 112
        %v5944 = vpop.permute.xlu0 %5943
        %5945 = vrot.lane.b32.xlu0 %v5571, 112
        %v5946 = vpop.permute.xlu0 %5945
        %5947 = vrot.lane.b32.xlu0 %v681, 112
        %v5948 = vpop.permute.xlu0 %5947
        %5949 = vrot.lane.b32.xlu0 %v683, 112
        %v5950 = vpop.permute.xlu0 %5949
        %v5987 = vsel %vm3019, %v612, %v5573
        %v5988 = vsel %vm3019, %v514, %v5575
        %v5989 = vsel %vm3019, %v5500, %v5577
        %v5990 = vsel %vm3019, %v5454, %v5579
        %v5991 = vsel %vm3019, %v5501, %v5581
        %v5992 = vsel %vm3019, %v5457, %v5583
        %v5993 = vsel %vm3019, %v5502, %v5585
        %v5994 = vsel %vm3019, %v5460, %v5587
        %v5995 = vsel %vm3019, %v5503, %v5589
        %v5996 = vsel %vm3019, %v5463, %v5591
        %v5997 = vsel %vm3019, %v5504, %v5593
        %v5998 = vsel %vm3019, %v5466, %v5595
        %v5999 = vsel %vm3019, %v5505, %v5597
        %v6000 = vsel %vm3019, %v5469, %v5599
        %v6001 = vsel %vm3019, %v5506, %v5601
        %v6002 = vsel %vm3019, %v5472, %v5603
        %v6003 = vsel %vm3019, %v5507, %v5605
        %v6004 = vsel %vm3019, %v5475, %v5607
        %v6005 = vsel %vm3028, %v5987, %v5667
        %v6006 = vsel %vm3028, %v5988, %v5669
        %v6007 = vsel %vm3028, %v5989, %v5671
        %v6008 = vsel %vm3028, %v5990, %v5673
        %v6009 = vsel %vm3028, %v5991, %v5675
        %v6010 = vsel %vm3028, %v5992, %v5677
        %v6011 = vsel %vm3028, %v5993, %v5679
        %v6012 = vsel %vm3028, %v5994, %v5681
        %v6013 = vsel %vm3028, %v5995, %v5683
        %v6014 = vsel %vm3028, %v5996, %v5685
        %v6015 = vsel %vm3028, %v5997, %v5687
        %v6016 = vsel %vm3028, %v5998, %v5689
        %v6017 = vsel %vm3028, %v5999, %v5691
        %v6018 = vsel %vm3028, %v6000, %v5693
        %v6019 = vsel %vm3028, %v6001, %v5695
        %v6020 = vsel %vm3028, %v6002, %v5697
        %v6021 = vsel %vm3028, %v6003, %v5699
        %v6022 = vsel %vm3028, %v6004, %v5701
        %v6023 = vsel %vm3037, %v6005, %v5721
        %v6024 = vsel %vm3037, %v6006, %v5723
        %v6025 = vsel %vm3037, %v6007, %v5721
        %v6026 = vsel %vm3037, %v6008, %v5723
        %v6027 = vsel %vm3037, %v6007, %v5725
        %v6028 = vsel %vm3037, %v6008, %v5727
        %v6029 = vsel %vm3037, %v6009, %v5725
        %v6030 = vsel %vm3037, %v6010, %v5727
        %v6031 = vsel %vm3037, %v6009, %v5729
        %v6032 = vsel %vm3037, %v6010, %v5731
        %v6033 = vsel %vm3037, %v6011, %v5729
        %v6034 = vsel %vm3037, %v6012, %v5731
        %v6035 = vsel %vm3037, %v6011, %v5733
        %v6036 = vsel %vm3037, %v6012, %v5735
        %v6037 = vsel %vm3037, %v6013, %v5733
        %v6038 = vsel %vm3037, %v6014, %v5735
        %v6039 = vsel %vm3037, %v6013, %v5737
        %v6040 = vsel %vm3037, %v6014, %v5739
        %v6041 = vsel %vm3037, %v6015, %v5737
        %v6042 = vsel %vm3037, %v6016, %v5739
        %v6043 = vsel %vm3037, %v6015, %v5741
        %v6044 = vsel %vm3037, %v6016, %v5743
        %v6045 = vsel %vm3037, %v6017, %v5741
        %v6046 = vsel %vm3037, %v6018, %v5743
        %v6047 = vsel %vm3037, %v6017, %v5745
        %v6048 = vsel %vm3037, %v6018, %v5747
        %v6049 = vsel %vm3037, %v6019, %v5745
        %v6050 = vsel %vm3037, %v6020, %v5747
        %v6051 = vsel %vm3037, %v6019, %v5749
        %v6052 = vsel %vm3037, %v6020, %v5751
        %v6053 = vsel %vm3037, %v6021, %v5749
        %v6054 = vsel %vm3037, %v6022, %v5751
        %v6055 = vsel %vm3046, %v6023, %v5769
        %v6056 = vsel %vm3046, %v6024, %v5771
        %v6057 = vsel %vm3046, %v6025, %v5769
        %v6058 = vsel %vm3046, %v6026, %v5771
        %v6059 = vsel %vm3046, %v6027, %v5773
        %v6060 = vsel %vm3046, %v6028, %v5775
        %v6061 = vsel %vm3046, %v6029, %v5773
        %v6062 = vsel %vm3046, %v6030, %v5775
        %v6063 = vsel %vm3046, %v6031, %v5777
        %v6064 = vsel %vm3046, %v6032, %v5779
        %v6065 = vsel %vm3046, %v6033, %v5777
        %v6066 = vsel %vm3046, %v6034, %v5779
        %v6067 = vsel %vm3046, %v6035, %v5781
        %v6068 = vsel %vm3046, %v6036, %v5783
        %v6069 = vsel %vm3046, %v6037, %v5781
        %v6070 = vsel %vm3046, %v6038, %v5783
        %v6071 = vsel %vm3046, %v6039, %v5785
        %v6072 = vsel %vm3046, %v6040, %v5787
        %v6073 = vsel %vm3046, %v6041, %v5785
        %v6074 = vsel %vm3046, %v6042, %v5787
        %v6075 = vsel %vm3046, %v6043, %v5789
        %v6076 = vsel %vm3046, %v6044, %v5791
        %v6077 = vsel %vm3046, %v6045, %v5789
        %v6078 = vsel %vm3046, %v6046, %v5791
        %v6079 = vsel %vm3046, %v6047, %v5793
        %v6080 = vsel %vm3046, %v6048, %v5795
        %v6081 = vsel %vm3046, %v6049, %v5793
        %v6082 = vsel %vm3046, %v6050, %v5795
        %v6083 = vsel %vm3046, %v6051, %v5797
        %v6084 = vsel %vm3046, %v6052, %v5799
        %v6085 = vsel %vm3046, %v6053, %v5797
        %v6086 = vsel %vm3046, %v6054, %v5799
        %v6087 = vsel %vm3055, %v6055, %v5817
        %v6088 = vsel %vm3055, %v6056, %v5819
        %v6089 = vsel %vm3055, %v6057, %v5817
        %v6090 = vsel %vm3055, %v6058, %v5819
        %v6091 = vsel %vm3055, %v6059, %v5821
        %v6092 = vsel %vm3055, %v6060, %v5823
        %v6093 = vsel %vm3055, %v6061, %v5821
        %v6094 = vsel %vm3055, %v6062, %v5823
        %v6095 = vsel %vm3055, %v6063, %v5825
        %v6096 = vsel %vm3055, %v6064, %v5827
        %v6097 = vsel %vm3055, %v6065, %v5825
        %v6098 = vsel %vm3055, %v6066, %v5827
        %v6099 = vsel %vm3055, %v6067, %v5829
        %v6100 = vsel %vm3055, %v6068, %v5831
        %v6101 = vsel %vm3055, %v6069, %v5829
        %v6102 = vsel %vm3055, %v6070, %v5831
        %v6103 = vsel %vm3055, %v6071, %v5833
        %v6104 = vsel %vm3055, %v6072, %v5835
        %v6105 = vsel %vm3055, %v6073, %v5833
        %v6106 = vsel %vm3055, %v6074, %v5835
        %v6107 = vsel %vm3055, %v6075, %v5837
        %v6108 = vsel %vm3055, %v6076, %v5839
        %v6109 = vsel %vm3055, %v6077, %v5837
        %v6110 = vsel %vm3055, %v6078, %v5839
        %v6111 = vsel %vm3055, %v6079, %v5841
        %v6112 = vsel %vm3055, %v6080, %v5843
        %v6113 = vsel %vm3055, %v6081, %v5841
        %v6114 = vsel %vm3055, %v6082, %v5843
        %v6115 = vsel %vm3055, %v6083, %v5845
        %v6116 = vsel %vm3055, %v6084, %v5847
        %v6117 = vsel %vm3055, %v6085, %v5845
        %v6118 = vsel %vm3055, %v6086, %v5847
        %v6119 = vsel %vm3064, %v6087, %v5865
        %v6120 = vsel %vm3064, %v6088, %v5867
        %v6121 = vsel %vm3064, %v6089, %v5869
        %v6122 = vsel %vm3064, %v6090, %v5871
        %v6123 = vsel %vm3064, %v6091, %v5869
        %v6124 = vsel %vm3064, %v6092, %v5871
        %v6125 = vsel %vm3064, %v6093, %v5873
        %v6126 = vsel %vm3064, %v6094, %v5875
        %v6127 = vsel %vm3064, %v6095, %v5873
        %v6128 = vsel %vm3064, %v6096, %v5875
        %v6129 = vsel %vm3064, %v6097, %v5877
        %v6130 = vsel %vm3064, %v6098, %v5879
        %v6131 = vsel %vm3064, %v6099, %v5877
        %v6132 = vsel %vm3064, %v6100, %v5879
        %v6133 = vsel %vm3064, %v6101, %v5881
        %v6134 = vsel %vm3064, %v6102, %v5883
        %v6135 = vsel %vm3064, %v6103, %v5881
        %v6136 = vsel %vm3064, %v6104, %v5883
        %v6137 = vsel %vm3064, %v6105, %v5885
        %v6138 = vsel %vm3064, %v6106, %v5887
        %v6139 = vsel %vm3064, %v6107, %v5885
        %v6140 = vsel %vm3064, %v6108, %v5887
        %v6141 = vsel %vm3064, %v6109, %v5889
        %v6142 = vsel %vm3064, %v6110, %v5891
        %v6143 = vsel %vm3064, %v6111, %v5889
        %v6144 = vsel %vm3064, %v6112, %v5891
        %v6145 = vsel %vm3064, %v6113, %v5893
        %v6146 = vsel %vm3064, %v6114, %v5895
        %v6147 = vsel %vm3064, %v6115, %v5893
        %v6148 = vsel %vm3064, %v6116, %v5895
        %v6149 = vsel %vm3064, %v6117, %v2978
        %v6150 = vsel %vm3064, %v6118, %v5897
        %v6151 = vsel %vm3073, %v6119, %v5916
        %v6152 = vsel %vm3073, %v6120, %v5918
        %v6153 = vsel %vm3073, %v6121, %v5920
        %v6154 = vsel %vm3073, %v6122, %v5922
        %v6155 = vsel %vm3073, %v6123, %v5920
        %v6156 = vsel %vm3073, %v6124, %v5922
        %v6157 = vsel %vm3073, %v6125, %v5924
        %v6158 = vsel %vm3073, %v6126, %v5926
        %v6159 = vsel %vm3073, %v6127, %v5924
        %v6160 = vsel %vm3073, %v6128, %v5926
        %v6161 = vsel %vm3073, %v6129, %v5928
        %v6162 = vsel %vm3073, %v6130, %v5930
        %v6163 = vsel %vm3073, %v6131, %v5928
        %v6164 = vsel %vm3073, %v6132, %v5930
        %v6165 = vsel %vm3073, %v6133, %v5932
        %v6166 = vsel %vm3073, %v6134, %v5934
        %v6167 = vsel %vm3073, %v6135, %v5932
        %v6168 = vsel %vm3073, %v6136, %v5934
        %v6169 = vsel %vm3073, %v6137, %v5936
        %v6170 = vsel %vm3073, %v6138, %v5938
        %v6171 = vsel %vm3073, %v6139, %v5936
        %v6172 = vsel %vm3073, %v6140, %v5938
        %v6173 = vsel %vm3073, %v6141, %v5940
        %v6174 = vsel %vm3073, %v6142, %v5942
        %v6175 = vsel %vm3073, %v6143, %v5940
        %v6176 = vsel %vm3073, %v6144, %v5942
        %v6177 = vsel %vm3073, %v6145, %v5944
        %v6178 = vsel %vm3073, %v6146, %v5946
        %v6179 = vsel %vm3073, %v6147, %v5944
        %v6180 = vsel %vm3073, %v6148, %v5946
        %v6181 = vsel %vm3073, %v6149, %v5948
        %v6182 = vsel %vm3073, %v6150, %v5950
        %v6183 = vpack.c.bf16 %v6152, %v6151
        %v6184 = vpack.c.bf16 %v5630, %v5628
        %v6185 = vpack.c.bf16 %v6154, %v6153
        %v6186 = vpack.c.bf16 %v5635, %v5633
        %v6187 = vpack.c.bf16 %v6156, %v6155
        %v6188 = vpack.c.bf16 %v6158, %v6157
        %v6189 = vpack.c.bf16 %v5640, %v5638
        %v6190 = vpack.c.bf16 %v6160, %v6159
        %v6191 = vpack.c.bf16 %v6162, %v6161
        %v6192 = vpack.c.bf16 %v5645, %v5643
        %v6193 = vpack.c.bf16 %v6164, %v6163
        %v6194 = vpack.c.bf16 %v6166, %v6165
        %v6195 = vpack.c.bf16 %v5650, %v5648
        %v6196 = vpack.c.bf16 %v6168, %v6167
        %v6197 = vpack.c.bf16 %v6170, %v6169
        %v6198 = vpack.c.bf16 %v5655, %v5653
        %v6199 = vpack.c.bf16 %v6172, %v6171
        %v6200 = vpack.c.bf16 %v6174, %v6173
        %v6201 = vpack.c.bf16 %v5660, %v5658
        %v6202 = vpack.c.bf16 %v6176, %v6175
        %v6203 = vpack.c.bf16 %v6178, %v6177
        %v6204 = vpack.c.bf16 %v5665, %v5663
        %v6205 = vpack.c.bf16 %v6180, %v6179
        %v6206 = vpack.c.bf16 %v6182, %v6181
        %v6207 = vpack.c.bf16 %v860, %v858
        %v6208 = vld [vmem:[%s10] sm:$0xf]
        %v6209 = vld [vmem:[%s10 + $0x4] sm:$0xf]
        %v6210 = vld [vmem:[%s10 + $0x8] sm:$0xf]
        %v6211 = vld [vmem:[%s10 + $0xc] sm:$0xf]
        %v6212 = vld [vmem:[%s10 + $0x10] sm:$0xf]
        %v6213 = vld [vmem:[%s10 + $0x14] sm:$0xf]
        %v6214 = vld [vmem:[%s10 + $0x18] sm:$0xf]
        %v6215 = vld [vmem:[%s10 + $0x1c] sm:$0xf]
        %v6216 = vld [vmem:[%s10 + $0x20] sm:$0xf]
        %v6217 = vld [vmem:[%s10 + $0x24] sm:$0xf]
        %v6218 = vld [vmem:[%s10 + $0x28] sm:$0xf]
        %v6219 = vld [vmem:[%s10 + $0x2c] sm:$0xf]
        %v6220 = vld [vmem:[%s10 + $0x30] sm:$0xf]
        %v6221 = vld [vmem:[%s10 + $0x34] sm:$0xf]
        %v6222 = vld [vmem:[%s10 + $0x38] sm:$0xf]
        %v6223 = vld [vmem:[%s10 + $0x3c] sm:$0xf]
        %v6224 = vld [vmem:[%s10 + $0x40] sm:$0xf]
        %v6225 = vld [vmem:[%s10 + $0x44] sm:$0xf]
        %v6226 = vld [vmem:[#allocation2] sm:$0x1]
        %v6228 = vlaneseq
        %v6229 = vshrl.u32 %v6228, 7
        %v6230 = vsub.s32 0, %v6229
        %v6231 = vrot.slane %v6226, %v6230
        %v6251 = vunpack.c.l.b16 %v6208
        %v6252 = vunpack.c.l.b16 %v6209
        %v6253 = vunpack.c.l.b16 %v6210
        %v6254 = vunpack.c.l.b16 %v6211
        %v6255 = vunpack.c.l.b16 %v6212
        %v6256 = vunpack.c.l.b16 %v6213
        %v6257 = vunpack.c.l.b16 %v6214
        %v6258 = vunpack.c.l.b16 %v6215
        %v6259 = vunpack.c.l.b16 %v6216
        %v6260 = vunpack.c.l.b16 %v6217
        %v6261 = vunpack.c.l.b16 %v6218
        %v6262 = vunpack.c.l.b16 %v6219
        %v6263 = vunpack.c.l.b16 %v6220
        %v6264 = vunpack.c.l.b16 %v6221
        %v6265 = vunpack.c.l.b16 %v6222
        %v6266 = vunpack.c.l.b16 %v6223
        %v6267 = vunpack.c.l.b16 %v6224
        %v6268 = vunpack.c.l.b16 %v6225
        %v6269 = vpack.c.b16 %v6252, %v6251
        %v6270 = vpack.c.b16 %v6254, %v6253
        %v6271 = vpack.c.b16 %v6256, %v6255
        %v6272 = vpack.c.b16 %v6258, %v6257
        %v6273 = vpack.c.b16 %v6260, %v6259
        %v6274 = vpack.c.b16 %v6262, %v6261
        %v6275 = vpack.c.b16 %v6264, %v6263
        %v6276 = vpack.c.b16 %v6266, %v6265
        %v6277 = vpack.c.b16 %v6268, %v6267
        %v6288 = vsel %vm3019, %v6184, 0
        %v6291 = vsel %vm3019, %v6186, 0
        %v6294 = vsel %vm3019, %v6189, 0
        %v6297 = vsel %vm3019, %v6192, 0
        %v6300 = vsel %vm3019, %v6195, 0
        %v6303 = vsel %vm3019, %v6198, 0
        %v6306 = vsel %vm3019, %v6201, 0
        %v6309 = vsel %vm3019, %v6204, 0
        %v6312 = vsel %vm3019, %v6207, 0
        %6314 = vmatprep.subr.bf16.mxu0 0
        %6315 = vmatpush1.bf16.msra.mxu0 %v6276
        %6316 = vmatprep.subr.bf16.mxu0 0
        %6317 = vmatpush1.bf16.msra.mxu0 %v6275
        %6318 = vmatprep.subr.bf16.mxu0 0
        %6319 = vmatpush1.bf16.msra.mxu0 %v6274
        %6320 = vmatprep.subr.bf16.mxu0 0
        %6321 = vmatpush1.bf16.msra.mxu0 %v6273
        %6322 = vmatprep.subr.bf16.mxu0 0
        %6323 = vmatpush1.bf16.msra.mxu0 %v6272
        %6324 = vmatprep.subr.bf16.mxu0 0
        %6325 = vmatpush1.bf16.msra.mxu0 %v6271
        %6326 = vmatprep.subr.bf16.mxu0 0
        %6327 = vmatpush1.bf16.msra.mxu0 %v6270
        %6328 = vmatprep.subr.bf16.mxu0 0
        %6329 = vmatpush1.bf16.msra.mxu0 %v6269
        %6330 = vmatprep.subr.bf16.mxu0 0
        %6331 = vmatpush2.bf16.msra.mxu0 0
        %6332 = vmatprep.subr.bf16.mxu0 0
        %6333 = vmatpush2.bf16.msra.mxu0 0
        %6334 = vmatprep.subr.bf16.mxu0 0
        %6335 = vmatpush2.bf16.msra.mxu0 0
        %6336 = vmatprep.subr.bf16.mxu0 0
        %6337 = vmatpush2.bf16.msra.mxu0 0
        %6338 = vmatprep.subr.bf16.mxu0 0
        %6339 = vmatpush2.bf16.msra.mxu0 0
        %6340 = vmatprep.subr.bf16.mxu0 0
        %6341 = vmatpush2.bf16.msra.mxu0 0
        %6342 = vmatprep.subr.bf16.mxu0 0
        %6343 = vmatpush2.bf16.msra.mxu0 0
        %6344 = vmatprep.subr.bf16.mxu0 0
        %6345 = vmatpush2.bf16.msra.mxu0 %v6277
        %6346 = vmatprep.mubr.bf16.mxu0 %v6288
        %6347 = vmatmul.mubr.bf16.gmra.mxu0 %v6183
        %v6348 = vpop.f32.mrf.mxu0
        %v6349 = vadd.f32 %v6231, %v6348
        %v6350 = vpop.f32.mrf.mxu0
        %v6351 = vpop.f32.mrf.mxu0
        %v6352 = vadd.f32 %v6231, %v6351
        %v6353 = vpop.f32.mrf.mxu0
        %6354 = vmatprep.mubr.bf16.mxu0 %v6291
        %6355 = vmatmul.mubr.bf16.gmra.mxu0 %v6185
        %v6356 = vpop.f32.mrf.mxu0
        %v6357 = vadd.f32 %v6231, %v6356
        %v6358 = vpop.f32.mrf.mxu0
        %v6359 = vpop.f32.mrf.mxu0
        %v6360 = vadd.f32 %v6231, %v6359
        %v6361 = vpop.f32.mrf.mxu0
        %6362 = vmatprep.mubr.bf16.mxu0 %v6291
        %6363 = vmatmul.mubr.bf16.gmra.mxu0 %v6187
        %v6364 = vpop.f32.mrf.mxu0
        %v6365 = vadd.f32 %v6231, %v6364
        %v6366 = vpop.f32.mrf.mxu0
        %v6367 = vpop.f32.mrf.mxu0
        %v6368 = vadd.f32 %v6231, %v6367
        %v6369 = vpop.f32.mrf.mxu0
        %6370 = vmatprep.mubr.bf16.mxu0 %v6294
        %6371 = vmatmul.mubr.bf16.gmra.mxu0 %v6188
        %v6372 = vpop.f32.mrf.mxu0
        %v6373 = vadd.f32 %v6231, %v6372
        %v6374 = vpop.f32.mrf.mxu0
        %v6375 = vpop.f32.mrf.mxu0
        %v6376 = vadd.f32 %v6231, %v6375
        %v6377 = vpop.f32.mrf.mxu0
        %6378 = vmatprep.mubr.bf16.mxu0 %v6294
        %6379 = vmatmul.mubr.bf16.gmra.mxu0 %v6190
        %v6380 = vpop.f32.mrf.mxu0
        %v6381 = vadd.f32 %v6231, %v6380
        %v6382 = vpop.f32.mrf.mxu0
        %v6383 = vpop.f32.mrf.mxu0
        %v6384 = vadd.f32 %v6231, %v6383
        %v6385 = vpop.f32.mrf.mxu0
        %6386 = vmatprep.mubr.bf16.mxu0 %v6297
        %6387 = vmatmul.mubr.bf16.gmra.mxu0 %v6191
        %v6388 = vpop.f32.mrf.mxu0
        %v6389 = vadd.f32 %v6231, %v6388
        %v6390 = vpop.f32.mrf.mxu0
        %v6391 = vpop.f32.mrf.mxu0
        %v6392 = vadd.f32 %v6231, %v6391
        %v6393 = vpop.f32.mrf.mxu0
        %6394 = vmatprep.mubr.bf16.mxu0 %v6297
        %6395 = vmatmul.mubr.bf16.gmra.mxu0 %v6193
        %v6396 = vpop.f32.mrf.mxu0
        %v6397 = vadd.f32 %v6231, %v6396
        %v6398 = vpop.f32.mrf.mxu0
        %v6399 = vpop.f32.mrf.mxu0
        %v6400 = vadd.f32 %v6231, %v6399
        %v6401 = vpop.f32.mrf.mxu0
        %6402 = vmatprep.mubr.bf16.mxu0 %v6300
        %6403 = vmatmul.mubr.bf16.gmra.mxu0 %v6194
        %v6404 = vpop.f32.mrf.mxu0
        %v6405 = vadd.f32 %v6231, %v6404
        %v6406 = vpop.f32.mrf.mxu0
        %v6407 = vpop.f32.mrf.mxu0
        %v6408 = vadd.f32 %v6231, %v6407
        %v6409 = vpop.f32.mrf.mxu0
        %6410 = vmatprep.mubr.bf16.mxu0 %v6300
        %6411 = vmatmul.mubr.bf16.gmra.mxu0 %v6196
        %v6412 = vpop.f32.mrf.mxu0
        %v6413 = vadd.f32 %v6231, %v6412
        %v6414 = vpop.f32.mrf.mxu0
        %v6415 = vpop.f32.mrf.mxu0
        %v6416 = vadd.f32 %v6231, %v6415
        %v6417 = vpop.f32.mrf.mxu0
        %6418 = vmatprep.mubr.bf16.mxu0 %v6303
        %6419 = vmatmul.mubr.bf16.gmra.mxu0 %v6197
        %v6420 = vpop.f32.mrf.mxu0
        %v6421 = vadd.f32 %v6231, %v6420
        %v6422 = vpop.f32.mrf.mxu0
        %v6423 = vpop.f32.mrf.mxu0
        %v6424 = vadd.f32 %v6231, %v6423
        %v6425 = vpop.f32.mrf.mxu0
        %6426 = vmatprep.mubr.bf16.mxu0 %v6303
        %6427 = vmatmul.mubr.bf16.gmra.mxu0 %v6199
        %v6428 = vpop.f32.mrf.mxu0
        %v6429 = vadd.f32 %v6231, %v6428
        %v6430 = vpop.f32.mrf.mxu0
        %v6431 = vpop.f32.mrf.mxu0
        %v6432 = vadd.f32 %v6231, %v6431
        %v6433 = vpop.f32.mrf.mxu0
        %6434 = vmatprep.mubr.bf16.mxu0 %v6306
        %6435 = vmatmul.mubr.bf16.gmra.mxu0 %v6200
        %v6436 = vpop.f32.mrf.mxu0
        %v6437 = vadd.f32 %v6231, %v6436
        %v6438 = vpop.f32.mrf.mxu0
        %v6439 = vpop.f32.mrf.mxu0
        %v6440 = vadd.f32 %v6231, %v6439
        %v6441 = vpop.f32.mrf.mxu0
        %6442 = vmatprep.mubr.bf16.mxu0 %v6306
        %6443 = vmatmul.mubr.bf16.gmra.mxu0 %v6202
        %v6444 = vpop.f32.mrf.mxu0
        %v6445 = vadd.f32 %v6231, %v6444
        %v6446 = vpop.f32.mrf.mxu0
        %v6447 = vpop.f32.mrf.mxu0
        %v6448 = vadd.f32 %v6231, %v6447
        %v6449 = vpop.f32.mrf.mxu0
        %6450 = vmatprep.mubr.bf16.mxu0 %v6309
        %6451 = vmatmul.mubr.bf16.gmra.mxu0 %v6203
        %v6452 = vpop.f32.mrf.mxu0
        %v6453 = vadd.f32 %v6231, %v6452
        %v6454 = vpop.f32.mrf.mxu0
        %v6455 = vpop.f32.mrf.mxu0
        %v6456 = vadd.f32 %v6231, %v6455
        %v6457 = vpop.f32.mrf.mxu0
        %6458 = vmatprep.mubr.bf16.mxu0 %v6309
        %6459 = vmatmul.mubr.bf16.gmra.mxu0 %v6205
        %v6460 = vpop.f32.mrf.mxu0
        %v6461 = vadd.f32 %v6231, %v6460
        %v6462 = vpop.f32.mrf.mxu0
        %v6463 = vpop.f32.mrf.mxu0
        %v6464 = vadd.f32 %v6231, %v6463
        %v6465 = vpop.f32.mrf.mxu0
        %6466 = vmatprep.mubr.bf16.mxu0 %v6312
        %6467 = vmatmul.mubr.bf16.gmra.mxu0 %v6206
        %v6468 = vpop.f32.mrf.mxu0
        %v6469 = vadd.f32 %v6231, %v6468
        %v6470 = vpop.f32.mrf.mxu0
        %v6471 = vpop.f32.mrf.mxu0
        %v6472 = vadd.f32 %v6231, %v6471
        %v6473 = vpop.f32.mrf.mxu0
        %6474 = vdwg.mxu0
        %v6475 = vxor.u32 %v6349, 2147483648
        %v6476 = vxor.u32 %v6352, 2147483648
        %v6477 = vxor.u32 %v6357, 2147483648
        %v6478 = vxor.u32 %v6360, 2147483648
        %v6479 = vxor.u32 %v6365, 2147483648
        %v6480 = vxor.u32 %v6368, 2147483648
        %v6481 = vxor.u32 %v6373, 2147483648
        %v6482 = vxor.u32 %v6376, 2147483648
        %v6483 = vxor.u32 %v6381, 2147483648
        %v6484 = vxor.u32 %v6384, 2147483648
        %v6485 = vxor.u32 %v6389, 2147483648
        %v6486 = vxor.u32 %v6392, 2147483648
        %v6487 = vxor.u32 %v6397, 2147483648
        %v6488 = vxor.u32 %v6400, 2147483648
        %v6489 = vxor.u32 %v6405, 2147483648
        %v6490 = vxor.u32 %v6408, 2147483648
        %v6491 = vxor.u32 %v6413, 2147483648
        %v6492 = vxor.u32 %v6416, 2147483648
        %v6493 = vxor.u32 %v6421, 2147483648
        %v6494 = vxor.u32 %v6424, 2147483648
        %v6495 = vxor.u32 %v6429, 2147483648
        %v6496 = vxor.u32 %v6432, 2147483648
        %v6497 = vxor.u32 %v6437, 2147483648
        %v6498 = vxor.u32 %v6440, 2147483648
        %v6499 = vxor.u32 %v6445, 2147483648
        %v6500 = vxor.u32 %v6448, 2147483648
        %v6501 = vxor.u32 %v6453, 2147483648
        %v6502 = vxor.u32 %v6456, 2147483648
        %v6503 = vxor.u32 %v6461, 2147483648
        %v6504 = vxor.u32 %v6464, 2147483648
        %v6505 = vxor.u32 %v6469, 2147483648
        %v6506 = vxor.u32 %v6472, 2147483648
        %v6507 = vmul.f32 %v6475, 1.442695
        %v6508 = vpow.pop %v6507
        %v6509 = vmul.f32 %v6476, 1.442695
        %v6510 = vpow.pop %v6509
        %v6511 = vmul.f32 %v6477, 1.442695
        %v6512 = vpow.pop %v6511
        %v6513 = vmul.f32 %v6478, 1.442695
        %v6514 = vpow.pop %v6513
        %v6515 = vmul.f32 %v6479, 1.442695
        %v6516 = vpow.pop %v6515
        %v6517 = vmul.f32 %v6480, 1.442695
        %v6518 = vpow.pop %v6517
        %v6519 = vmul.f32 %v6481, 1.442695
        %v6520 = vpow.pop %v6519
        %v6521 = vmul.f32 %v6482, 1.442695
        %v6522 = vpow.pop %v6521
        %v6523 = vmul.f32 %v6483, 1.442695
        %v6524 = vpow.pop %v6523
        %v6525 = vmul.f32 %v6484, 1.442695
        %v6526 = vpow.pop %v6525
        %v6527 = vmul.f32 %v6485, 1.442695
        %v6528 = vpow.pop %v6527
        %v6529 = vmul.f32 %v6486, 1.442695
        %v6530 = vpow.pop %v6529
        %v6531 = vmul.f32 %v6487, 1.442695
        %v6532 = vpow.pop %v6531
        %v6533 = vmul.f32 %v6488, 1.442695
        %v6534 = vpow.pop %v6533
        %v6535 = vmul.f32 %v6489, 1.442695
        %v6536 = vpow.pop %v6535
        %v6537 = vmul.f32 %v6490, 1.442695
        %v6538 = vpow.pop %v6537
        %v6539 = vmul.f32 %v6491, 1.442695
        %v6540 = vpow.pop %v6539
        %v6541 = vmul.f32 %v6492, 1.442695
        %v6542 = vpow.pop %v6541
        %v6543 = vmul.f32 %v6493, 1.442695
        %v6544 = vpow.pop %v6543
        %v6545 = vmul.f32 %v6494, 1.442695
        %v6546 = vpow.pop %v6545
        %v6547 = vmul.f32 %v6495, 1.442695
        %v6548 = vpow.pop %v6547
        %v6549 = vmul.f32 %v6496, 1.442695
        %v6550 = vpow.pop %v6549
        %v6551 = vmul.f32 %v6497, 1.442695
        %v6552 = vpow.pop %v6551
        %v6553 = vmul.f32 %v6498, 1.442695
        %v6554 = vpow.pop %v6553
        %v6555 = vmul.f32 %v6499, 1.442695
        %v6556 = vpow.pop %v6555
        %v6557 = vmul.f32 %v6500, 1.442695
        %v6558 = vpow.pop %v6557
        %v6559 = vmul.f32 %v6501, 1.442695
        %v6560 = vpow.pop %v6559
        %v6561 = vmul.f32 %v6502, 1.442695
        %v6562 = vpow.pop %v6561
        %v6563 = vmul.f32 %v6503, 1.442695
        %v6564 = vpow.pop %v6563
        %v6565 = vmul.f32 %v6504, 1.442695
        %v6566 = vpow.pop %v6565
        %v6567 = vmul.f32 %v6505, 1.442695
        %v6568 = vpow.pop %v6567
        %v6569 = vmul.f32 %v6506, 1.442695
        %v6570 = vpow.pop %v6569
        %v6571 = vadd.f32 %v6508, 1.0
        %v6572 = vadd.f32 %v6510, 1.0
        %v6573 = vadd.f32 %v6512, 1.0
        %v6574 = vadd.f32 %v6514, 1.0
        %v6575 = vadd.f32 %v6516, 1.0
        %v6576 = vadd.f32 %v6518, 1.0
        %v6577 = vadd.f32 %v6520, 1.0
        %v6578 = vadd.f32 %v6522, 1.0
        %v6579 = vadd.f32 %v6524, 1.0
        %v6580 = vadd.f32 %v6526, 1.0
        %v6581 = vadd.f32 %v6528, 1.0
        %v6582 = vadd.f32 %v6530, 1.0
        %v6583 = vadd.f32 %v6532, 1.0
        %v6584 = vadd.f32 %v6534, 1.0
        %v6585 = vadd.f32 %v6536, 1.0
        %v6586 = vadd.f32 %v6538, 1.0
        %v6587 = vadd.f32 %v6540, 1.0
        %v6588 = vadd.f32 %v6542, 1.0
        %v6589 = vadd.f32 %v6544, 1.0
        %v6590 = vadd.f32 %v6546, 1.0
        %v6591 = vadd.f32 %v6548, 1.0
        %v6592 = vadd.f32 %v6550, 1.0
        %v6593 = vadd.f32 %v6552, 1.0
        %v6594 = vadd.f32 %v6554, 1.0
        %v6595 = vadd.f32 %v6556, 1.0
        %v6596 = vadd.f32 %v6558, 1.0
        %v6597 = vadd.f32 %v6560, 1.0
        %v6598 = vadd.f32 %v6562, 1.0
        %v6599 = vadd.f32 %v6564, 1.0
        %v6600 = vadd.f32 %v6566, 1.0
        %v6601 = vadd.f32 %v6568, 1.0
        %v6602 = vadd.f32 %v6570, 1.0
        %v6603 = vrcp.pop %v6571
        %v6604 = vmul.f32 1.0, %v6603
        %v6605 = vrcp.pop %v6572
        %v6606 = vmul.f32 1.0, %v6605
        %v6607 = vrcp.pop %v6573
        %v6608 = vmul.f32 1.0, %v6607
        %v6609 = vrcp.pop %v6574
        %v6610 = vmul.f32 1.0, %v6609
        %v6611 = vrcp.pop %v6575
        %v6612 = vmul.f32 1.0, %v6611
        %v6613 = vrcp.pop %v6576
        %v6614 = vmul.f32 1.0, %v6613
        %v6615 = vrcp.pop %v6577
        %v6616 = vmul.f32 1.0, %v6615
        %v6617 = vrcp.pop %v6578
        %v6618 = vmul.f32 1.0, %v6617
        %v6619 = vrcp.pop %v6579
        %v6620 = vmul.f32 1.0, %v6619
        %v6621 = vrcp.pop %v6580
        %v6622 = vmul.f32 1.0, %v6621
        %v6623 = vrcp.pop %v6581
        %v6624 = vmul.f32 1.0, %v6623
        %v6625 = vrcp.pop %v6582
        %v6626 = vmul.f32 1.0, %v6625
        %v6627 = vrcp.pop %v6583
        %v6628 = vmul.f32 1.0, %v6627
        %v6629 = vrcp.pop %v6584
        %v6630 = vmul.f32 1.0, %v6629
        %v6631 = vrcp.pop %v6585
        %v6632 = vmul.f32 1.0, %v6631
        %v6633 = vrcp.pop %v6586
        %v6634 = vmul.f32 1.0, %v6633
        %v6635 = vrcp.pop %v6587
        %v6636 = vmul.f32 1.0, %v6635
        %v6637 = vrcp.pop %v6588
        %v6638 = vmul.f32 1.0, %v6637
        %v6639 = vrcp.pop %v6589
        %v6640 = vmul.f32 1.0, %v6639
        %v6641 = vrcp.pop %v6590
        %v6642 = vmul.f32 1.0, %v6641
        %v6643 = vrcp.pop %v6591
        %v6644 = vmul.f32 1.0, %v6643
        %v6645 = vrcp.pop %v6592
        %v6646 = vmul.f32 1.0, %v6645
        %v6647 = vrcp.pop %v6593
        %v6648 = vmul.f32 1.0, %v6647
        %v6649 = vrcp.pop %v6594
        %v6650 = vmul.f32 1.0, %v6649
        %v6651 = vrcp.pop %v6595
        %v6652 = vmul.f32 1.0, %v6651
        %v6653 = vrcp.pop %v6596
        %v6654 = vmul.f32 1.0, %v6653
        %v6655 = vrcp.pop %v6597
        %v6656 = vmul.f32 1.0, %v6655
        %v6657 = vrcp.pop %v6598
        %v6658 = vmul.f32 1.0, %v6657
        %v6659 = vrcp.pop %v6599
        %v6660 = vmul.f32 1.0, %v6659
        %v6661 = vrcp.pop %v6600
        %v6662 = vmul.f32 1.0, %v6661
        %v6663 = vrcp.pop %v6601
        %v6664 = vmul.f32 1.0, %v6663
        %v6665 = vrcp.pop %v6602
        %v6666 = vmul.f32 1.0, %v6665
        %6699 = vset.pattern.permute.xlu0 0
        %6700 = vperm.xlu0 %6699, %v6604
        %v6701 = vpop.permute.xlu0 %6700
        %6702 = vset.pattern.permute.xlu0 0
        %6703 = vperm.xlu0 %6702, %v6606
        %v6704 = vpop.permute.xlu0 %6703
        %6705 = vset.pattern.permute.xlu0 0
        %6706 = vperm.xlu0 %6705, %v6608
        %v6707 = vpop.permute.xlu0 %6706
        %6708 = vset.pattern.permute.xlu0 0
        %6709 = vperm.xlu0 %6708, %v6610
        %v6710 = vpop.permute.xlu0 %6709
        %6711 = vset.pattern.permute.xlu0 0
        %6712 = vperm.xlu0 %6711, %v6612
        %v6713 = vpop.permute.xlu0 %6712
        %6714 = vset.pattern.permute.xlu0 0
        %6715 = vperm.xlu0 %6714, %v6614
        %v6716 = vpop.permute.xlu0 %6715
        %6717 = vset.pattern.permute.xlu0 0
        %6718 = vperm.xlu0 %6717, %v6616
        %v6719 = vpop.permute.xlu0 %6718
        %6720 = vset.pattern.permute.xlu0 0
        %6721 = vperm.xlu0 %6720, %v6618
        %v6722 = vpop.permute.xlu0 %6721
        %6723 = vset.pattern.permute.xlu0 0
        %6724 = vperm.xlu0 %6723, %v6620
        %v6725 = vpop.permute.xlu0 %6724
        %6726 = vset.pattern.permute.xlu0 0
        %6727 = vperm.xlu0 %6726, %v6622
        %v6728 = vpop.permute.xlu0 %6727
        %6729 = vset.pattern.permute.xlu0 0
        %6730 = vperm.xlu0 %6729, %v6624
        %v6731 = vpop.permute.xlu0 %6730
        %6732 = vset.pattern.permute.xlu0 0
        %6733 = vperm.xlu0 %6732, %v6626
        %v6734 = vpop.permute.xlu0 %6733
        %6735 = vset.pattern.permute.xlu0 0
        %6736 = vperm.xlu0 %6735, %v6628
        %v6737 = vpop.permute.xlu0 %6736
        %6738 = vset.pattern.permute.xlu0 0
        %6739 = vperm.xlu0 %6738, %v6630
        %v6740 = vpop.permute.xlu0 %6739
        %6741 = vset.pattern.permute.xlu0 0
        %6742 = vperm.xlu0 %6741, %v6632
        %v6743 = vpop.permute.xlu0 %6742
        %6744 = vset.pattern.permute.xlu0 0
        %6745 = vperm.xlu0 %6744, %v6634
        %v6746 = vpop.permute.xlu0 %6745
        %6747 = vset.pattern.permute.xlu0 0
        %6748 = vperm.xlu0 %6747, %v6636
        %v6749 = vpop.permute.xlu0 %6748
        %6750 = vset.pattern.permute.xlu0 0
        %6751 = vperm.xlu0 %6750, %v6638
        %v6752 = vpop.permute.xlu0 %6751
        %6753 = vset.pattern.permute.xlu0 0
        %6754 = vperm.xlu0 %6753, %v6640
        %v6755 = vpop.permute.xlu0 %6754
        %6756 = vset.pattern.permute.xlu0 0
        %6757 = vperm.xlu0 %6756, %v6642
        %v6758 = vpop.permute.xlu0 %6757
        %6759 = vset.pattern.permute.xlu0 0
        %6760 = vperm.xlu0 %6759, %v6644
        %v6761 = vpop.permute.xlu0 %6760
        %6762 = vset.pattern.permute.xlu0 0
        %6763 = vperm.xlu0 %6762, %v6646
        %v6764 = vpop.permute.xlu0 %6763
        %6765 = vset.pattern.permute.xlu0 0
        %6766 = vperm.xlu0 %6765, %v6648
        %v6767 = vpop.permute.xlu0 %6766
        %6768 = vset.pattern.permute.xlu0 0
        %6769 = vperm.xlu0 %6768, %v6650
        %v6770 = vpop.permute.xlu0 %6769
        %6771 = vset.pattern.permute.xlu0 0
        %6772 = vperm.xlu0 %6771, %v6652
        %v6773 = vpop.permute.xlu0 %6772
        %6774 = vset.pattern.permute.xlu0 0
        %6775 = vperm.xlu0 %6774, %v6654
        %v6776 = vpop.permute.xlu0 %6775
        %6777 = vset.pattern.permute.xlu0 0
        %6778 = vperm.xlu0 %6777, %v6656
        %v6779 = vpop.permute.xlu0 %6778
        %6780 = vset.pattern.permute.xlu0 0
        %6781 = vperm.xlu0 %6780, %v6658
        %v6782 = vpop.permute.xlu0 %6781
        %6783 = vset.pattern.permute.xlu0 0
        %6784 = vperm.xlu0 %6783, %v6660
        %v6785 = vpop.permute.xlu0 %6784
        %6786 = vset.pattern.permute.xlu0 0
        %6787 = vperm.xlu0 %6786, %v6662
        %v6788 = vpop.permute.xlu0 %6787
        %6789 = vset.pattern.permute.xlu0 0
        %6790 = vperm.xlu0 %6789, %v6664
        %v6791 = vpop.permute.xlu0 %6790
        %6792 = vset.pattern.permute.xlu0 0
        %6793 = vperm.xlu0 %6792, %v6666
        %v6794 = vpop.permute.xlu0 %6793
        %v6795 = vlaneseq
        %v6796 = vand.u32 %v6795, 127
        %v6797 = vlaneseq
        %v6798 = vshrl.u32 %v6797, 7
        %v6799 = vsub.s32 %v6796, %v6798
        %v6800 = vrot.slane %v6701, %v6799
        %v6801 = vadd.s32 %v6796, 4294967288
        %v6802 = vlaneseq
        %v6803 = vshrl.u32 %v6802, 7
        %v6804 = vsub.s32 %v6801, %v6803
        %v6805 = vrot.slane %v6704, %v6804
        %vm6806 = vcmask 130112
        %v6807 = vsel %vm6806, %v6805, %v6800
        %v6808 = vlaneseq
        %v6809 = vshrl.u32 %v6808, 7
        %v6810 = vsub.s32 %v6796, %v6809
        %v6811 = vrot.slane %v6707, %v6810
        %v6812 = vlaneseq
        %v6813 = vshrl.u32 %v6812, 7
        %v6814 = vsub.s32 %v6801, %v6813
        %v6815 = vrot.slane %v6710, %v6814
        %v6816 = vsel %vm6806, %v6815, %v6811
        %v6817 = vlaneseq
        %v6818 = vshrl.u32 %v6817, 7
        %v6819 = vsub.s32 %v6796, %v6818
        %v6820 = vrot.slane %v6713, %v6819
        %v6821 = vlaneseq
        %v6822 = vshrl.u32 %v6821, 7
        %v6823 = vsub.s32 %v6801, %v6822
        %v6824 = vrot.slane %v6716, %v6823
        %v6825 = vsel %vm6806, %v6824, %v6820
        %v6826 = vlaneseq
        %v6827 = vshrl.u32 %v6826, 7
        %v6828 = vsub.s32 %v6796, %v6827
        %v6829 = vrot.slane %v6719, %v6828
        %v6830 = vlaneseq
        %v6831 = vshrl.u32 %v6830, 7
        %v6832 = vsub.s32 %v6801, %v6831
        %v6833 = vrot.slane %v6722, %v6832
        %v6834 = vsel %vm6806, %v6833, %v6829
        %v6835 = vlaneseq
        %v6836 = vshrl.u32 %v6835, 7
        %v6837 = vsub.s32 %v6796, %v6836
        %v6838 = vrot.slane %v6725, %v6837
        %v6839 = vlaneseq
        %v6840 = vshrl.u32 %v6839, 7
        %v6841 = vsub.s32 %v6801, %v6840
        %v6842 = vrot.slane %v6728, %v6841
        %v6843 = vsel %vm6806, %v6842, %v6838
        %v6844 = vlaneseq
        %v6845 = vshrl.u32 %v6844, 7
        %v6846 = vsub.s32 %v6796, %v6845
        %v6847 = vrot.slane %v6731, %v6846
        %v6848 = vlaneseq
        %v6849 = vshrl.u32 %v6848, 7
        %v6850 = vsub.s32 %v6801, %v6849
        %v6851 = vrot.slane %v6734, %v6850
        %v6852 = vsel %vm6806, %v6851, %v6847
        %v6853 = vlaneseq
        %v6854 = vshrl.u32 %v6853, 7
        %v6855 = vsub.s32 %v6796, %v6854
        %v6856 = vrot.slane %v6737, %v6855
        %v6857 = vlaneseq
        %v6858 = vshrl.u32 %v6857, 7
        %v6859 = vsub.s32 %v6801, %v6858
        %v6860 = vrot.slane %v6740, %v6859
        %v6861 = vsel %vm6806, %v6860, %v6856
        %v6862 = vlaneseq
        %v6863 = vshrl.u32 %v6862, 7
        %v6864 = vsub.s32 %v6796, %v6863
        %v6865 = vrot.slane %v6743, %v6864
        %v6866 = vlaneseq
        %v6867 = vshrl.u32 %v6866, 7
        %v6868 = vsub.s32 %v6801, %v6867
        %v6869 = vrot.slane %v6746, %v6868
        %v6870 = vsel %vm6806, %v6869, %v6865
        %v6871 = vlaneseq
        %v6872 = vshrl.u32 %v6871, 7
        %v6873 = vsub.s32 %v6796, %v6872
        %v6874 = vrot.slane %v6749, %v6873
        %v6875 = vlaneseq
        %v6876 = vshrl.u32 %v6875, 7
        %v6877 = vsub.s32 %v6801, %v6876
        %v6878 = vrot.slane %v6752, %v6877
        %v6879 = vsel %vm6806, %v6878, %v6874
        %v6880 = vlaneseq
        %v6881 = vshrl.u32 %v6880, 7
        %v6882 = vsub.s32 %v6796, %v6881
        %v6883 = vrot.slane %v6755, %v6882
        %v6884 = vlaneseq
        %v6885 = vshrl.u32 %v6884, 7
        %v6886 = vsub.s32 %v6801, %v6885
        %v6887 = vrot.slane %v6758, %v6886
        %v6888 = vsel %vm6806, %v6887, %v6883
        %v6889 = vlaneseq
        %v6890 = vshrl.u32 %v6889, 7
        %v6891 = vsub.s32 %v6796, %v6890
        %v6892 = vrot.slane %v6761, %v6891
        %v6893 = vlaneseq
        %v6894 = vshrl.u32 %v6893, 7
        %v6895 = vsub.s32 %v6801, %v6894
        %v6896 = vrot.slane %v6764, %v6895
        %v6897 = vsel %vm6806, %v6896, %v6892
        %v6898 = vlaneseq
        %v6899 = vshrl.u32 %v6898, 7
        %v6900 = vsub.s32 %v6796, %v6899
        %v6901 = vrot.slane %v6767, %v6900
        %v6902 = vlaneseq
        %v6903 = vshrl.u32 %v6902, 7
        %v6904 = vsub.s32 %v6801, %v6903
        %v6905 = vrot.slane %v6770, %v6904
        %v6906 = vsel %vm6806, %v6905, %v6901
        %v6907 = vlaneseq
        %v6908 = vshrl.u32 %v6907, 7
        %v6909 = vsub.s32 %v6796, %v6908
        %v6910 = vrot.slane %v6773, %v6909
        %v6911 = vlaneseq
        %v6912 = vshrl.u32 %v6911, 7
        %v6913 = vsub.s32 %v6801, %v6912
        %v6914 = vrot.slane %v6776, %v6913
        %v6915 = vsel %vm6806, %v6914, %v6910
        %v6916 = vlaneseq
        %v6917 = vshrl.u32 %v6916, 7
        %v6918 = vsub.s32 %v6796, %v6917
        %v6919 = vrot.slane %v6779, %v6918
        %v6920 = vlaneseq
        %v6921 = vshrl.u32 %v6920, 7
        %v6922 = vsub.s32 %v6801, %v6921
        %v6923 = vrot.slane %v6782, %v6922
        %v6924 = vsel %vm6806, %v6923, %v6919
        %v6925 = vlaneseq
        %v6926 = vshrl.u32 %v6925, 7
        %v6927 = vsub.s32 %v6796, %v6926
        %v6928 = vrot.slane %v6785, %v6927
        %v6929 = vlaneseq
        %v6930 = vshrl.u32 %v6929, 7
        %v6931 = vsub.s32 %v6801, %v6930
        %v6932 = vrot.slane %v6788, %v6931
        %v6933 = vsel %vm6806, %v6932, %v6928
        %v6934 = vlaneseq
        %v6935 = vshrl.u32 %v6934, 7
        %v6936 = vsub.s32 %v6796, %v6935
        %v6937 = vrot.slane %v6791, %v6936
        %v6938 = vlaneseq
        %v6939 = vshrl.u32 %v6938, 7
        %v6940 = vsub.s32 %v6801, %v6939
        %v6941 = vrot.slane %v6794, %v6940
        %v6942 = vsel %vm6806, %v6941, %v6937
        %v6943 = vsel %vm2682, %v6816, %v6807
        %v6944 = vsel %vm2684, %v6825, %v6943
        %v6945 = vsel %vm2686, %v6834, %v6944
        %v6946 = vsel %vm2688, %v6843, %v6945
        %v6947 = vsel %vm2690, %v6852, %v6946
        %v6948 = vsel %vm2692, %v6861, %v6947
        %v6949 = vsel %vm2694, %v6870, %v6948
        %v6950 = vsel %vm2682, %v6888, %v6879
        %v6951 = vsel %vm2684, %v6897, %v6950
        %v6952 = vsel %vm2686, %v6906, %v6951
        %v6953 = vsel %vm2688, %v6915, %v6952
        %v6954 = vsel %vm2690, %v6924, %v6953
        %v6955 = vsel %vm2692, %v6933, %v6954
        %v6956 = vsel %vm2694, %v6942, %v6955
        %6959 = vst.msk [vmem:[%s408] sm:$0xff] %vm3019, %v6949
        %6960 = vst.msk [vmem:[%s408 + $0x8] sm:$0xff] %vm3019, %v6956
        %s6961 = sand.u32 %s293, 1
        %s6962 = scalar_lea.sflag [#allocation4], %s6961
        %s6963 = sand.u32 %s293, 1
        %s6964 = smul.addr %s6963, 16
        %s6965 = scalar_lea.vmem [#allocation3], %s6964
        // Predicated region
        $region69: #{depth_model_forward.1} parent=67 // pred_check
          %p6966 = pneg %p303
        $region70: #{depth_model_forward.1} parent=67 // pred_check_branch
          %6968 = sbr.rel (%p6966) target = $region72
        $region71: #{depth_model_forward.1} parent=67 // pred_region
          %s6970 = ssub.s32 256, 256
          %6971 = vsyncadd %s6962, %s6970
          %s6972 = smul.addr %s28, 2
          %s6973 = smul.addr %s6972, 128
          %s6974 = scalar_lea.hbm %s12, %s6973
          %s6975 = sshll.u32 %s6965, 4
          %s6976 = int_to_ptr.vmem [resolvable:$true] %s6975
          %6981 = dma.vmem_to_hbm [thread:$0]  %s6976, 256, %s6974, %s6962, 128, 128, 8
        $region72: #{depth_model_forward.1} parent=67 // pred_fallthru
          _
      $region68: #{depth_model_forward.1} parent=5 // pred_fallthru
        _
      %p6982 = scmp.le.s32.totalorder 2, %s23
      // Predicated region
      $region73: #{depth_model_forward.1} parent=5 // pred_check
        %p6983 = pneg %p6982
      $region74: #{depth_model_forward.1} parent=5 // pred_check_branch
        %6985 = sbr.rel (%p6983) target = $region76
      $region75: #{depth_model_forward.1} parent=5 // pred_region
        %s6986 = ssub.s32 %s23, 2
        // Predicated region
        $region77: #{depth_model_forward.1} parent=75 // pred_check
          %p6987 = pneg %p309
        $region78: #{depth_model_forward.1} parent=75 // pred_check_branch
          %6989 = sbr.rel (%p6987) target = $region80
        $region79: #{depth_model_forward.1} parent=75 // pred_region
          %s6990 = sand.u32 %s294, 1
          %s6991 = scalar_lea.sflag [#allocation4], %s6990
          %s6992 = sand.u32 %s294, 1
          %s6993 = smul.addr %s6992, 16
          %s6994 = scalar_lea.vmem [#allocation3], %s6993
          %6995 = dma.done %s6991, 256
        $region80: #{depth_model_forward.1} parent=75 // pred_fallthru
          _
      $region76: #{depth_model_forward.1} parent=5 // pred_fallthru
        _
    $region6: #{depth_model_forward.1} parent=1 // loop_footer
      %s27 = sadd.s32 1, %s23
    $region7: #{depth_model_forward.1} parent=1 // loop_footer_branch
      %22 = sbr.rel target = $region3
    $region8: #{depth_model_forward.1} parent=1 // loop_exit
      _
    %6996 = vsyncpa [#allocation4], 1
    %s6997 = scalar_lea.sflag [#allocation4], 1
    %6998 = vsyncpa %s6997, 1

</llo_original>
